<compile_context>
chip_gen: v7x
topology: tpu7x:2x2x1
jax: 0.10.0
libtpu: 0.0.40
codegen_flags: <defaults>
</compile_context>

<pallas_src>
import functools

import numpy as np
import jax
import jax.numpy as jnp
from jax.experimental import pallas as pl
from jax.experimental.pallas import tpu as pltpu


# ---------------------------------------------------------------------------
# Fused FAM2 kernel
# ---------------------------------------------------------------------------
def _fam2_kernel(Ho, Wo, C2, s_ref, x2_ref, wt_ref, w2_ref, b1_ref, b2_ref,
                 o_ref, m_buf):
    """One batch image per grid step.

    s_ref  : (1, Ho+1, Wo+1, 4*C1) bf16  space-to-depth planes of padded x1
    x2_ref : (1, Ho, Wo, C2)       f32
    wt_ref : (4, 4*C1, C2)         bf16  shift-grouped trans weights
    w2_ref : (9, C2, C2)           bf16  merge conv weights (tap-major)
    b1_ref : (1, C2) f32,  b2_ref : (1, C2) f32
    o_ref  : (1, Ho, Wo, C2)       f32
    m_buf  : VMEM scratch (Ho+2, Wo+2, C2) f32 (zero-ringed m = t*x2)
    """
    # Load the plane block once; slice in f32 (layout-safe), cast slices to
    # bf16 right before the MXU.
    s = s_ref[0].astype(jnp.float32)                     # (Ho+1, Wo+1, 4*C1)

    # ---- trans: stride-2 3x3 conv as 4 shift-matmuls (lane-dense K) --------
    acc = jnp.zeros((Ho * Wo, C2), jnp.float32)
    for si in range(2):
        for sj in range(2):
            xt = s[si:si + Ho, sj:sj + Wo, :]
            xt = xt.reshape(Ho * Wo, -1).astype(jnp.bfloat16)
            acc = acc + jnp.dot(xt, wt_ref[2 * si + sj],
                                preferred_element_type=jnp.float32)
    t = jnp.maximum(acc + b1_ref[...], 0.0).reshape(Ho, Wo, C2)   # ReLU(conv+b1)

    # ---- m = t * x2, zero-padded by 1 into VMEM scratch --------------------
    m_buf[...] = jnp.zeros_like(m_buf)
    m_buf[1:Ho + 1, 1:Wo + 1, :] = t * x2_ref[0]

    # ---- merge: stride-1 3x3 conv as 9 shift-matmuls -----------------------
    acc2 = jnp.zeros((Ho * Wo, C2), jnp.float32)
    for di in range(3):
        for dj in range(3):
            mt = m_buf[di:di + Ho, dj:dj + Wo, :]
            mt = mt.reshape(Ho * Wo, C2).astype(jnp.bfloat16)
            acc2 = acc2 + jnp.dot(mt, w2_ref[3 * di + dj],
                                  preferred_element_type=jnp.float32)
    y = (acc2 + b2_ref[...]).reshape(Ho, Wo, C2)

    # ---- residual add + store ----------------------------------------------
    o_ref[0] = (t + y).astype(o_ref.dtype)


# ---------------------------------------------------------------------------
# Wrapper: layout glue (NCHW <-> NHWC, pad + space-to-depth) + pallas_call
# ---------------------------------------------------------------------------
def fam2_forward(params, x1_nchw, x2_nchw):
    x1 = jnp.transpose(x1_nchw, (0, 2, 3, 1)).astype(jnp.float32)   # NHWC
    x2 = jnp.transpose(x2_nchw, (0, 2, 3, 1)).astype(jnp.float32)
    B, H, W, C1 = x1.shape
    assert H % 2 == 0 and W % 2 == 0
    Ho, Wo = H // 2, W // 2
    C2 = x2.shape[-1]
    assert x2.shape == (B, Ho, Wo, C2)

    # Space-to-depth of the zero-padded x1: four phase planes on the channel
    # axis -> (B, Ho+1, Wo+1, 4*C1), stored bf16 (halves HBM bytes).
    xp = jnp.pad(x1, ((0, 0), (1, 1), (1, 1), (0, 0)))
    planes = [xp[:, pr::2, pc::2, :] for pr in (0, 1) for pc in (0, 1)]
    s = jnp.concatenate(planes, axis=-1).astype(jnp.bfloat16)

    # Shift-grouped trans weights: wt[2*si+sj, (2*pr+pc)*C1 + c, o] =
    #   w1[2*si+pr, 2*sj+pc, c, o]  (zero where the tap index exceeds 2).
    w1 = params["w1"]                                    # (3, 3, C1, C2)
    wt = jnp.zeros((2, 2, 4, C1, C2), jnp.float32)
    for si in (0, 1):
        for sj in (0, 1):
            for pr in (0, 1):
                for pc in (0, 1):
                    di, dj = 2 * si + pr, 2 * sj + pc
                    if di < 3 and dj < 3:
                        wt = wt.at[si, sj, 2 * pr + pc].set(w1[di, dj])
    wt = wt.reshape(4, 4 * C1, C2).astype(jnp.bfloat16)

    w2 = params["w2"].reshape(9, C2, C2).astype(jnp.bfloat16)
    b1 = params["b1"].reshape(1, C2).astype(jnp.float32)
    b2 = params["b2"].reshape(1, C2).astype(jnp.float32)

    out = pl.pallas_call(
        functools.partial(_fam2_kernel, Ho, Wo, C2),
        out_shape=jax.ShapeDtypeStruct((B, Ho, Wo, C2), jnp.float32),
        grid=(B,),
        in_specs=[
            pl.BlockSpec((1, Ho + 1, Wo + 1, 4 * C1), lambda b: (b, 0, 0, 0)),
            pl.BlockSpec((1, Ho, Wo, C2), lambda b: (b, 0, 0, 0)),
            pl.BlockSpec((4, 4 * C1, C2), lambda b: (0, 0, 0)),
            pl.BlockSpec((9, C2, C2), lambda b: (0, 0, 0)),
            pl.BlockSpec((1, C2), lambda b: (0, 0)),
            pl.BlockSpec((1, C2), lambda b: (0, 0)),
        ],
        out_specs=pl.BlockSpec((1, Ho, Wo, C2), lambda b: (b, 0, 0, 0)),
        scratch_shapes=[pltpu.VMEM((Ho + 2, Wo + 2, C2), jnp.float32)],
        compiler_params=pltpu.CompilerParams(
            dimension_semantics=("parallel",)),
    )(s, x2, wt, w2, b1, b2)

    return jnp.transpose(out, (0, 3, 1, 2))              # back to NCHW


# ---------------------------------------------------------------------------
# Pure-JAX f32 reference (for correctness check)
# ---------------------------------------------------------------------------
def fam2_reference(params, x1, x2):
    dn = ("NCHW", "HWIO", "NCHW")
    t = jax.lax.conv_general_dilated(x1, params["w1"], (2, 2),
                                     ((1, 1), (1, 1)), dimension_numbers=dn)
    t = jnp.maximum(t + params["b1"][None, :, None, None], 0.0)
    m = t * x2
    y = jax.lax.conv_general_dilated(m, params["w2"], (1, 1),
                                     ((1, 1), (1, 1)), dimension_numbers=dn)
    y = y + params["b2"][None, :, None, None]
    return t + y


# ---------------------------------------------------------------------------
if __name__ == "__main__":
    B, C1, C2, H, W = 2, 32, 64, 32, 32

    key = jax.random.PRNGKey(0)
    kw1, kb1, kw2, kb2, kx1, kx2 = jax.random.split(key, 6)
    params = {
        "w1": jax.random.normal(kw1, (3, 3, C1, C2), jnp.float32) / np.sqrt(9 * C1),
        "b1": 0.1 * jax.random.normal(kb1, (C2,), jnp.float32),
        "w2": jax.random.normal(kw2, (3, 3, C2, C2), jnp.float32) / np.sqrt(9 * C2),
        "b2": 0.1 * jax.random.normal(kb2, (C2,), jnp.float32),
    }
    x1 = jax.random.normal(kx1, (B, C1, H, W), jnp.float32)
    x2 = jax.random.normal(kx2, (B, C2, H // 2, W // 2), jnp.float32)

    out = jax.jit(fam2_forward)(params, x1, x2)
    out = jax.block_until_ready(out)

    assert out.shape == (B, C2, H // 2, W // 2)
    assert bool(jnp.all(jnp.isfinite(out)))

    ref = fam2_reference(params, x1, x2)
    np.testing.assert_allclose(np.asarray(out), np.asarray(ref),
                               rtol=1e-1, atol=1e-1)
    print("KERNEL_OK")
</pallas_src>

<mosaic_0001>
module attributes {stable_mosaic.version = 11 : i64} {
  func.func @_fam2_kernel(%arg0: i32, %arg1: memref<1x17x17x128xbf16, #tpu.memory_space<vmem>>, %arg2: memref<1x16x16x64xf32, #tpu.memory_space<vmem>>, %arg3: memref<4x128x64xbf16, #tpu.memory_space<vmem>>, %arg4: memref<9x64x64xbf16, #tpu.memory_space<vmem>>, %arg5: memref<1x64xf32, #tpu.memory_space<vmem>>, %arg6: memref<1x64xf32, #tpu.memory_space<vmem>>, %arg7: memref<1x16x16x64xf32, #tpu.memory_space<vmem>>, %arg8: memref<18x18x64xf32, #tpu.memory_space<vmem>>) attributes {dimension_semantics = [#tpu.dimension_semantics<parallel>], iteration_bounds = array<i64: 2>, scalar_prefetch = 0 : i64, scratch_operands = 1 : i64, tpu.core_type = #tpu.core_type<tc>, window_params = [{transform_indices = @transform_0, window_bounds = array<i64: 1, 17, 17, 128>}, {transform_indices = @transform_1, window_bounds = array<i64: 1, 16, 16, 64>}, {pipeline_mode = #tpu.pipeline_mode<synchronous>, transform_indices = @transform_2, window_bounds = array<i64: 4, 128, 64>}, {pipeline_mode = #tpu.pipeline_mode<synchronous>, transform_indices = @transform_3, window_bounds = array<i64: 9, 64, 64>}, {pipeline_mode = #tpu.pipeline_mode<synchronous>, transform_indices = @transform_4, window_bounds = array<i64: 1, 64>}, {pipeline_mode = #tpu.pipeline_mode<synchronous>, transform_indices = @transform_5, window_bounds = array<i64: 1, 64>}, {transform_indices = @transform_6, window_bounds = array<i64: 1, 16, 16, 64>}]} {
    %c0 = arith.constant 0 : index
    %c0_0 = arith.constant 0 : index
    %c0_1 = arith.constant 0 : index
    %c0_2 = arith.constant 0 : index
    %0 = vector.load %arg1[%c0, %c0_0, %c0_1, %c0_2] : memref<1x17x17x128xbf16, #tpu.memory_space<vmem>>, vector<1x17x17x128xbf16>
    %1 = vector.shape_cast %0 : vector<1x17x17x128xbf16> to vector<17x17x128xbf16>
    %2 = arith.extf %1 : vector<17x17x128xbf16> to vector<17x17x128xf32>
    %cst = arith.constant 0.000000e+00 : f32
    %3 = vector.broadcast %cst : f32 to vector<256x64xf32>
    %4 = vector.extract_strided_slice %2 {offsets = [0, 0, 0], sizes = [16, 16, 128], strides = [1, 1, 1]} : vector<17x17x128xf32> to vector<16x16x128xf32>
    %5 = vector.shape_cast %4 : vector<16x16x128xf32> to vector<256x128xf32>
    %6 = arith.truncf %5 : vector<256x128xf32> to vector<256x128xbf16>
    %c0_3 = arith.constant 0 : index
    %c0_4 = arith.constant 0 : index
    %c0_5 = arith.constant 0 : index
    %7 = vector.load %arg3[%c0_3, %c0_4, %c0_5] : memref<4x128x64xbf16, #tpu.memory_space<vmem>>, vector<1x128x64xbf16>
    %8 = vector.shape_cast %7 : vector<1x128x64xbf16> to vector<128x64xbf16>
    %cst_6 = arith.constant dense<0.000000e+00> : vector<256x64xf32>
    %9 = tpu.matmul %6, %8, %cst_6 {dimension_numbers = #tpu.dot_dimension_numbers<[1], [0], [0], [1], [0, 0, 1, 1], [], []>} : vector<256x128xbf16>, vector<128x64xbf16>, vector<256x64xf32> -> vector<256x64xf32>
    %10 = arith.addf %3, %9 : vector<256x64xf32>
    %11 = vector.extract_strided_slice %2 {offsets = [0, 1, 0], sizes = [16, 16, 128], strides = [1, 1, 1]} : vector<17x17x128xf32> to vector<16x16x128xf32>
    %12 = vector.shape_cast %11 : vector<16x16x128xf32> to vector<256x128xf32>
    %13 = arith.truncf %12 : vector<256x128xf32> to vector<256x128xbf16>
    %c1 = arith.constant 1 : index
    %c0_7 = arith.constant 0 : index
    %c0_8 = arith.constant 0 : index
    %14 = vector.load %arg3[%c1, %c0_7, %c0_8] : memref<4x128x64xbf16, #tpu.memory_space<vmem>>, vector<1x128x64xbf16>
    %15 = vector.shape_cast %14 : vector<1x128x64xbf16> to vector<128x64xbf16>
    %cst_9 = arith.constant dense<0.000000e+00> : vector<256x64xf32>
    %16 = tpu.matmul %13, %15, %cst_9 {dimension_numbers = #tpu.dot_dimension_numbers<[1], [0], [0], [1], [0, 0, 1, 1], [], []>} : vector<256x128xbf16>, vector<128x64xbf16>, vector<256x64xf32> -> vector<256x64xf32>
    %17 = arith.addf %10, %16 : vector<256x64xf32>
    %18 = vector.extract_strided_slice %2 {offsets = [1, 0, 0], sizes = [16, 16, 128], strides = [1, 1, 1]} : vector<17x17x128xf32> to vector<16x16x128xf32>
    %19 = vector.shape_cast %18 : vector<16x16x128xf32> to vector<256x128xf32>
    %20 = arith.truncf %19 : vector<256x128xf32> to vector<256x128xbf16>
    %c2 = arith.constant 2 : index
    %c0_10 = arith.constant 0 : index
    %c0_11 = arith.constant 0 : index
    %21 = vector.load %arg3[%c2, %c0_10, %c0_11] : memref<4x128x64xbf16, #tpu.memory_space<vmem>>, vector<1x128x64xbf16>
    %22 = vector.shape_cast %21 : vector<1x128x64xbf16> to vector<128x64xbf16>
    %cst_12 = arith.constant dense<0.000000e+00> : vector<256x64xf32>
    %23 = tpu.matmul %20, %22, %cst_12 {dimension_numbers = #tpu.dot_dimension_numbers<[1], [0], [0], [1], [0, 0, 1, 1], [], []>} : vector<256x128xbf16>, vector<128x64xbf16>, vector<256x64xf32> -> vector<256x64xf32>
    %24 = arith.addf %17, %23 : vector<256x64xf32>
    %25 = vector.extract_strided_slice %2 {offsets = [1, 1, 0], sizes = [16, 16, 128], strides = [1, 1, 1]} : vector<17x17x128xf32> to vector<16x16x128xf32>
    %26 = vector.shape_cast %25 : vector<16x16x128xf32> to vector<256x128xf32>
    %27 = arith.truncf %26 : vector<256x128xf32> to vector<256x128xbf16>
    %c3 = arith.constant 3 : index
    %c0_13 = arith.constant 0 : index
    %c0_14 = arith.constant 0 : index
    %28 = vector.load %arg3[%c3, %c0_13, %c0_14] : memref<4x128x64xbf16, #tpu.memory_space<vmem>>, vector<1x128x64xbf16>
    %29 = vector.shape_cast %28 : vector<1x128x64xbf16> to vector<128x64xbf16>
    %cst_15 = arith.constant dense<0.000000e+00> : vector<256x64xf32>
    %30 = tpu.matmul %27, %29, %cst_15 {dimension_numbers = #tpu.dot_dimension_numbers<[1], [0], [0], [1], [0, 0, 1, 1], [], []>} : vector<256x128xbf16>, vector<128x64xbf16>, vector<256x64xf32> -> vector<256x64xf32>
    %31 = arith.addf %24, %30 : vector<256x64xf32>
    %c0_16 = arith.constant 0 : index
    %c0_17 = arith.constant 0 : index
    %32 = vector.load %arg5[%c0_16, %c0_17] : memref<1x64xf32, #tpu.memory_space<vmem>>, vector<1x64xf32>
    %33 = vector.broadcast %32 : vector<1x64xf32> to vector<256x64xf32>
    %34 = arith.addf %31, %33 : vector<256x64xf32>
    %cst_18 = arith.constant 0.000000e+00 : f32
    %35 = vector.broadcast %cst_18 : f32 to vector<256x64xf32>
    %36 = arith.maximumf %34, %35 : vector<256x64xf32>
    %37 = vector.shape_cast %36 : vector<256x64xf32> to vector<16x16x64xf32>
    %cst_19 = arith.constant 0.000000e+00 : f32
    %38 = vector.broadcast %cst_19 : f32 to vector<18x18x64xf32>
    %c0_20 = arith.constant 0 : index
    %c0_21 = arith.constant 0 : index
    %c0_22 = arith.constant 0 : index
    %39 = vector.load %arg8[%c0_20, %c0_21, %c0_22] : memref<18x18x64xf32, #tpu.memory_space<vmem>>, vector<18x18x64xf32>
    tpu.vector_store %arg8[%c0_20, %c0_21, %c0_22], %38 {strides = array<i32>} : memref<18x18x64xf32, #tpu.memory_space<vmem>>, vector<18x18x64xf32>,
    %c0_23 = arith.constant 0 : index
    %c0_24 = arith.constant 0 : index
    %c0_25 = arith.constant 0 : index
    %c0_26 = arith.constant 0 : index
    %40 = vector.load %arg2[%c0_23, %c0_24, %c0_25, %c0_26] : memref<1x16x16x64xf32, #tpu.memory_space<vmem>>, vector<1x16x16x64xf32>
    %41 = vector.shape_cast %40 : vector<1x16x16x64xf32> to vector<16x16x64xf32>
    %42 = arith.mulf %37, %41 : vector<16x16x64xf32>
    %c1_27 = arith.constant 1 : index
    %c1_28 = arith.constant 1 : index
    %c0_29 = arith.constant 0 : index
    %43 = vector.load %arg8[%c1_27, %c1_28, %c0_29] : memref<18x18x64xf32, #tpu.memory_space<vmem>>, vector<16x16x64xf32>
    tpu.vector_store %arg8[%c1_27, %c1_28, %c0_29], %42 {strides = array<i32>} : memref<18x18x64xf32, #tpu.memory_space<vmem>>, vector<16x16x64xf32>,
    %cst_30 = arith.constant 0.000000e+00 : f32
    %44 = vector.broadcast %cst_30 : f32 to vector<256x64xf32>
    %c0_31 = arith.constant 0 : index
    %c0_32 = arith.constant 0 : index
    %c0_33 = arith.constant 0 : index
    %45 = vector.load %arg8[%c0_31, %c0_32, %c0_33] : memref<18x18x64xf32, #tpu.memory_space<vmem>>, vector<16x16x64xf32>
    %46 = vector.shape_cast %45 : vector<16x16x64xf32> to vector<256x64xf32>
    %47 = arith.truncf %46 : vector<256x64xf32> to vector<256x64xbf16>
    %c0_34 = arith.constant 0 : index
    %c0_35 = arith.constant 0 : index
    %c0_36 = arith.constant 0 : index
    %48 = vector.load %arg4[%c0_34, %c0_35, %c0_36] : memref<9x64x64xbf16, #tpu.memory_space<vmem>>, vector<1x64x64xbf16>
    %49 = vector.shape_cast %48 : vector<1x64x64xbf16> to vector<64x64xbf16>
    %cst_37 = arith.constant dense<0.000000e+00> : vector<256x64xf32>
    %50 = tpu.matmul %47, %49, %cst_37 {dimension_numbers = #tpu.dot_dimension_numbers<[1], [0], [0], [1], [0, 0, 1, 1], [], []>} : vector<256x64xbf16>, vector<64x64xbf16>, vector<256x64xf32> -> vector<256x64xf32>
    %51 = arith.addf %44, %50 : vector<256x64xf32>
    %c0_38 = arith.constant 0 : index
    %c1_39 = arith.constant 1 : index
    %c0_40 = arith.constant 0 : index
    %52 = vector.load %arg8[%c0_38, %c1_39, %c0_40] : memref<18x18x64xf32, #tpu.memory_space<vmem>>, vector<16x16x64xf32>
    %53 = vector.shape_cast %52 : vector<16x16x64xf32> to vector<256x64xf32>
    %54 = arith.truncf %53 : vector<256x64xf32> to vector<256x64xbf16>
    %c1_41 = arith.constant 1 : index
    %c0_42 = arith.constant 0 : index
    %c0_43 = arith.constant 0 : index
    %55 = vector.load %arg4[%c1_41, %c0_42, %c0_43] : memref<9x64x64xbf16, #tpu.memory_space<vmem>>, vector<1x64x64xbf16>
    %56 = vector.shape_cast %55 : vector<1x64x64xbf16> to vector<64x64xbf16>
    %cst_44 = arith.constant dense<0.000000e+00> : vector<256x64xf32>
    %57 = tpu.matmul %54, %56, %cst_44 {dimension_numbers = #tpu.dot_dimension_numbers<[1], [0], [0], [1], [0, 0, 1, 1], [], []>} : vector<256x64xbf16>, vector<64x64xbf16>, vector<256x64xf32> -> vector<256x64xf32>
    %58 = arith.addf %51, %57 : vector<256x64xf32>
    %c0_45 = arith.constant 0 : index
    %c2_46 = arith.constant 2 : index
    %c0_47 = arith.constant 0 : index
    %59 = vector.load %arg8[%c0_45, %c2_46, %c0_47] : memref<18x18x64xf32, #tpu.memory_space<vmem>>, vector<16x16x64xf32>
    %60 = vector.shape_cast %59 : vector<16x16x64xf32> to vector<256x64xf32>
    %61 = arith.truncf %60 : vector<256x64xf32> to vector<256x64xbf16>
    %c2_48 = arith.constant 2 : index
    %c0_49 = arith.constant 0 : index
    %c0_50 = arith.constant 0 : index
    %62 = vector.load %arg4[%c2_48, %c0_49, %c0_50] : memref<9x64x64xbf16, #tpu.memory_space<vmem>>, vector<1x64x64xbf16>
    %63 = vector.shape_cast %62 : vector<1x64x64xbf16> to vector<64x64xbf16>
    %cst_51 = arith.constant dense<0.000000e+00> : vector<256x64xf32>
    %64 = tpu.matmul %61, %63, %cst_51 {dimension_numbers = #tpu.dot_dimension_numbers<[1], [0], [0], [1], [0, 0, 1, 1], [], []>} : vector<256x64xbf16>, vector<64x64xbf16>, vector<256x64xf32> -> vector<256x64xf32>
    %65 = arith.addf %58, %64 : vector<256x64xf32>
    %c1_52 = arith.constant 1 : index
    %c0_53 = arith.constant 0 : index
    %c0_54 = arith.constant 0 : index
    %66 = vector.load %arg8[%c1_52, %c0_53, %c0_54] : memref<18x18x64xf32, #tpu.memory_space<vmem>>, vector<16x16x64xf32>
    %67 = vector.shape_cast %66 : vector<16x16x64xf32> to vector<256x64xf32>
    %68 = arith.truncf %67 : vector<256x64xf32> to vector<256x64xbf16>
    %c3_55 = arith.constant 3 : index
    %c0_56 = arith.constant 0 : index
    %c0_57 = arith.constant 0 : index
    %69 = vector.load %arg4[%c3_55, %c0_56, %c0_57] : memref<9x64x64xbf16, #tpu.memory_space<vmem>>, vector<1x64x64xbf16>
    %70 = vector.shape_cast %69 : vector<1x64x64xbf16> to vector<64x64xbf16>
    %cst_58 = arith.constant dense<0.000000e+00> : vector<256x64xf32>
    %71 = tpu.matmul %68, %70, %cst_58 {dimension_numbers = #tpu.dot_dimension_numbers<[1], [0], [0], [1], [0, 0, 1, 1], [], []>} : vector<256x64xbf16>, vector<64x64xbf16>, vector<256x64xf32> -> vector<256x64xf32>
    %72 = arith.addf %65, %71 : vector<256x64xf32>
    %c1_59 = arith.constant 1 : index
    %c1_60 = arith.constant 1 : index
    %c0_61 = arith.constant 0 : index
    %73 = vector.load %arg8[%c1_59, %c1_60, %c0_61] : memref<18x18x64xf32, #tpu.memory_space<vmem>>, vector<16x16x64xf32>
    %74 = vector.shape_cast %73 : vector<16x16x64xf32> to vector<256x64xf32>
    %75 = arith.truncf %74 : vector<256x64xf32> to vector<256x64xbf16>
    %c4 = arith.constant 4 : index
    %c0_62 = arith.constant 0 : index
    %c0_63 = arith.constant 0 : index
    %76 = vector.load %arg4[%c4, %c0_62, %c0_63] : memref<9x64x64xbf16, #tpu.memory_space<vmem>>, vector<1x64x64xbf16>
    %77 = vector.shape_cast %76 : vector<1x64x64xbf16> to vector<64x64xbf16>
    %cst_64 = arith.constant dense<0.000000e+00> : vector<256x64xf32>
    %78 = tpu.matmul %75, %77, %cst_64 {dimension_numbers = #tpu.dot_dimension_numbers<[1], [0], [0], [1], [0, 0, 1, 1], [], []>} : vector<256x64xbf16>, vector<64x64xbf16>, vector<256x64xf32> -> vector<256x64xf32>
    %79 = arith.addf %72, %78 : vector<256x64xf32>
    %c1_65 = arith.constant 1 : index
    %c2_66 = arith.constant 2 : index
    %c0_67 = arith.constant 0 : index
    %80 = vector.load %arg8[%c1_65, %c2_66, %c0_67] : memref<18x18x64xf32, #tpu.memory_space<vmem>>, vector<16x16x64xf32>
    %81 = vector.shape_cast %80 : vector<16x16x64xf32> to vector<256x64xf32>
    %82 = arith.truncf %81 : vector<256x64xf32> to vector<256x64xbf16>
    %c5 = arith.constant 5 : index
    %c0_68 = arith.constant 0 : index
    %c0_69 = arith.constant 0 : index
    %83 = vector.load %arg4[%c5, %c0_68, %c0_69] : memref<9x64x64xbf16, #tpu.memory_space<vmem>>, vector<1x64x64xbf16>
    %84 = vector.shape_cast %83 : vector<1x64x64xbf16> to vector<64x64xbf16>
    %cst_70 = arith.constant dense<0.000000e+00> : vector<256x64xf32>
    %85 = tpu.matmul %82, %84, %cst_70 {dimension_numbers = #tpu.dot_dimension_numbers<[1], [0], [0], [1], [0, 0, 1, 1], [], []>} : vector<256x64xbf16>, vector<64x64xbf16>, vector<256x64xf32> -> vector<256x64xf32>
    %86 = arith.addf %79, %85 : vector<256x64xf32>
    %c2_71 = arith.constant 2 : index
    %c0_72 = arith.constant 0 : index
    %c0_73 = arith.constant 0 : index
    %87 = vector.load %arg8[%c2_71, %c0_72, %c0_73] : memref<18x18x64xf32, #tpu.memory_space<vmem>>, vector<16x16x64xf32>
    %88 = vector.shape_cast %87 : vector<16x16x64xf32> to vector<256x64xf32>
    %89 = arith.truncf %88 : vector<256x64xf32> to vector<256x64xbf16>
    %c6 = arith.constant 6 : index
    %c0_74 = arith.constant 0 : index
    %c0_75 = arith.constant 0 : index
    %90 = vector.load %arg4[%c6, %c0_74, %c0_75] : memref<9x64x64xbf16, #tpu.memory_space<vmem>>, vector<1x64x64xbf16>
    %91 = vector.shape_cast %90 : vector<1x64x64xbf16> to vector<64x64xbf16>
    %cst_76 = arith.constant dense<0.000000e+00> : vector<256x64xf32>
    %92 = tpu.matmul %89, %91, %cst_76 {dimension_numbers = #tpu.dot_dimension_numbers<[1], [0], [0], [1], [0, 0, 1, 1], [], []>} : vector<256x64xbf16>, vector<64x64xbf16>, vector<256x64xf32> -> vector<256x64xf32>
    %93 = arith.addf %86, %92 : vector<256x64xf32>
    %c2_77 = arith.constant 2 : index
    %c1_78 = arith.constant 1 : index
    %c0_79 = arith.constant 0 : index
    %94 = vector.load %arg8[%c2_77, %c1_78, %c0_79] : memref<18x18x64xf32, #tpu.memory_space<vmem>>, vector<16x16x64xf32>
    %95 = vector.shape_cast %94 : vector<16x16x64xf32> to vector<256x64xf32>
    %96 = arith.truncf %95 : vector<256x64xf32> to vector<256x64xbf16>
    %c7 = arith.constant 7 : index
    %c0_80 = arith.constant 0 : index
    %c0_81 = arith.constant 0 : index
    %97 = vector.load %arg4[%c7, %c0_80, %c0_81] : memref<9x64x64xbf16, #tpu.memory_space<vmem>>, vector<1x64x64xbf16>
    %98 = vector.shape_cast %97 : vector<1x64x64xbf16> to vector<64x64xbf16>
    %cst_82 = arith.constant dense<0.000000e+00> : vector<256x64xf32>
    %99 = tpu.matmul %96, %98, %cst_82 {dimension_numbers = #tpu.dot_dimension_numbers<[1], [0], [0], [1], [0, 0, 1, 1], [], []>} : vector<256x64xbf16>, vector<64x64xbf16>, vector<256x64xf32> -> vector<256x64xf32>
    %100 = arith.addf %93, %99 : vector<256x64xf32>
    %c2_83 = arith.constant 2 : index
    %c2_84 = arith.constant 2 : index
    %c0_85 = arith.constant 0 : index
    %101 = vector.load %arg8[%c2_83, %c2_84, %c0_85] : memref<18x18x64xf32, #tpu.memory_space<vmem>>, vector<16x16x64xf32>
    %102 = vector.shape_cast %101 : vector<16x16x64xf32> to vector<256x64xf32>
    %103 = arith.truncf %102 : vector<256x64xf32> to vector<256x64xbf16>
    %c8 = arith.constant 8 : index
    %c0_86 = arith.constant 0 : index
    %c0_87 = arith.constant 0 : index
    %104 = vector.load %arg4[%c8, %c0_86, %c0_87] : memref<9x64x64xbf16, #tpu.memory_space<vmem>>, vector<1x64x64xbf16>
    %105 = vector.shape_cast %104 : vector<1x64x64xbf16> to vector<64x64xbf16>
    %cst_88 = arith.constant dense<0.000000e+00> : vector<256x64xf32>
    %106 = tpu.matmul %103, %105, %cst_88 {dimension_numbers = #tpu.dot_dimension_numbers<[1], [0], [0], [1], [0, 0, 1, 1], [], []>} : vector<256x64xbf16>, vector<64x64xbf16>, vector<256x64xf32> -> vector<256x64xf32>
    %107 = arith.addf %100, %106 : vector<256x64xf32>
    %c0_89 = arith.constant 0 : index
    %c0_90 = arith.constant 0 : index
    %108 = vector.load %arg6[%c0_89, %c0_90] : memref<1x64xf32, #tpu.memory_space<vmem>>, vector<1x64xf32>
    %109 = vector.broadcast %108 : vector<1x64xf32> to vector<256x64xf32>
    %110 = arith.addf %107, %109 : vector<256x64xf32>
    %111 = vector.shape_cast %110 : vector<256x64xf32> to vector<16x16x64xf32>
    %112 = arith.addf %37, %111 : vector<16x16x64xf32>
    %c0_91 = arith.constant 0 : index
    %c0_92 = arith.constant 0 : index
    %c0_93 = arith.constant 0 : index
    %c0_94 = arith.constant 0 : index
    %113 = vector.load %arg7[%c0_91, %c0_92, %c0_93, %c0_94] : memref<1x16x16x64xf32, #tpu.memory_space<vmem>>, vector<1x16x16x64xf32>
    %114 = vector.shape_cast %113 : vector<1x16x16x64xf32> to vector<16x16x64xf32>
    %115 = vector.shape_cast %112 : vector<16x16x64xf32> to vector<1x16x16x64xf32>
    tpu.vector_store %arg7[%c0_91, %c0_92, %c0_93, %c0_94], %115 {strides = array<i32>} : memref<1x16x16x64xf32, #tpu.memory_space<vmem>>, vector<1x16x16x64xf32>,
    return
  }
  func.func @transform_0(%arg0: i32) -> (i32, i32, i32, i32) {
    %c0_i32 = arith.constant 0 : i32
    %c0_i32_0 = arith.constant 0 : i32
    %c0_i32_1 = arith.constant 0 : i32
    %c0_i32_2 = arith.constant 0 : i32
    return %arg0, %c0_i32, %c0_i32_0, %c0_i32_1 : i32, i32, i32, i32
  }
  func.func @transform_1(%arg0: i32) -> (i32, i32, i32, i32) {
    %c0_i32 = arith.constant 0 : i32
    %c0_i32_0 = arith.constant 0 : i32
    %c0_i32_1 = arith.constant 0 : i32
    %c0_i32_2 = arith.constant 0 : i32
    return %arg0, %c0_i32, %c0_i32_0, %c0_i32_1 : i32, i32, i32, i32
  }
  func.func @transform_2(%arg0: i32) -> (i32, i32, i32) {
    %c0_i32 = arith.constant 0 : i32
    %c0_i32_0 = arith.constant 0 : i32
    %c0_i32_1 = arith.constant 0 : i32
    %c0_i32_2 = arith.constant 0 : i32
    return %c0_i32, %c0_i32_0, %c0_i32_1 : i32, i32, i32
  }
  func.func @transform_3(%arg0: i32) -> (i32, i32, i32) {
    %c0_i32 = arith.constant 0 : i32
    %c0_i32_0 = arith.constant 0 : i32
    %c0_i32_1 = arith.constant 0 : i32
    %c0_i32_2 = arith.constant 0 : i32
    return %c0_i32, %c0_i32_0, %c0_i32_1 : i32, i32, i32
  }
  func.func @transform_4(%arg0: i32) -> (i32, i32) {
    %c0_i32 = arith.constant 0 : i32
    %c0_i32_0 = arith.constant 0 : i32
    %c0_i32_1 = arith.constant 0 : i32
    return %c0_i32, %c0_i32_0 : i32, i32
  }
  func.func @transform_5(%arg0: i32) -> (i32, i32) {
    %c0_i32 = arith.constant 0 : i32
    %c0_i32_0 = arith.constant 0 : i32
    %c0_i32_1 = arith.constant 0 : i32
    return %c0_i32, %c0_i32_0 : i32, i32
  }
  func.func @transform_6(%arg0: i32) -> (i32, i32, i32, i32) {
    %c0_i32 = arith.constant 0 : i32
    %c0_i32_0 = arith.constant 0 : i32
    %c0_i32_1 = arith.constant 0 : i32
    %c0_i32_2 = arith.constant 0 : i32
    return %arg0, %c0_i32, %c0_i32_0, %c0_i32_1 : i32, i32, i32, i32
  }
}

</mosaic_0001>

<llo_original>
// kernel: fam2_forward.1
$region0: #{fam2_forward.1}
  #allocation0 [shape = 'u32[]', space=smem, size = 0x4, offset = 0x4, fixed_abs, tag = 'smem constant byte address 0x4 - core index']
  #allocation1 [shape = 'u32[144,128]{1,0:T(1,128)}', space=vmem, size = 0x12000, scoped, tag = 'internal scratch']
  #allocation2 [shape = 'f32[18,18,64]{2,1,0:T(8,128)}', space=vmem, size = 0x36000, scoped, tag = 'scratch operand']
  %s0 = inlined_call_operand.vmem [shape: bf16[2,17,17,128], index: 0, kind: input, shape index: {}]
  %s1 = inlined_call_operand.vmem [shape: f32[2,16,16,64], index: 1, kind: input, shape index: {}]
  %s2 = inlined_call_operand.vmem [shape: bf16[4,128,64], index: 2, kind: input, shape index: {}]
  %s3 = inlined_call_operand.vmem [shape: bf16[9,64,64], index: 3, kind: input, shape index: {}]
  %s4 = inlined_call_operand.vmem [shape: f32[1,64], index: 4, kind: input, shape index: {}]
  %s5 = inlined_call_operand.vmem [shape: f32[1,64], index: 5, kind: input, shape index: {}]
  %s6 = inlined_call_operand.hbm [shape: f32[2,16,16,64], index: 6, kind: output, shape index: {}]
  %s7 = sld [smem:[#allocation0]]
  $region57: #{fam2_forward.1} parent=0
    _
  %s9 = ssub.s32 1, %s7
  %s10 = scalar_select 0, %s9, %s7
  $region1: #{fam2_forward.1} parent=0
    #allocation3 [shape = 'u8[262144]{0}', space=vmem, size = 0x40000, scoped, tag = 'output window, operand 0']
    #allocation4 [shape = 's32[2]{0}', space=sflag, size = 0x8, scoped, tag = 'scoped memory for fam2_forward.1']
    %11 = vsyncpa [#allocation4], 0
    %s12 = scalar_lea.sflag [#allocation4], 1
    %13 = vsyncpa %s12, 0
    loop: start=0, step=1, limit=4
    $region2: #{fam2_forward.1} parent=1 // loop_pre_header
      _
    $region3: #{fam2_forward.1} parent=1 // loop_header
      %s15 = sphi 0, %s19
      %p16 = scmp.ge.s32.totalorder %s15, 4
      %s25 = sphi 0, %s27
      %s28 = sphi 0, %s25
      %s29 = sphi 0, %s28
      %s45 = sphi 0, %s29
      %s51 = sphi 0, %s53
      %s54 = sphi 0, %s51
      %s55 = sphi 0, %s54
      %s71 = sphi 0, %s55
      %s75 = sphi 0, %s75
      %s77 = sphi 0, %s75
      %s78 = sphi 0, %s77
      %s92 = sphi 0, %s78
      %s96 = sphi 0, %s96
      %s98 = sphi 0, %s96
      %s99 = sphi 0, %s98
      %s113 = sphi 0, %s99
      %s117 = sphi 0, %s117
      %s119 = sphi 0, %s117
      %s120 = sphi 0, %s119
      %s134 = sphi 0, %s120
      %s138 = sphi 0, %s138
      %s140 = sphi 0, %s138
      %s141 = sphi 0, %s140
      %s155 = sphi 0, %s141
      %s161 = sphi 0, %s163
      %s164 = sphi 0, %s161
      %s165 = sphi 0, %s164
      %s181 = sphi 0, %s165
    $region4: #{fam2_forward.1} parent=1 // loop_header_branch
      %18 = sbr.rel (%p16) target = $region8
    $region5: #{fam2_forward.1} parent=1 // loop_body
      %s20 = ssub.s32 %s15, 1
      %s21 = ssub.s32 %s15, 2
      %s22 = sadd.s32 %s15, 1
      %s23 = ssub.s32 %s15, %s22
      %p24 = scmp.eq.s32.totalorder %s23, 0
      %s26 = sadd.s32 %s25, 1
      %s27 = scalar_select %p24, %s25, %s26
      %p30 = pneg %p24
      %p31 = scmp.eq.s32.totalorder %s15, 1
      %p32 = por %p30, %p31
      %p33 = scmp.ne.s32.totalorder %s25, %s28
      %p34 = scmp.eq.s32.totalorder %s15, 0
      %p35 = por %p33, %p34
      %p36 = scmp.ne.s32.totalorder %s25, %s28
      %p37 = scmp.eq.s32.totalorder %s20, 1
      %p38 = por %p36, %p37
      %p39 = scmp.ne.s32.totalorder %s28, %s29
      %p40 = scmp.eq.s32.totalorder %s20, 0
      %p41 = por %p39, %p40
      %p42 = scmp.ne.s32.totalorder %s28, %s29
      %p43 = scmp.eq.s32.totalorder %s21, 1
      %p44 = por %p42, %p43
      %p46 = scmp.ne.s32.totalorder %s29, %s45
      %p47 = scmp.eq.s32.totalorder %s21, 0
      %p48 = por %p46, %p47
      %s49 = ssub.s32 %s15, %s22
      %p50 = scmp.eq.s32.totalorder %s49, 0
      %s52 = sadd.s32 %s51, 1
      %s53 = scalar_select %p50, %s51, %s52
      %p56 = pneg %p50
      %p57 = scmp.eq.s32.totalorder %s15, 1
      %p58 = por %p56, %p57
      %p59 = scmp.ne.s32.totalorder %s51, %s54
      %p60 = scmp.eq.s32.totalorder %s15, 0
      %p61 = por %p59, %p60
      %p62 = scmp.ne.s32.totalorder %s51, %s54
      %p63 = scmp.eq.s32.totalorder %s20, 1
      %p64 = por %p62, %p63
      %p65 = scmp.ne.s32.totalorder %s54, %s55
      %p66 = scmp.eq.s32.totalorder %s20, 0
      %p67 = por %p65, %p66
      %p68 = scmp.ne.s32.totalorder %s54, %s55
      %p69 = scmp.eq.s32.totalorder %s21, 1
      %p70 = por %p68, %p69
      %p72 = scmp.ne.s32.totalorder %s55, %s71
      %p73 = scmp.eq.s32.totalorder %s21, 0
      %p74 = por %p72, %p73
      %s76 = sadd.s32 %s75, 1
      %p79 = scmp.eq.s32.totalorder %s15, 1
      %p80 = scmp.ne.s32.totalorder %s75, %s77
      %p81 = scmp.eq.s32.totalorder %s15, 0
      %p82 = por %p80, %p81
      %p83 = scmp.ne.s32.totalorder %s75, %s77
      %p84 = scmp.eq.s32.totalorder %s20, 1
      %p85 = por %p83, %p84
      %p86 = scmp.ne.s32.totalorder %s77, %s78
      %p87 = scmp.eq.s32.totalorder %s20, 0
      %p88 = por %p86, %p87
      %p89 = scmp.ne.s32.totalorder %s77, %s78
      %p90 = scmp.eq.s32.totalorder %s21, 1
      %p91 = por %p89, %p90
      %p93 = scmp.ne.s32.totalorder %s78, %s92
      %p94 = scmp.eq.s32.totalorder %s21, 0
      %p95 = por %p93, %p94
      %s97 = sadd.s32 %s96, 1
      %p100 = scmp.eq.s32.totalorder %s15, 1
      %p101 = scmp.ne.s32.totalorder %s96, %s98
      %p102 = scmp.eq.s32.totalorder %s15, 0
      %p103 = por %p101, %p102
      %p104 = scmp.ne.s32.totalorder %s96, %s98
      %p105 = scmp.eq.s32.totalorder %s20, 1
      %p106 = por %p104, %p105
      %p107 = scmp.ne.s32.totalorder %s98, %s99
      %p108 = scmp.eq.s32.totalorder %s20, 0
      %p109 = por %p107, %p108
      %p110 = scmp.ne.s32.totalorder %s98, %s99
      %p111 = scmp.eq.s32.totalorder %s21, 1
      %p112 = por %p110, %p111
      %p114 = scmp.ne.s32.totalorder %s99, %s113
      %p115 = scmp.eq.s32.totalorder %s21, 0
      %p116 = por %p114, %p115
      %s118 = sadd.s32 %s117, 1
      %p121 = scmp.eq.s32.totalorder %s15, 1
      %p122 = scmp.ne.s32.totalorder %s117, %s119
      %p123 = scmp.eq.s32.totalorder %s15, 0
      %p124 = por %p122, %p123
      %p125 = scmp.ne.s32.totalorder %s117, %s119
      %p126 = scmp.eq.s32.totalorder %s20, 1
      %p127 = por %p125, %p126
      %p128 = scmp.ne.s32.totalorder %s119, %s120
      %p129 = scmp.eq.s32.totalorder %s20, 0
      %p130 = por %p128, %p129
      %p131 = scmp.ne.s32.totalorder %s119, %s120
      %p132 = scmp.eq.s32.totalorder %s21, 1
      %p133 = por %p131, %p132
      %p135 = scmp.ne.s32.totalorder %s120, %s134
      %p136 = scmp.eq.s32.totalorder %s21, 0
      %p137 = por %p135, %p136
      %s139 = sadd.s32 %s138, 1
      %p142 = scmp.eq.s32.totalorder %s15, 1
      %p143 = scmp.ne.s32.totalorder %s138, %s140
      %p144 = scmp.eq.s32.totalorder %s15, 0
      %p145 = por %p143, %p144
      %p146 = scmp.ne.s32.totalorder %s138, %s140
      %p147 = scmp.eq.s32.totalorder %s20, 1
      %p148 = por %p146, %p147
      %p149 = scmp.ne.s32.totalorder %s140, %s141
      %p150 = scmp.eq.s32.totalorder %s20, 0
      %p151 = por %p149, %p150
      %p152 = scmp.ne.s32.totalorder %s140, %s141
      %p153 = scmp.eq.s32.totalorder %s21, 1
      %p154 = por %p152, %p153
      %p156 = scmp.ne.s32.totalorder %s141, %s155
      %p157 = scmp.eq.s32.totalorder %s21, 0
      %p158 = por %p156, %p157
      %s159 = ssub.s32 %s15, %s22
      %p160 = scmp.eq.s32.totalorder %s159, 0
      %s162 = sadd.s32 %s161, 1
      %s163 = scalar_select %p160, %s161, %s162
      %p166 = pneg %p160
      %p167 = scmp.eq.s32.totalorder %s15, 1
      %p168 = por %p166, %p167
      %p169 = scmp.ne.s32.totalorder %s161, %s164
      %p170 = scmp.eq.s32.totalorder %s15, 0
      %p171 = por %p169, %p170
      %p172 = scmp.ne.s32.totalorder %s161, %s164
      %p173 = scmp.eq.s32.totalorder %s20, 1
      %p174 = por %p172, %p173
      %p175 = scmp.ne.s32.totalorder %s164, %s165
      %p176 = scmp.eq.s32.totalorder %s20, 0
      %p177 = por %p175, %p176
      %p178 = scmp.ne.s32.totalorder %s164, %s165
      %p179 = scmp.eq.s32.totalorder %s21, 1
      %p180 = por %p178, %p179
      %p182 = scmp.ne.s32.totalorder %s165, %s181
      %p183 = scmp.eq.s32.totalorder %s21, 0
      %p184 = por %p182, %p183
      %p185 = scmp.le.s32.totalorder 1, %s15
      %p186 = scmp.lt.s32.totalorder %s15, 3
      %p187 = pnand %p185, %p186
      %p188 = pneg %p187
      // Predicated region
      $region9: #{fam2_forward.1} parent=5 // pred_check
        _
      $region10: #{fam2_forward.1} parent=5 // pred_check_branch
        %190 = sbr.rel (%p187) target = $region12
      $region11: #{fam2_forward.1} parent=5 // pred_region
        %s191 = ssub.s32 %s15, 1
        // Predicated region
        $region13: #{fam2_forward.1} parent=11 // pred_check
          %p192 = pneg %p88
        $region14: #{fam2_forward.1} parent=11 // pred_check_branch
          %194 = sbr.rel (%p192) target = $region16
        $region15: #{fam2_forward.1} parent=11 // pred_region
          _
        $region16: #{fam2_forward.1} parent=11 // pred_fallthru
          _
        // Predicated region
        $region17: #{fam2_forward.1} parent=11 // pred_check
          %p195 = pneg %p109
        $region18: #{fam2_forward.1} parent=11 // pred_check_branch
          %197 = sbr.rel (%p195) target = $region20
        $region19: #{fam2_forward.1} parent=11 // pred_region
          _
        $region20: #{fam2_forward.1} parent=11 // pred_fallthru
          _
        // Predicated region
        $region21: #{fam2_forward.1} parent=11 // pred_check
          %p198 = pneg %p130
        $region22: #{fam2_forward.1} parent=11 // pred_check_branch
          %200 = sbr.rel (%p198) target = $region24
        $region23: #{fam2_forward.1} parent=11 // pred_region
          _
        $region24: #{fam2_forward.1} parent=11 // pred_fallthru
          _
        // Predicated region
        $region25: #{fam2_forward.1} parent=11 // pred_check
          %p201 = pneg %p151
        $region26: #{fam2_forward.1} parent=11 // pred_check_branch
          %203 = sbr.rel (%p201) target = $region28
        $region27: #{fam2_forward.1} parent=11 // pred_region
          _
        $region28: #{fam2_forward.1} parent=11 // pred_fallthru
          _
      $region12: #{fam2_forward.1} parent=5 // pred_fallthru
        _
      %p204 = scmp.lt.s32.totalorder %s15, 2
      // Predicated region
      $region29: #{fam2_forward.1} parent=5 // pred_check
        %p205 = pneg %p204
      $region30: #{fam2_forward.1} parent=5 // pred_check_branch
        %207 = sbr.rel (%p205) target = $region32
      $region31: #{fam2_forward.1} parent=5 // pred_region
        // Predicated region
        $region33: #{fam2_forward.1} parent=31 // pred_check
          %p208 = pneg %p35
        $region34: #{fam2_forward.1} parent=31 // pred_check_branch
          %210 = sbr.rel (%p208) target = $region36
        $region35: #{fam2_forward.1} parent=31 // pred_region
          %p211 = scmp.lt.s32.totalorder %s15, 1
          %s212 = scalar_select %p211, %s15, 1
          %s213 = smul.addr %s212, 51
          %s214 = smul.addr %s213, 4
          %s215 = scalar_lea.vmem %s0, %s214
        $region36: #{fam2_forward.1} parent=31 // pred_fallthru
          _
        // Predicated region
        $region37: #{fam2_forward.1} parent=31 // pred_check
          %p216 = pneg %p61
        $region38: #{fam2_forward.1} parent=31 // pred_check_branch
          %218 = sbr.rel (%p216) target = $region40
        $region39: #{fam2_forward.1} parent=31 // pred_region
          %p219 = scmp.lt.s32.totalorder %s15, 1
          %s220 = scalar_select %p219, %s15, 1
          %s221 = smul.addr %s220, 32
          %s222 = smul.addr %s221, 8
          %s223 = scalar_lea.vmem %s1, %s222
        $region40: #{fam2_forward.1} parent=31 // pred_fallthru
          _
      $region32: #{fam2_forward.1} parent=5 // pred_fallthru
        _
      %p224 = scmp.le.s32.totalorder 1, %s15
      %p225 = scmp.lt.s32.totalorder %s15, 3
      %p226 = pnand %p224, %p225
      %p227 = pneg %p226
      // Predicated region
      $region41: #{fam2_forward.1} parent=5 // pred_check
        _
      $region42: #{fam2_forward.1} parent=5 // pred_check_branch
        %229 = sbr.rel (%p226) target = $region44
      $region43: #{fam2_forward.1} parent=5 // pred_region
        %s230 = ssub.s32 %s15, 1
        %p231 = scmp.lt.s32.totalorder %s20, 1
        %s232 = scalar_select %p231, %s20, 1
        %s233 = smul.addr %s232, 51
        %s234 = smul.addr %s233, 4
        %s235 = scalar_lea.vmem %s0, %s234
        %p236 = pneg %p41
        %p237 = pneg %p38
        %p238 = scmp.lt.s32.totalorder %s20, 1
        %s239 = scalar_select %p238, %s20, 1
        %s240 = smul.addr %s239, 32
        %s241 = smul.addr %s240, 8
        %s242 = scalar_lea.vmem %s1, %s241
        %p243 = pneg %p67
        %p244 = pneg %p64
        %p245 = pneg %p88
        %p246 = pneg %p85
        %p247 = pneg %p109
        %p248 = pneg %p106
        %p249 = pneg %p130
        %p250 = pneg %p127
        %p251 = pneg %p151
        %p252 = pneg %p148
        %p253 = pneg %p177
        %p254 = pneg %p174
        %s255 = sand.u32 %s164, 1
        %s256 = scalar_lea.sflag [#allocation4], %s255
        %s257 = sand.u32 %s164, 1
        %s258 = smul.addr %s257, 256
        %s259 = scalar_lea.vmem [#allocation3], %s258
        %p260 = scmp.lt.s32.totalorder %s20, 1
        %s261 = scalar_select %p260, %s20, 1
        %s262 = smul.addr %s261, 51
        %s263 = smul.addr %s262, 4
        %s264 = scalar_lea.vmem %s0, %s263
        %p265 = scmp.lt.s32.totalorder %s20, 1
        %s266 = scalar_select %p265, %s20, 1
        %s267 = smul.addr %s266, 32
        %s268 = smul.addr %s267, 8
        %s269 = scalar_lea.vmem %s1, %s268
        %v271 = vld [vmem:[%s264] sm:$0xf]
        %v272 = vld [vmem:[%s264 + $0x4] sm:$0xf]
        %v273 = vld [vmem:[%s264 + $0x8] sm:$0x1]
        %v274 = vld [vmem:[%s264 + $0xc] sm:$0xf]
        %v275 = vld [vmem:[%s264 + $0x10] sm:$0xf]
        %v276 = vld [vmem:[%s264 + $0x14] sm:$0x1]
        %v277 = vld [vmem:[%s264 + $0x18] sm:$0xf]
        %v278 = vld [vmem:[%s264 + $0x1c] sm:$0xf]
        %v279 = vld [vmem:[%s264 + $0x20] sm:$0x1]
        %v280 = vld [vmem:[%s264 + $0x24] sm:$0xf]
        %v281 = vld [vmem:[%s264 + $0x28] sm:$0xf]
        %v282 = vld [vmem:[%s264 + $0x2c] sm:$0x1]
        %v283 = vld [vmem:[%s264 + $0x30] sm:$0xf]
        %v284 = vld [vmem:[%s264 + $0x34] sm:$0xf]
        %v285 = vld [vmem:[%s264 + $0x38] sm:$0x1]
        %v286 = vld [vmem:[%s264 + $0x3c] sm:$0xf]
        %v287 = vld [vmem:[%s264 + $0x40] sm:$0xf]
        %v288 = vld [vmem:[%s264 + $0x44] sm:$0x1]
        %v289 = vld [vmem:[%s264 + $0x48] sm:$0xf]
        %v290 = vld [vmem:[%s264 + $0x4c] sm:$0xf]
        %v291 = vld [vmem:[%s264 + $0x50] sm:$0x1]
        %v292 = vld [vmem:[%s264 + $0x54] sm:$0xf]
        %v293 = vld [vmem:[%s264 + $0x58] sm:$0xf]
        %v294 = vld [vmem:[%s264 + $0x5c] sm:$0x1]
        %v295 = vld [vmem:[%s264 + $0x60] sm:$0xf]
        %v296 = vld [vmem:[%s264 + $0x64] sm:$0xf]
        %v297 = vld [vmem:[%s264 + $0x68] sm:$0x1]
        %v298 = vld [vmem:[%s264 + $0x6c] sm:$0xf]
        %v299 = vld [vmem:[%s264 + $0x70] sm:$0xf]
        %v300 = vld [vmem:[%s264 + $0x74] sm:$0x1]
        %v301 = vld [vmem:[%s264 + $0x78] sm:$0xf]
        %v302 = vld [vmem:[%s264 + $0x7c] sm:$0xf]
        %v303 = vld [vmem:[%s264 + $0x80] sm:$0x1]
        %v304 = vld [vmem:[%s264 + $0x84] sm:$0xf]
        %v305 = vld [vmem:[%s264 + $0x88] sm:$0xf]
        %v306 = vld [vmem:[%s264 + $0x8c] sm:$0x1]
        %v307 = vld [vmem:[%s264 + $0x90] sm:$0xf]
        %v308 = vld [vmem:[%s264 + $0x94] sm:$0xf]
        %v309 = vld [vmem:[%s264 + $0x98] sm:$0x1]
        %v310 = vld [vmem:[%s264 + $0x9c] sm:$0xf]
        %v311 = vld [vmem:[%s264 + $0xa0] sm:$0xf]
        %v312 = vld [vmem:[%s264 + $0xa4] sm:$0x1]
        %v313 = vld [vmem:[%s264 + $0xa8] sm:$0xf]
        %v314 = vld [vmem:[%s264 + $0xac] sm:$0xf]
        %v315 = vld [vmem:[%s264 + $0xb0] sm:$0x1]
        %v316 = vld [vmem:[%s264 + $0xb4] sm:$0xf]
        %v317 = vld [vmem:[%s264 + $0xb8] sm:$0xf]
        %v318 = vld [vmem:[%s264 + $0xbc] sm:$0x1]
        %v319 = vld [vmem:[%s264 + $0xc0] sm:$0xf]
        %v320 = vld [vmem:[%s264 + $0xc4] sm:$0xf]
        %v321 = vld [vmem:[%s264 + $0xc8] sm:$0x1]
        %v322 = vunpack.c.l.bf16 %v271
        %v323 = vunpack.c.l.bf16 %v272
        %v324 = vunpack.c.l.bf16 %v273
        %v325 = vunpack.c.l.bf16 %v274
        %v326 = vunpack.c.l.bf16 %v275
        %v327 = vunpack.c.l.bf16 %v276
        %v328 = vunpack.c.l.bf16 %v277
        %v329 = vunpack.c.l.bf16 %v278
        %v330 = vunpack.c.l.bf16 %v279
        %v331 = vunpack.c.l.bf16 %v280
        %v332 = vunpack.c.l.bf16 %v281
        %v333 = vunpack.c.l.bf16 %v282
        %v334 = vunpack.c.l.bf16 %v283
        %v335 = vunpack.c.l.bf16 %v284
        %v336 = vunpack.c.l.bf16 %v285
        %v337 = vunpack.c.l.bf16 %v286
        %v338 = vunpack.c.l.bf16 %v287
        %v339 = vunpack.c.l.bf16 %v288
        %v340 = vunpack.c.l.bf16 %v289
        %v341 = vunpack.c.l.bf16 %v290
        %v342 = vunpack.c.l.bf16 %v291
        %v343 = vunpack.c.l.bf16 %v292
        %v344 = vunpack.c.l.bf16 %v293
        %v345 = vunpack.c.l.bf16 %v294
        %v346 = vunpack.c.l.bf16 %v295
        %v347 = vunpack.c.l.bf16 %v296
        %v348 = vunpack.c.l.bf16 %v297
        %v349 = vunpack.c.l.bf16 %v298
        %v350 = vunpack.c.l.bf16 %v299
        %v351 = vunpack.c.l.bf16 %v300
        %v352 = vunpack.c.l.bf16 %v301
        %v353 = vunpack.c.l.bf16 %v302
        %v354 = vunpack.c.l.bf16 %v303
        %v355 = vunpack.c.l.bf16 %v304
        %v356 = vunpack.c.l.bf16 %v305
        %v357 = vunpack.c.l.bf16 %v306
        %v358 = vunpack.c.l.bf16 %v307
        %v359 = vunpack.c.l.bf16 %v308
        %v360 = vunpack.c.l.bf16 %v309
        %v361 = vunpack.c.l.bf16 %v310
        %v362 = vunpack.c.l.bf16 %v311
        %v363 = vunpack.c.l.bf16 %v312
        %v364 = vunpack.c.l.bf16 %v313
        %v365 = vunpack.c.l.bf16 %v314
        %v366 = vunpack.c.l.bf16 %v315
        %v367 = vunpack.c.l.bf16 %v316
        %v368 = vunpack.c.l.bf16 %v317
        %v369 = vunpack.c.l.bf16 %v318
        %v370 = vunpack.c.l.bf16 %v319
        %v371 = vunpack.c.l.bf16 %v320
        %v372 = vunpack.c.l.bf16 %v321
        %v373 = vpack.c.bf16 %v323, %v322
        %v374 = vpack.c.bf16 %v326, %v325
        %v375 = vpack.c.bf16 %v329, %v328
        %v376 = vpack.c.bf16 %v332, %v331
        %v377 = vpack.c.bf16 %v335, %v334
        %v378 = vpack.c.bf16 %v338, %v337
        %v379 = vpack.c.bf16 %v341, %v340
        %v380 = vpack.c.bf16 %v344, %v343
        %v381 = vpack.c.bf16 %v347, %v346
        %v382 = vpack.c.bf16 %v350, %v349
        %v383 = vpack.c.bf16 %v353, %v352
        %v384 = vpack.c.bf16 %v356, %v355
        %v385 = vpack.c.bf16 %v359, %v358
        %v386 = vpack.c.bf16 %v362, %v361
        %v387 = vpack.c.bf16 %v365, %v364
        %v388 = vpack.c.bf16 %v368, %v367
        %v389 = vld [vmem:[%s2] sm:$0xf]
        %v390 = vld [vmem:[%s2 + $0x4] sm:$0xf]
        %v391 = vld [vmem:[%s2 + $0x8] sm:$0xf]
        %v392 = vld [vmem:[%s2 + $0xc] sm:$0xf]
        %v393 = vld [vmem:[%s2 + $0x10] sm:$0xf]
        %v394 = vld [vmem:[%s2 + $0x14] sm:$0xf]
        %v395 = vld [vmem:[%s2 + $0x18] sm:$0xf]
        %v396 = vld [vmem:[%s2 + $0x1c] sm:$0xf]
        %v397 = vld [vmem:[%s2 + $0x20] sm:$0xf]
        %v398 = vld [vmem:[%s2 + $0x24] sm:$0xf]
        %v399 = vld [vmem:[%s2 + $0x28] sm:$0xf]
        %v400 = vld [vmem:[%s2 + $0x2c] sm:$0xf]
        %v401 = vld [vmem:[%s2 + $0x30] sm:$0xf]
        %v402 = vld [vmem:[%s2 + $0x34] sm:$0xf]
        %v403 = vld [vmem:[%s2 + $0x38] sm:$0xf]
        %v404 = vld [vmem:[%s2 + $0x3c] sm:$0xf]
        %vm453 = vcmask 1046528
        %v454 = vrot.slane %v322, 1
        %v455 = vrot.slane %v323, 1
        %v456 = vsel %vm453, %v454, %v455
        %v457 = vrot.slane %v324, 1
        %v458 = vsel %vm453, %v455, %v457
        %v459 = vrot.slane %v325, 1
        %v460 = vrot.slane %v326, 1
        %v461 = vsel %vm453, %v459, %v460
        %v462 = vrot.slane %v327, 1
        %v463 = vsel %vm453, %v460, %v462
        %v464 = vrot.slane %v328, 1
        %v465 = vrot.slane %v329, 1
        %v466 = vsel %vm453, %v464, %v465
        %v467 = vrot.slane %v330, 1
        %v468 = vsel %vm453, %v465, %v467
        %v469 = vrot.slane %v331, 1
        %v470 = vrot.slane %v332, 1
        %v471 = vsel %vm453, %v469, %v470
        %v472 = vrot.slane %v333, 1
        %v473 = vsel %vm453, %v470, %v472
        %v474 = vrot.slane %v334, 1
        %v475 = vrot.slane %v335, 1
        %v476 = vsel %vm453, %v474, %v475
        %v477 = vrot.slane %v336, 1
        %v478 = vsel %vm453, %v475, %v477
        %v479 = vrot.slane %v337, 1
        %v480 = vrot.slane %v338, 1
        %v481 = vsel %vm453, %v479, %v480
        %v482 = vrot.slane %v339, 1
        %v483 = vsel %vm453, %v480, %v482
        %v484 = vrot.slane %v340, 1
        %v485 = vrot.slane %v341, 1
        %v486 = vsel %vm453, %v484, %v485
        %v487 = vrot.slane %v342, 1
        %v488 = vsel %vm453, %v485, %v487
        %v489 = vrot.slane %v343, 1
        %v490 = vrot.slane %v344, 1
        %v491 = vsel %vm453, %v489, %v490
        %v492 = vrot.slane %v345, 1
        %v493 = vsel %vm453, %v490, %v492
        %v494 = vrot.slane %v346, 1
        %v495 = vrot.slane %v347, 1
        %v496 = vsel %vm453, %v494, %v495
        %v497 = vrot.slane %v348, 1
        %v498 = vsel %vm453, %v495, %v497
        %v499 = vrot.slane %v349, 1
        %v500 = vrot.slane %v350, 1
        %v501 = vsel %vm453, %v499, %v500
        %v502 = vrot.slane %v351, 1
        %v503 = vsel %vm453, %v500, %v502
        %v504 = vrot.slane %v352, 1
        %v505 = vrot.slane %v353, 1
        %v506 = vsel %vm453, %v504, %v505
        %v507 = vrot.slane %v354, 1
        %v508 = vsel %vm453, %v505, %v507
        %v509 = vrot.slane %v355, 1
        %v510 = vrot.slane %v356, 1
        %v511 = vsel %vm453, %v509, %v510
        %v512 = vrot.slane %v357, 1
        %v513 = vsel %vm453, %v510, %v512
        %v514 = vrot.slane %v358, 1
        %v515 = vrot.slane %v359, 1
        %v516 = vsel %vm453, %v514, %v515
        %v517 = vrot.slane %v360, 1
        %v518 = vsel %vm453, %v515, %v517
        %v519 = vrot.slane %v361, 1
        %v520 = vrot.slane %v362, 1
        %v521 = vsel %vm453, %v519, %v520
        %v522 = vrot.slane %v363, 1
        %v523 = vsel %vm453, %v520, %v522
        %v524 = vrot.slane %v364, 1
        %v525 = vrot.slane %v365, 1
        %v526 = vsel %vm453, %v524, %v525
        %v527 = vrot.slane %v366, 1
        %v528 = vsel %vm453, %v525, %v527
        %v529 = vrot.slane %v367, 1
        %v530 = vrot.slane %v368, 1
        %v531 = vsel %vm453, %v529, %v530
        %v532 = vrot.slane %v369, 1
        %v533 = vsel %vm453, %v530, %v532
        %v566 = vpack.c.bf16 %v458, %v456
        %v567 = vpack.c.bf16 %v463, %v461
        %v568 = vpack.c.bf16 %v468, %v466
        %v569 = vpack.c.bf16 %v473, %v471
        %v570 = vpack.c.bf16 %v478, %v476
        %v571 = vpack.c.bf16 %v483, %v481
        %v572 = vpack.c.bf16 %v488, %v486
        %v573 = vpack.c.bf16 %v493, %v491
        %v574 = vpack.c.bf16 %v498, %v496
        %v575 = vpack.c.bf16 %v503, %v501
        %v576 = vpack.c.bf16 %v508, %v506
        %v577 = vpack.c.bf16 %v513, %v511
        %v578 = vpack.c.bf16 %v518, %v516
        %v579 = vpack.c.bf16 %v523, %v521
        %v580 = vpack.c.bf16 %v528, %v526
        %v581 = vpack.c.bf16 %v533, %v531
        %s582 = scalar_lea.vmem %s2, 64
        %v583 = vld [vmem:[%s582] sm:$0xf]
        %v584 = vld [vmem:[%s582 + $0x4] sm:$0xf]
        %v585 = vld [vmem:[%s582 + $0x8] sm:$0xf]
        %v586 = vld [vmem:[%s582 + $0xc] sm:$0xf]
        %v587 = vld [vmem:[%s582 + $0x10] sm:$0xf]
        %v588 = vld [vmem:[%s582 + $0x14] sm:$0xf]
        %v589 = vld [vmem:[%s582 + $0x18] sm:$0xf]
        %v590 = vld [vmem:[%s582 + $0x1c] sm:$0xf]
        %v591 = vld [vmem:[%s582 + $0x20] sm:$0xf]
        %v592 = vld [vmem:[%s582 + $0x24] sm:$0xf]
        %v593 = vld [vmem:[%s582 + $0x28] sm:$0xf]
        %v594 = vld [vmem:[%s582 + $0x2c] sm:$0xf]
        %v595 = vld [vmem:[%s582 + $0x30] sm:$0xf]
        %v596 = vld [vmem:[%s582 + $0x34] sm:$0xf]
        %v597 = vld [vmem:[%s582 + $0x38] sm:$0xf]
        %v598 = vld [vmem:[%s582 + $0x3c] sm:$0xf]
        %v615 = vunpack.c.l.b16 %v583
        %v616 = vunpack.c.l.b16 %v584
        %v617 = vunpack.c.l.b16 %v585
        %v618 = vunpack.c.l.b16 %v586
        %v619 = vunpack.c.l.b16 %v587
        %v620 = vunpack.c.l.b16 %v588
        %v621 = vunpack.c.l.b16 %v589
        %v622 = vunpack.c.l.b16 %v590
        %v623 = vunpack.c.l.b16 %v591
        %v624 = vunpack.c.l.b16 %v592
        %v625 = vunpack.c.l.b16 %v593
        %v626 = vunpack.c.l.b16 %v594
        %v627 = vunpack.c.l.b16 %v595
        %v628 = vunpack.c.l.b16 %v596
        %v629 = vunpack.c.l.b16 %v597
        %v630 = vunpack.c.l.b16 %v598
        %v631 = vpack.c.b16 %v616, %v615
        %v632 = vpack.c.b16 %v618, %v617
        %v633 = vpack.c.b16 %v620, %v619
        %v634 = vpack.c.b16 %v622, %v621
        %v635 = vpack.c.b16 %v624, %v623
        %v636 = vpack.c.b16 %v626, %v625
        %v637 = vpack.c.b16 %v628, %v627
        %v638 = vpack.c.b16 %v630, %v629
        %647 = vmatprep.subr.bf16.mxu0 0
        %648 = vmatpush1.bf16.msra.mxu0 %v631
        %649 = vmatprep.subr.bf16.mxu0 0
        %650 = vmatpush1.bf16.msra.mxu0 %v632
        %651 = vmatprep.subr.bf16.mxu0 0
        %652 = vmatpush1.bf16.msra.mxu0 %v633
        %653 = vmatprep.subr.bf16.mxu0 0
        %654 = vmatpush1.bf16.msra.mxu0 %v634
        %655 = vmatprep.subr.bf16.mxu0 0
        %656 = vmatpush1.bf16.msra.mxu0 %v635
        %657 = vmatprep.subr.bf16.mxu0 0
        %658 = vmatpush1.bf16.msra.mxu0 %v636
        %659 = vmatprep.subr.bf16.mxu0 0
        %660 = vmatpush1.bf16.msra.mxu0 %v637
        %661 = vmatprep.subr.bf16.mxu0 0
        %662 = vmatpush1.bf16.msra.mxu0 %v638
        %663 = vmatprep.subr.bf16.mxu0 0
        %664 = vmatpush1.bf16.msra.mxu0 0
        %665 = vmatprep.subr.bf16.mxu0 0
        %666 = vmatpush1.bf16.msra.mxu0 0
        %667 = vmatprep.subr.bf16.mxu0 0
        %668 = vmatpush1.bf16.msra.mxu0 0
        %669 = vmatprep.subr.bf16.mxu0 0
        %670 = vmatpush1.bf16.msra.mxu0 0
        %671 = vmatprep.subr.bf16.mxu0 0
        %672 = vmatpush1.bf16.msra.mxu0 0
        %673 = vmatprep.subr.bf16.mxu0 0
        %674 = vmatpush1.bf16.msra.mxu0 0
        %675 = vmatprep.subr.bf16.mxu0 0
        %676 = vmatpush1.bf16.msra.mxu0 0
        %677 = vmatprep.subr.bf16.mxu0 0
        %678 = vmatpush1.bf16.msra.mxu0 0
        %679 = vmatprep.mubr.bf16.mxu0 0
        %680 = vmatmul.mubr.bf16.gmra.mrb[0].mxu0 %v566
        %v681 = vpop.f32.mrb[0].mxu0
        %v682 = vadd.f32 0.0, %v681
        %v683 = vpop.f32.mrb[0].mxu0
        %v684 = vpop.f32.mrb[0].mxu0
        %v685 = vadd.f32 0.0, %v684
        %v686 = vpop.f32.mrb[0].mxu0
        %687 = vmatprep.mubr.bf16.mxu0 0
        %688 = vmatmul.mubr.bf16.gmra.mrb[0].mxu0 %v567
        %v689 = vpop.f32.mrb[0].mxu0
        %v690 = vadd.f32 0.0, %v689
        %v691 = vpop.f32.mrb[0].mxu0
        %v692 = vpop.f32.mrb[0].mxu0
        %v693 = vadd.f32 0.0, %v692
        %v694 = vpop.f32.mrb[0].mxu0
        %695 = vmatprep.mubr.bf16.mxu0 0
        %696 = vmatmul.mubr.bf16.gmra.mrb[0].mxu0 %v568
        %v697 = vpop.f32.mrb[0].mxu0
        %v698 = vadd.f32 0.0, %v697
        %v699 = vpop.f32.mrb[0].mxu0
        %v700 = vpop.f32.mrb[0].mxu0
        %v701 = vadd.f32 0.0, %v700
        %v702 = vpop.f32.mrb[0].mxu0
        %703 = vmatprep.mubr.bf16.mxu0 0
        %704 = vmatmul.mubr.bf16.gmra.mrb[0].mxu0 %v569
        %v705 = vpop.f32.mrb[0].mxu0
        %v706 = vadd.f32 0.0, %v705
        %v707 = vpop.f32.mrb[0].mxu0
        %v708 = vpop.f32.mrb[0].mxu0
        %v709 = vadd.f32 0.0, %v708
        %v710 = vpop.f32.mrb[0].mxu0
        %711 = vmatprep.mubr.bf16.mxu0 0
        %712 = vmatmul.mubr.bf16.gmra.mrb[0].mxu0 %v570
        %v713 = vpop.f32.mrb[0].mxu0
        %v714 = vadd.f32 0.0, %v713
        %v715 = vpop.f32.mrb[0].mxu0
        %v716 = vpop.f32.mrb[0].mxu0
        %v717 = vadd.f32 0.0, %v716
        %v718 = vpop.f32.mrb[0].mxu0
        %719 = vmatprep.mubr.bf16.mxu0 0
        %720 = vmatmul.mubr.bf16.gmra.mrb[0].mxu0 %v571
        %v721 = vpop.f32.mrb[0].mxu0
        %v722 = vadd.f32 0.0, %v721
        %v723 = vpop.f32.mrb[0].mxu0
        %v724 = vpop.f32.mrb[0].mxu0
        %v725 = vadd.f32 0.0, %v724
        %v726 = vpop.f32.mrb[0].mxu0
        %727 = vmatprep.mubr.bf16.mxu0 0
        %728 = vmatmul.mubr.bf16.gmra.mrb[0].mxu0 %v572
        %v729 = vpop.f32.mrb[0].mxu0
        %v730 = vadd.f32 0.0, %v729
        %v731 = vpop.f32.mrb[0].mxu0
        %v732 = vpop.f32.mrb[0].mxu0
        %v733 = vadd.f32 0.0, %v732
        %v734 = vpop.f32.mrb[0].mxu0
        %735 = vmatprep.mubr.bf16.mxu0 0
        %736 = vmatmul.mubr.bf16.gmra.mrb[0].mxu0 %v573
        %v737 = vpop.f32.mrb[0].mxu0
        %v738 = vadd.f32 0.0, %v737
        %v739 = vpop.f32.mrb[0].mxu0
        %v740 = vpop.f32.mrb[0].mxu0
        %v741 = vadd.f32 0.0, %v740
        %v742 = vpop.f32.mrb[0].mxu0
        %743 = vmatprep.mubr.bf16.mxu0 0
        %744 = vmatmul.mubr.bf16.gmra.mrb[0].mxu0 %v574
        %v745 = vpop.f32.mrb[0].mxu0
        %v746 = vadd.f32 0.0, %v745
        %v747 = vpop.f32.mrb[0].mxu0
        %v748 = vpop.f32.mrb[0].mxu0
        %v749 = vadd.f32 0.0, %v748
        %v750 = vpop.f32.mrb[0].mxu0
        %751 = vmatprep.mubr.bf16.mxu0 0
        %752 = vmatmul.mubr.bf16.gmra.mrb[0].mxu0 %v575
        %v753 = vpop.f32.mrb[0].mxu0
        %v754 = vadd.f32 0.0, %v753
        %v755 = vpop.f32.mrb[0].mxu0
        %v756 = vpop.f32.mrb[0].mxu0
        %v757 = vadd.f32 0.0, %v756
        %v758 = vpop.f32.mrb[0].mxu0
        %759 = vmatprep.mubr.bf16.mxu0 0
        %760 = vmatmul.mubr.bf16.gmra.mrb[0].mxu0 %v576
        %v761 = vpop.f32.mrb[0].mxu0
        %v762 = vadd.f32 0.0, %v761
        %v763 = vpop.f32.mrb[0].mxu0
        %v764 = vpop.f32.mrb[0].mxu0
        %v765 = vadd.f32 0.0, %v764
        %v766 = vpop.f32.mrb[0].mxu0
        %767 = vmatprep.mubr.bf16.mxu0 0
        %768 = vmatmul.mubr.bf16.gmra.mrb[0].mxu0 %v577
        %v769 = vpop.f32.mrb[0].mxu0
        %v770 = vadd.f32 0.0, %v769
        %v771 = vpop.f32.mrb[0].mxu0
        %v772 = vpop.f32.mrb[0].mxu0
        %v773 = vadd.f32 0.0, %v772
        %v774 = vpop.f32.mrb[0].mxu0
        %775 = vmatprep.mubr.bf16.mxu0 0
        %776 = vmatmul.mubr.bf16.gmra.mrb[0].mxu0 %v578
        %v777 = vpop.f32.mrb[0].mxu0
        %v778 = vadd.f32 0.0, %v777
        %v779 = vpop.f32.mrb[0].mxu0
        %v780 = vpop.f32.mrb[0].mxu0
        %v781 = vadd.f32 0.0, %v780
        %v782 = vpop.f32.mrb[0].mxu0
        %783 = vmatprep.mubr.bf16.mxu0 0
        %784 = vmatmul.mubr.bf16.gmra.mrb[0].mxu0 %v579
        %v785 = vpop.f32.mrb[0].mxu0
        %v786 = vadd.f32 0.0, %v785
        %v787 = vpop.f32.mrb[0].mxu0
        %v788 = vpop.f32.mrb[0].mxu0
        %v789 = vadd.f32 0.0, %v788
        %v790 = vpop.f32.mrb[0].mxu0
        %791 = vmatprep.mubr.bf16.mxu0 0
        %792 = vmatmul.mubr.bf16.gmra.mrb[0].mxu0 %v580
        %v793 = vpop.f32.mrb[0].mxu0
        %v794 = vadd.f32 0.0, %v793
        %v795 = vpop.f32.mrb[0].mxu0
        %v796 = vpop.f32.mrb[0].mxu0
        %v797 = vadd.f32 0.0, %v796
        %v798 = vpop.f32.mrb[0].mxu0
        %799 = vmatprep.mubr.bf16.mxu0 0
        %800 = vmatmul.mubr.bf16.gmra.mrb[0].mxu0 %v581
        %v801 = vpop.f32.mrb[0].mxu0
        %v802 = vadd.f32 0.0, %v801
        %v803 = vpop.f32.mrb[0].mxu0
        %v804 = vpop.f32.mrb[0].mxu0
        %v805 = vadd.f32 0.0, %v804
        %v806 = vpop.f32.mrb[0].mxu0
        %807 = vdwg.mxu0
        %v824 = vunpack.c.l.b16 %v389
        %v825 = vunpack.c.l.b16 %v390
        %v826 = vunpack.c.l.b16 %v391
        %v827 = vunpack.c.l.b16 %v392
        %v828 = vunpack.c.l.b16 %v393
        %v829 = vunpack.c.l.b16 %v394
        %v830 = vunpack.c.l.b16 %v395
        %v831 = vunpack.c.l.b16 %v396
        %v832 = vunpack.c.l.b16 %v397
        %v833 = vunpack.c.l.b16 %v398
        %v834 = vunpack.c.l.b16 %v399
        %v835 = vunpack.c.l.b16 %v400
        %v836 = vunpack.c.l.b16 %v401
        %v837 = vunpack.c.l.b16 %v402
        %v838 = vunpack.c.l.b16 %v403
        %v839 = vunpack.c.l.b16 %v404
        %v840 = vpack.c.b16 %v825, %v824
        %v841 = vpack.c.b16 %v827, %v826
        %v842 = vpack.c.b16 %v829, %v828
        %v843 = vpack.c.b16 %v831, %v830
        %v844 = vpack.c.b16 %v833, %v832
        %v845 = vpack.c.b16 %v835, %v834
        %v846 = vpack.c.b16 %v837, %v836
        %v847 = vpack.c.b16 %v839, %v838
        %856 = vmatprep.subr.bf16.mxu0 0
        %857 = vmatpush1.bf16.msra.mxu0 %v840
        %858 = vmatprep.subr.bf16.mxu0 0
        %859 = vmatpush1.bf16.msra.mxu0 %v841
        %860 = vmatprep.subr.bf16.mxu0 0
        %861 = vmatpush1.bf16.msra.mxu0 %v842
        %862 = vmatprep.subr.bf16.mxu0 0
        %863 = vmatpush1.bf16.msra.mxu0 %v843
        %864 = vmatprep.subr.bf16.mxu0 0
        %865 = vmatpush1.bf16.msra.mxu0 %v844
        %866 = vmatprep.subr.bf16.mxu0 0
        %867 = vmatpush1.bf16.msra.mxu0 %v845
        %868 = vmatprep.subr.bf16.mxu0 0
        %869 = vmatpush1.bf16.msra.mxu0 %v846
        %870 = vmatprep.subr.bf16.mxu0 0
        %871 = vmatpush1.bf16.msra.mxu0 %v847
        %872 = vmatprep.subr.bf16.mxu0 0
        %873 = vmatpush1.bf16.msra.mxu0 0
        %874 = vmatprep.subr.bf16.mxu0 0
        %875 = vmatpush1.bf16.msra.mxu0 0
        %876 = vmatprep.subr.bf16.mxu0 0
        %877 = vmatpush1.bf16.msra.mxu0 0
        %878 = vmatprep.subr.bf16.mxu0 0
        %879 = vmatpush1.bf16.msra.mxu0 0
        %880 = vmatprep.subr.bf16.mxu0 0
        %881 = vmatpush1.bf16.msra.mxu0 0
        %882 = vmatprep.subr.bf16.mxu0 0
        %883 = vmatpush1.bf16.msra.mxu0 0
        %884 = vmatprep.subr.bf16.mxu0 0
        %885 = vmatpush1.bf16.msra.mxu0 0
        %886 = vmatprep.subr.bf16.mxu0 0
        %887 = vmatpush1.bf16.msra.mxu0 0
        %888 = vmatprep.mubr.bf16.mxu0 0
        %889 = vmatmul.mubr.bf16.gmra.mrb[0].mxu0 %v373
        %v890 = vpop.f32.mrb[0].mxu0
        %v891 = vadd.f32 %v682, %v890
        %v892 = vpop.f32.mrb[0].mxu0
        %v893 = vpop.f32.mrb[0].mxu0
        %v894 = vadd.f32 %v685, %v893
        %v895 = vpop.f32.mrb[0].mxu0
        %896 = vmatprep.mubr.bf16.mxu0 0
        %897 = vmatmul.mubr.bf16.gmra.mrb[0].mxu0 %v374
        %v898 = vpop.f32.mrb[0].mxu0
        %v899 = vadd.f32 %v690, %v898
        %v900 = vpop.f32.mrb[0].mxu0
        %v901 = vpop.f32.mrb[0].mxu0
        %v902 = vadd.f32 %v693, %v901
        %v903 = vpop.f32.mrb[0].mxu0
        %904 = vmatprep.mubr.bf16.mxu0 0
        %905 = vmatmul.mubr.bf16.gmra.mrb[0].mxu0 %v375
        %v906 = vpop.f32.mrb[0].mxu0
        %v907 = vadd.f32 %v698, %v906
        %v908 = vpop.f32.mrb[0].mxu0
        %v909 = vpop.f32.mrb[0].mxu0
        %v910 = vadd.f32 %v701, %v909
        %v911 = vpop.f32.mrb[0].mxu0
        %912 = vmatprep.mubr.bf16.mxu0 0
        %913 = vmatmul.mubr.bf16.gmra.mrb[0].mxu0 %v376
        %v914 = vpop.f32.mrb[0].mxu0
        %v915 = vadd.f32 %v706, %v914
        %v916 = vpop.f32.mrb[0].mxu0
        %v917 = vpop.f32.mrb[0].mxu0
        %v918 = vadd.f32 %v709, %v917
        %v919 = vpop.f32.mrb[0].mxu0
        %920 = vmatprep.mubr.bf16.mxu0 0
        %921 = vmatmul.mubr.bf16.gmra.mrb[0].mxu0 %v377
        %v922 = vpop.f32.mrb[0].mxu0
        %v923 = vadd.f32 %v714, %v922
        %v924 = vpop.f32.mrb[0].mxu0
        %v925 = vpop.f32.mrb[0].mxu0
        %v926 = vadd.f32 %v717, %v925
        %v927 = vpop.f32.mrb[0].mxu0
        %928 = vmatprep.mubr.bf16.mxu0 0
        %929 = vmatmul.mubr.bf16.gmra.mrb[0].mxu0 %v378
        %v930 = vpop.f32.mrb[0].mxu0
        %v931 = vadd.f32 %v722, %v930
        %v932 = vpop.f32.mrb[0].mxu0
        %v933 = vpop.f32.mrb[0].mxu0
        %v934 = vadd.f32 %v725, %v933
        %v935 = vpop.f32.mrb[0].mxu0
        %936 = vmatprep.mubr.bf16.mxu0 0
        %937 = vmatmul.mubr.bf16.gmra.mrb[0].mxu0 %v379
        %v938 = vpop.f32.mrb[0].mxu0
        %v939 = vadd.f32 %v730, %v938
        %v940 = vpop.f32.mrb[0].mxu0
        %v941 = vpop.f32.mrb[0].mxu0
        %v942 = vadd.f32 %v733, %v941
        %v943 = vpop.f32.mrb[0].mxu0
        %944 = vmatprep.mubr.bf16.mxu0 0
        %945 = vmatmul.mubr.bf16.gmra.mrb[0].mxu0 %v380
        %v946 = vpop.f32.mrb[0].mxu0
        %v947 = vadd.f32 %v738, %v946
        %v948 = vpop.f32.mrb[0].mxu0
        %v949 = vpop.f32.mrb[0].mxu0
        %v950 = vadd.f32 %v741, %v949
        %v951 = vpop.f32.mrb[0].mxu0
        %952 = vmatprep.mubr.bf16.mxu0 0
        %953 = vmatmul.mubr.bf16.gmra.mrb[0].mxu0 %v381
        %v954 = vpop.f32.mrb[0].mxu0
        %v955 = vadd.f32 %v746, %v954
        %v956 = vpop.f32.mrb[0].mxu0
        %v957 = vpop.f32.mrb[0].mxu0
        %v958 = vadd.f32 %v749, %v957
        %v959 = vpop.f32.mrb[0].mxu0
        %960 = vmatprep.mubr.bf16.mxu0 0
        %961 = vmatmul.mubr.bf16.gmra.mrb[0].mxu0 %v382
        %v962 = vpop.f32.mrb[0].mxu0
        %v963 = vadd.f32 %v754, %v962
        %v964 = vpop.f32.mrb[0].mxu0
        %v965 = vpop.f32.mrb[0].mxu0
        %v966 = vadd.f32 %v757, %v965
        %v967 = vpop.f32.mrb[0].mxu0
        %968 = vmatprep.mubr.bf16.mxu0 0
        %969 = vmatmul.mubr.bf16.gmra.mrb[0].mxu0 %v383
        %v970 = vpop.f32.mrb[0].mxu0
        %v971 = vadd.f32 %v762, %v970
        %v972 = vpop.f32.mrb[0].mxu0
        %v973 = vpop.f32.mrb[0].mxu0
        %v974 = vadd.f32 %v765, %v973
        %v975 = vpop.f32.mrb[0].mxu0
        %976 = vmatprep.mubr.bf16.mxu0 0
        %977 = vmatmul.mubr.bf16.gmra.mrb[0].mxu0 %v384
        %v978 = vpop.f32.mrb[0].mxu0
        %v979 = vadd.f32 %v770, %v978
        %v980 = vpop.f32.mrb[0].mxu0
        %v981 = vpop.f32.mrb[0].mxu0
        %v982 = vadd.f32 %v773, %v981
        %v983 = vpop.f32.mrb[0].mxu0
        %984 = vmatprep.mubr.bf16.mxu0 0
        %985 = vmatmul.mubr.bf16.gmra.mrb[0].mxu0 %v385
        %v986 = vpop.f32.mrb[0].mxu0
        %v987 = vadd.f32 %v778, %v986
        %v988 = vpop.f32.mrb[0].mxu0
        %v989 = vpop.f32.mrb[0].mxu0
        %v990 = vadd.f32 %v781, %v989
        %v991 = vpop.f32.mrb[0].mxu0
        %992 = vmatprep.mubr.bf16.mxu0 0
        %993 = vmatmul.mubr.bf16.gmra.mrb[0].mxu0 %v386
        %v994 = vpop.f32.mrb[0].mxu0
        %v995 = vadd.f32 %v786, %v994
        %v996 = vpop.f32.mrb[0].mxu0
        %v997 = vpop.f32.mrb[0].mxu0
        %v998 = vadd.f32 %v789, %v997
        %v999 = vpop.f32.mrb[0].mxu0
        %1000 = vmatprep.mubr.bf16.mxu0 0
        %1001 = vmatmul.mubr.bf16.gmra.mrb[0].mxu0 %v387
        %v1002 = vpop.f32.mrb[0].mxu0
        %v1003 = vadd.f32 %v794, %v1002
        %v1004 = vpop.f32.mrb[0].mxu0
        %v1005 = vpop.f32.mrb[0].mxu0
        %v1006 = vadd.f32 %v797, %v1005
        %v1007 = vpop.f32.mrb[0].mxu0
        %1008 = vmatprep.mubr.bf16.mxu0 0
        %1009 = vmatmul.mubr.bf16.gmra.mrb[0].mxu0 %v388
        %v1010 = vpop.f32.mrb[0].mxu0
        %v1011 = vadd.f32 %v802, %v1010
        %v1012 = vpop.f32.mrb[0].mxu0
        %v1013 = vpop.f32.mrb[0].mxu0
        %v1014 = vadd.f32 %v805, %v1013
        %v1015 = vpop.f32.mrb[0].mxu0
        %1016 = vdwg.mxu0
        %v1017 = vpack.c.bf16 %v371, %v370
        %s1018 = scalar_lea.vmem %s2, 128
        %v1019 = vld [vmem:[%s1018] sm:$0xf]
        %v1020 = vld [vmem:[%s1018 + $0x4] sm:$0xf]
        %v1021 = vld [vmem:[%s1018 + $0x8] sm:$0xf]
        %v1022 = vld [vmem:[%s1018 + $0xc] sm:$0xf]
        %v1023 = vld [vmem:[%s1018 + $0x10] sm:$0xf]
        %v1024 = vld [vmem:[%s1018 + $0x14] sm:$0xf]
        %v1025 = vld [vmem:[%s1018 + $0x18] sm:$0xf]
        %v1026 = vld [vmem:[%s1018 + $0x1c] sm:$0xf]
        %v1027 = vld [vmem:[%s1018 + $0x20] sm:$0xf]
        %v1028 = vld [vmem:[%s1018 + $0x24] sm:$0xf]
        %v1029 = vld [vmem:[%s1018 + $0x28] sm:$0xf]
        %v1030 = vld [vmem:[%s1018 + $0x2c] sm:$0xf]
        %v1031 = vld [vmem:[%s1018 + $0x30] sm:$0xf]
        %v1032 = vld [vmem:[%s1018 + $0x34] sm:$0xf]
        %v1033 = vld [vmem:[%s1018 + $0x38] sm:$0xf]
        %v1034 = vld [vmem:[%s1018 + $0x3c] sm:$0xf]
        %v1051 = vunpack.c.l.b16 %v1019
        %v1052 = vunpack.c.l.b16 %v1020
        %v1053 = vunpack.c.l.b16 %v1021
        %v1054 = vunpack.c.l.b16 %v1022
        %v1055 = vunpack.c.l.b16 %v1023
        %v1056 = vunpack.c.l.b16 %v1024
        %v1057 = vunpack.c.l.b16 %v1025
        %v1058 = vunpack.c.l.b16 %v1026
        %v1059 = vunpack.c.l.b16 %v1027
        %v1060 = vunpack.c.l.b16 %v1028
        %v1061 = vunpack.c.l.b16 %v1029
        %v1062 = vunpack.c.l.b16 %v1030
        %v1063 = vunpack.c.l.b16 %v1031
        %v1064 = vunpack.c.l.b16 %v1032
        %v1065 = vunpack.c.l.b16 %v1033
        %v1066 = vunpack.c.l.b16 %v1034
        %v1067 = vpack.c.b16 %v1052, %v1051
        %v1068 = vpack.c.b16 %v1054, %v1053
        %v1069 = vpack.c.b16 %v1056, %v1055
        %v1070 = vpack.c.b16 %v1058, %v1057
        %v1071 = vpack.c.b16 %v1060, %v1059
        %v1072 = vpack.c.b16 %v1062, %v1061
        %v1073 = vpack.c.b16 %v1064, %v1063
        %v1074 = vpack.c.b16 %v1066, %v1065
        %1083 = vmatprep.subr.bf16.mxu0 0
        %1084 = vmatpush1.bf16.msra.mxu0 %v1067
        %1085 = vmatprep.subr.bf16.mxu0 0
        %1086 = vmatpush1.bf16.msra.mxu0 %v1068
        %1087 = vmatprep.subr.bf16.mxu0 0
        %1088 = vmatpush1.bf16.msra.mxu0 %v1069
        %1089 = vmatprep.subr.bf16.mxu0 0
        %1090 = vmatpush1.bf16.msra.mxu0 %v1070
        %1091 = vmatprep.subr.bf16.mxu0 0
        %1092 = vmatpush1.bf16.msra.mxu0 %v1071
        %1093 = vmatprep.subr.bf16.mxu0 0
        %1094 = vmatpush1.bf16.msra.mxu0 %v1072
        %1095 = vmatprep.subr.bf16.mxu0 0
        %1096 = vmatpush1.bf16.msra.mxu0 %v1073
        %1097 = vmatprep.subr.bf16.mxu0 0
        %1098 = vmatpush1.bf16.msra.mxu0 %v1074
        %1099 = vmatprep.subr.bf16.mxu0 0
        %1100 = vmatpush1.bf16.msra.mxu0 0
        %1101 = vmatprep.subr.bf16.mxu0 0
        %1102 = vmatpush1.bf16.msra.mxu0 0
        %1103 = vmatprep.subr.bf16.mxu0 0
        %1104 = vmatpush1.bf16.msra.mxu0 0
        %1105 = vmatprep.subr.bf16.mxu0 0
        %1106 = vmatpush1.bf16.msra.mxu0 0
        %1107 = vmatprep.subr.bf16.mxu0 0
        %1108 = vmatpush1.bf16.msra.mxu0 0
        %1109 = vmatprep.subr.bf16.mxu0 0
        %1110 = vmatpush1.bf16.msra.mxu0 0
        %1111 = vmatprep.subr.bf16.mxu0 0
        %1112 = vmatpush1.bf16.msra.mxu0 0
        %1113 = vmatprep.subr.bf16.mxu0 0
        %1114 = vmatpush1.bf16.msra.mxu0 0
        %1115 = vmatprep.mubr.bf16.mxu0 0
        %1116 = vmatmul.mubr.bf16.gmra.mrb[0].mxu0 %v374
        %v1117 = vpop.f32.mrb[0].mxu0
        %v1118 = vadd.f32 0.0, %v1117
        %v1119 = vpop.f32.mrb[0].mxu0
        %v1120 = vpop.f32.mrb[0].mxu0
        %v1121 = vadd.f32 0.0, %v1120
        %v1122 = vpop.f32.mrb[0].mxu0
        %1123 = vmatprep.mubr.bf16.mxu0 0
        %1124 = vmatmul.mubr.bf16.gmra.mrb[0].mxu0 %v375
        %v1125 = vpop.f32.mrb[0].mxu0
        %v1126 = vadd.f32 0.0, %v1125
        %v1127 = vpop.f32.mrb[0].mxu0
        %v1128 = vpop.f32.mrb[0].mxu0
        %v1129 = vadd.f32 0.0, %v1128
        %v1130 = vpop.f32.mrb[0].mxu0
        %1131 = vmatprep.mubr.bf16.mxu0 0
        %1132 = vmatmul.mubr.bf16.gmra.mrb[0].mxu0 %v376
        %v1133 = vpop.f32.mrb[0].mxu0
        %v1134 = vadd.f32 0.0, %v1133
        %v1135 = vpop.f32.mrb[0].mxu0
        %v1136 = vpop.f32.mrb[0].mxu0
        %v1137 = vadd.f32 0.0, %v1136
        %v1138 = vpop.f32.mrb[0].mxu0
        %1139 = vmatprep.mubr.bf16.mxu0 0
        %1140 = vmatmul.mubr.bf16.gmra.mrb[0].mxu0 %v377
        %v1141 = vpop.f32.mrb[0].mxu0
        %v1142 = vadd.f32 0.0, %v1141
        %v1143 = vpop.f32.mrb[0].mxu0
        %v1144 = vpop.f32.mrb[0].mxu0
        %v1145 = vadd.f32 0.0, %v1144
        %v1146 = vpop.f32.mrb[0].mxu0
        %1147 = vmatprep.mubr.bf16.mxu0 0
        %1148 = vmatmul.mubr.bf16.gmra.mrb[0].mxu0 %v378
        %v1149 = vpop.f32.mrb[0].mxu0
        %v1150 = vadd.f32 0.0, %v1149
        %v1151 = vpop.f32.mrb[0].mxu0
        %v1152 = vpop.f32.mrb[0].mxu0
        %v1153 = vadd.f32 0.0, %v1152
        %v1154 = vpop.f32.mrb[0].mxu0
        %1155 = vmatprep.mubr.bf16.mxu0 0
        %1156 = vmatmul.mubr.bf16.gmra.mrb[0].mxu0 %v379
        %v1157 = vpop.f32.mrb[0].mxu0
        %v1158 = vadd.f32 0.0, %v1157
        %v1159 = vpop.f32.mrb[0].mxu0
        %v1160 = vpop.f32.mrb[0].mxu0
        %v1161 = vadd.f32 0.0, %v1160
        %v1162 = vpop.f32.mrb[0].mxu0
        %1163 = vmatprep.mubr.bf16.mxu0 0
        %1164 = vmatmul.mubr.bf16.gmra.mrb[0].mxu0 %v380
        %v1165 = vpop.f32.mrb[0].mxu0
        %v1166 = vadd.f32 0.0, %v1165
        %v1167 = vpop.f32.mrb[0].mxu0
        %v1168 = vpop.f32.mrb[0].mxu0
        %v1169 = vadd.f32 0.0, %v1168
        %v1170 = vpop.f32.mrb[0].mxu0
        %1171 = vmatprep.mubr.bf16.mxu0 0
        %1172 = vmatmul.mubr.bf16.gmra.mrb[0].mxu0 %v381
        %v1173 = vpop.f32.mrb[0].mxu0
        %v1174 = vadd.f32 0.0, %v1173
        %v1175 = vpop.f32.mrb[0].mxu0
        %v1176 = vpop.f32.mrb[0].mxu0
        %v1177 = vadd.f32 0.0, %v1176
        %v1178 = vpop.f32.mrb[0].mxu0
        %1179 = vmatprep.mubr.bf16.mxu0 0
        %1180 = vmatmul.mubr.bf16.gmra.mrb[0].mxu0 %v382
        %v1181 = vpop.f32.mrb[0].mxu0
        %v1182 = vadd.f32 0.0, %v1181
        %v1183 = vpop.f32.mrb[0].mxu0
        %v1184 = vpop.f32.mrb[0].mxu0
        %v1185 = vadd.f32 0.0, %v1184
        %v1186 = vpop.f32.mrb[0].mxu0
        %1187 = vmatprep.mubr.bf16.mxu0 0
        %1188 = vmatmul.mubr.bf16.gmra.mrb[0].mxu0 %v383
        %v1189 = vpop.f32.mrb[0].mxu0
        %v1190 = vadd.f32 0.0, %v1189
        %v1191 = vpop.f32.mrb[0].mxu0
        %v1192 = vpop.f32.mrb[0].mxu0
        %v1193 = vadd.f32 0.0, %v1192
        %v1194 = vpop.f32.mrb[0].mxu0
        %1195 = vmatprep.mubr.bf16.mxu0 0
        %1196 = vmatmul.mubr.bf16.gmra.mrb[0].mxu0 %v384
        %v1197 = vpop.f32.mrb[0].mxu0
        %v1198 = vadd.f32 0.0, %v1197
        %v1199 = vpop.f32.mrb[0].mxu0
        %v1200 = vpop.f32.mrb[0].mxu0
        %v1201 = vadd.f32 0.0, %v1200
        %v1202 = vpop.f32.mrb[0].mxu0
        %1203 = vmatprep.mubr.bf16.mxu0 0
        %1204 = vmatmul.mubr.bf16.gmra.mrb[0].mxu0 %v385
        %v1205 = vpop.f32.mrb[0].mxu0
        %v1206 = vadd.f32 0.0, %v1205
        %v1207 = vpop.f32.mrb[0].mxu0
        %v1208 = vpop.f32.mrb[0].mxu0
        %v1209 = vadd.f32 0.0, %v1208
        %v1210 = vpop.f32.mrb[0].mxu0
        %1211 = vmatprep.mubr.bf16.mxu0 0
        %1212 = vmatmul.mubr.bf16.gmra.mrb[0].mxu0 %v386
        %v1213 = vpop.f32.mrb[0].mxu0
        %v1214 = vadd.f32 0.0, %v1213
        %v1215 = vpop.f32.mrb[0].mxu0
        %v1216 = vpop.f32.mrb[0].mxu0
        %v1217 = vadd.f32 0.0, %v1216
        %v1218 = vpop.f32.mrb[0].mxu0
        %1219 = vmatprep.mubr.bf16.mxu0 0
        %1220 = vmatmul.mubr.bf16.gmra.mrb[0].mxu0 %v387
        %v1221 = vpop.f32.mrb[0].mxu0
        %v1222 = vadd.f32 0.0, %v1221
        %v1223 = vpop.f32.mrb[0].mxu0
        %v1224 = vpop.f32.mrb[0].mxu0
        %v1225 = vadd.f32 0.0, %v1224
        %v1226 = vpop.f32.mrb[0].mxu0
        %1227 = vmatprep.mubr.bf16.mxu0 0
        %1228 = vmatmul.mubr.bf16.gmra.mrb[0].mxu0 %v388
        %v1229 = vpop.f32.mrb[0].mxu0
        %v1230 = vadd.f32 0.0, %v1229
        %v1231 = vpop.f32.mrb[0].mxu0
        %v1232 = vpop.f32.mrb[0].mxu0
        %v1233 = vadd.f32 0.0, %v1232
        %v1234 = vpop.f32.mrb[0].mxu0
        %1235 = vmatprep.mubr.bf16.mxu0 0
        %1236 = vmatmul.mubr.bf16.gmra.mrb[0].mxu0 %v1017
        %v1237 = vpop.f32.mrb[0].mxu0
        %v1238 = vadd.f32 0.0, %v1237
        %v1239 = vpop.f32.mrb[0].mxu0
        %v1240 = vpop.f32.mrb[0].mxu0
        %v1241 = vadd.f32 0.0, %v1240
        %v1242 = vpop.f32.mrb[0].mxu0
        %1243 = vdwg.mxu0
        %v1244 = vadd.f32 %v891, %v1118
        %v1245 = vadd.f32 %v894, %v1121
        %v1246 = vadd.f32 %v899, %v1126
        %v1247 = vadd.f32 %v902, %v1129
        %v1248 = vadd.f32 %v907, %v1134
        %v1249 = vadd.f32 %v910, %v1137
        %v1250 = vadd.f32 %v915, %v1142
        %v1251 = vadd.f32 %v918, %v1145
        %v1252 = vadd.f32 %v923, %v1150
        %v1253 = vadd.f32 %v926, %v1153
        %v1254 = vadd.f32 %v931, %v1158
        %v1255 = vadd.f32 %v934, %v1161
        %v1256 = vadd.f32 %v939, %v1166
        %v1257 = vadd.f32 %v942, %v1169
        %v1258 = vadd.f32 %v947, %v1174
        %v1259 = vadd.f32 %v950, %v1177
        %v1260 = vadd.f32 %v955, %v1182
        %v1261 = vadd.f32 %v958, %v1185
        %v1262 = vadd.f32 %v963, %v1190
        %v1263 = vadd.f32 %v966, %v1193
        %v1264 = vadd.f32 %v971, %v1198
        %v1265 = vadd.f32 %v974, %v1201
        %v1266 = vadd.f32 %v979, %v1206
        %v1267 = vadd.f32 %v982, %v1209
        %v1268 = vadd.f32 %v987, %v1214
        %v1269 = vadd.f32 %v990, %v1217
        %v1270 = vadd.f32 %v995, %v1222
        %v1271 = vadd.f32 %v998, %v1225
        %v1272 = vadd.f32 %v1003, %v1230
        %v1273 = vadd.f32 %v1006, %v1233
        %v1274 = vadd.f32 %v1011, %v1238
        %v1275 = vadd.f32 %v1014, %v1241
        %v1279 = vrot.slane %v370, 1
        %v1280 = vrot.slane %v371, 1
        %v1281 = vsel %vm453, %v1279, %v1280
        %v1282 = vrot.slane %v372, 1
        %v1283 = vsel %vm453, %v1280, %v1282
        %v1286 = vpack.c.bf16 %v1283, %v1281
        %s1287 = scalar_lea.vmem %s2, 192
        %v1288 = vld [vmem:[%s1287] sm:$0xf]
        %v1289 = vld [vmem:[%s1287 + $0x4] sm:$0xf]
        %v1290 = vld [vmem:[%s1287 + $0x8] sm:$0xf]
        %v1291 = vld [vmem:[%s1287 + $0xc] sm:$0xf]
        %v1292 = vld [vmem:[%s1287 + $0x10] sm:$0xf]
        %v1293 = vld [vmem:[%s1287 + $0x14] sm:$0xf]
        %v1294 = vld [vmem:[%s1287 + $0x18] sm:$0xf]
        %v1295 = vld [vmem:[%s1287 + $0x1c] sm:$0xf]
        %v1296 = vld [vmem:[%s1287 + $0x20] sm:$0xf]
        %v1297 = vld [vmem:[%s1287 + $0x24] sm:$0xf]
        %v1298 = vld [vmem:[%s1287 + $0x28] sm:$0xf]
        %v1299 = vld [vmem:[%s1287 + $0x2c] sm:$0xf]
        %v1300 = vld [vmem:[%s1287 + $0x30] sm:$0xf]
        %v1301 = vld [vmem:[%s1287 + $0x34] sm:$0xf]
        %v1302 = vld [vmem:[%s1287 + $0x38] sm:$0xf]
        %v1303 = vld [vmem:[%s1287 + $0x3c] sm:$0xf]
        %v1320 = vunpack.c.l.b16 %v1288
        %v1321 = vunpack.c.l.b16 %v1289
        %v1322 = vunpack.c.l.b16 %v1290
        %v1323 = vunpack.c.l.b16 %v1291
        %v1324 = vunpack.c.l.b16 %v1292
        %v1325 = vunpack.c.l.b16 %v1293
        %v1326 = vunpack.c.l.b16 %v1294
        %v1327 = vunpack.c.l.b16 %v1295
        %v1328 = vunpack.c.l.b16 %v1296
        %v1329 = vunpack.c.l.b16 %v1297
        %v1330 = vunpack.c.l.b16 %v1298
        %v1331 = vunpack.c.l.b16 %v1299
        %v1332 = vunpack.c.l.b16 %v1300
        %v1333 = vunpack.c.l.b16 %v1301
        %v1334 = vunpack.c.l.b16 %v1302
        %v1335 = vunpack.c.l.b16 %v1303
        %v1336 = vpack.c.b16 %v1321, %v1320
        %v1337 = vpack.c.b16 %v1323, %v1322
        %v1338 = vpack.c.b16 %v1325, %v1324
        %v1339 = vpack.c.b16 %v1327, %v1326
        %v1340 = vpack.c.b16 %v1329, %v1328
        %v1341 = vpack.c.b16 %v1331, %v1330
        %v1342 = vpack.c.b16 %v1333, %v1332
        %v1343 = vpack.c.b16 %v1335, %v1334
        %1352 = vmatprep.subr.bf16.mxu0 0
        %1353 = vmatpush1.bf16.msra.mxu0 %v1336
        %1354 = vmatprep.subr.bf16.mxu0 0
        %1355 = vmatpush1.bf16.msra.mxu0 %v1337
        %1356 = vmatprep.subr.bf16.mxu0 0
        %1357 = vmatpush1.bf16.msra.mxu0 %v1338
        %1358 = vmatprep.subr.bf16.mxu0 0
        %1359 = vmatpush1.bf16.msra.mxu0 %v1339
        %1360 = vmatprep.subr.bf16.mxu0 0
        %1361 = vmatpush1.bf16.msra.mxu0 %v1340
        %1362 = vmatprep.subr.bf16.mxu0 0
        %1363 = vmatpush1.bf16.msra.mxu0 %v1341
        %1364 = vmatprep.subr.bf16.mxu0 0
        %1365 = vmatpush1.bf16.msra.mxu0 %v1342
        %1366 = vmatprep.subr.bf16.mxu0 0
        %1367 = vmatpush1.bf16.msra.mxu0 %v1343
        %1368 = vmatprep.subr.bf16.mxu0 0
        %1369 = vmatpush1.bf16.msra.mxu0 0
        %1370 = vmatprep.subr.bf16.mxu0 0
        %1371 = vmatpush1.bf16.msra.mxu0 0
        %1372 = vmatprep.subr.bf16.mxu0 0
        %1373 = vmatpush1.bf16.msra.mxu0 0
        %1374 = vmatprep.subr.bf16.mxu0 0
        %1375 = vmatpush1.bf16.msra.mxu0 0
        %1376 = vmatprep.subr.bf16.mxu0 0
        %1377 = vmatpush1.bf16.msra.mxu0 0
        %1378 = vmatprep.subr.bf16.mxu0 0
        %1379 = vmatpush1.bf16.msra.mxu0 0
        %1380 = vmatprep.subr.bf16.mxu0 0
        %1381 = vmatpush1.bf16.msra.mxu0 0
        %1382 = vmatprep.subr.bf16.mxu0 0
        %1383 = vmatpush1.bf16.msra.mxu0 0
        %1384 = vmatprep.mubr.bf16.mxu0 0
        %1385 = vmatmul.mubr.bf16.gmra.mrb[0].mxu0 %v567
        %v1386 = vpop.f32.mrb[0].mxu0
        %v1387 = vadd.f32 0.0, %v1386
        %v1388 = vpop.f32.mrb[0].mxu0
        %v1389 = vpop.f32.mrb[0].mxu0
        %v1390 = vadd.f32 0.0, %v1389
        %v1391 = vpop.f32.mrb[0].mxu0
        %1392 = vmatprep.mubr.bf16.mxu0 0
        %1393 = vmatmul.mubr.bf16.gmra.mrb[0].mxu0 %v568
        %v1394 = vpop.f32.mrb[0].mxu0
        %v1395 = vadd.f32 0.0, %v1394
        %v1396 = vpop.f32.mrb[0].mxu0
        %v1397 = vpop.f32.mrb[0].mxu0
        %v1398 = vadd.f32 0.0, %v1397
        %v1399 = vpop.f32.mrb[0].mxu0
        %1400 = vmatprep.mubr.bf16.mxu0 0
        %1401 = vmatmul.mubr.bf16.gmra.mrb[0].mxu0 %v569
        %v1402 = vpop.f32.mrb[0].mxu0
        %v1403 = vadd.f32 0.0, %v1402
        %v1404 = vpop.f32.mrb[0].mxu0
        %v1405 = vpop.f32.mrb[0].mxu0
        %v1406 = vadd.f32 0.0, %v1405
        %v1407 = vpop.f32.mrb[0].mxu0
        %1408 = vmatprep.mubr.bf16.mxu0 0
        %1409 = vmatmul.mubr.bf16.gmra.mrb[0].mxu0 %v570
        %v1410 = vpop.f32.mrb[0].mxu0
        %v1411 = vadd.f32 0.0, %v1410
        %v1412 = vpop.f32.mrb[0].mxu0
        %v1413 = vpop.f32.mrb[0].mxu0
        %v1414 = vadd.f32 0.0, %v1413
        %v1415 = vpop.f32.mrb[0].mxu0
        %1416 = vmatprep.mubr.bf16.mxu0 0
        %1417 = vmatmul.mubr.bf16.gmra.mrb[0].mxu0 %v571
        %v1418 = vpop.f32.mrb[0].mxu0
        %v1419 = vadd.f32 0.0, %v1418
        %v1420 = vpop.f32.mrb[0].mxu0
        %v1421 = vpop.f32.mrb[0].mxu0
        %v1422 = vadd.f32 0.0, %v1421
        %v1423 = vpop.f32.mrb[0].mxu0
        %1424 = vmatprep.mubr.bf16.mxu0 0
        %1425 = vmatmul.mubr.bf16.gmra.mrb[0].mxu0 %v572
        %v1426 = vpop.f32.mrb[0].mxu0
        %v1427 = vadd.f32 0.0, %v1426
        %v1428 = vpop.f32.mrb[0].mxu0
        %v1429 = vpop.f32.mrb[0].mxu0
        %v1430 = vadd.f32 0.0, %v1429
        %v1431 = vpop.f32.mrb[0].mxu0
        %1432 = vmatprep.mubr.bf16.mxu0 0
        %1433 = vmatmul.mubr.bf16.gmra.mrb[0].mxu0 %v573
        %v1434 = vpop.f32.mrb[0].mxu0
        %v1435 = vadd.f32 0.0, %v1434
        %v1436 = vpop.f32.mrb[0].mxu0
        %v1437 = vpop.f32.mrb[0].mxu0
        %v1438 = vadd.f32 0.0, %v1437
        %v1439 = vpop.f32.mrb[0].mxu0
        %1440 = vmatprep.mubr.bf16.mxu0 0
        %1441 = vmatmul.mubr.bf16.gmra.mrb[0].mxu0 %v574
        %v1442 = vpop.f32.mrb[0].mxu0
        %v1443 = vadd.f32 0.0, %v1442
        %v1444 = vpop.f32.mrb[0].mxu0
        %v1445 = vpop.f32.mrb[0].mxu0
        %v1446 = vadd.f32 0.0, %v1445
        %v1447 = vpop.f32.mrb[0].mxu0
        %1448 = vmatprep.mubr.bf16.mxu0 0
        %1449 = vmatmul.mubr.bf16.gmra.mrb[0].mxu0 %v575
        %v1450 = vpop.f32.mrb[0].mxu0
        %v1451 = vadd.f32 0.0, %v1450
        %v1452 = vpop.f32.mrb[0].mxu0
        %v1453 = vpop.f32.mrb[0].mxu0
        %v1454 = vadd.f32 0.0, %v1453
        %v1455 = vpop.f32.mrb[0].mxu0
        %1456 = vmatprep.mubr.bf16.mxu0 0
        %1457 = vmatmul.mubr.bf16.gmra.mrb[0].mxu0 %v576
        %v1458 = vpop.f32.mrb[0].mxu0
        %v1459 = vadd.f32 0.0, %v1458
        %v1460 = vpop.f32.mrb[0].mxu0
        %v1461 = vpop.f32.mrb[0].mxu0
        %v1462 = vadd.f32 0.0, %v1461
        %v1463 = vpop.f32.mrb[0].mxu0
        %1464 = vmatprep.mubr.bf16.mxu0 0
        %1465 = vmatmul.mubr.bf16.gmra.mrb[0].mxu0 %v577
        %v1466 = vpop.f32.mrb[0].mxu0
        %v1467 = vadd.f32 0.0, %v1466
        %v1468 = vpop.f32.mrb[0].mxu0
        %v1469 = vpop.f32.mrb[0].mxu0
        %v1470 = vadd.f32 0.0, %v1469
        %v1471 = vpop.f32.mrb[0].mxu0
        %1472 = vmatprep.mubr.bf16.mxu0 0
        %1473 = vmatmul.mubr.bf16.gmra.mrb[0].mxu0 %v578
        %v1474 = vpop.f32.mrb[0].mxu0
        %v1475 = vadd.f32 0.0, %v1474
        %v1476 = vpop.f32.mrb[0].mxu0
        %v1477 = vpop.f32.mrb[0].mxu0
        %v1478 = vadd.f32 0.0, %v1477
        %v1479 = vpop.f32.mrb[0].mxu0
        %1480 = vmatprep.mubr.bf16.mxu0 0
        %1481 = vmatmul.mubr.bf16.gmra.mrb[0].mxu0 %v579
        %v1482 = vpop.f32.mrb[0].mxu0
        %v1483 = vadd.f32 0.0, %v1482
        %v1484 = vpop.f32.mrb[0].mxu0
        %v1485 = vpop.f32.mrb[0].mxu0
        %v1486 = vadd.f32 0.0, %v1485
        %v1487 = vpop.f32.mrb[0].mxu0
        %1488 = vmatprep.mubr.bf16.mxu0 0
        %1489 = vmatmul.mubr.bf16.gmra.mrb[0].mxu0 %v580
        %v1490 = vpop.f32.mrb[0].mxu0
        %v1491 = vadd.f32 0.0, %v1490
        %v1492 = vpop.f32.mrb[0].mxu0
        %v1493 = vpop.f32.mrb[0].mxu0
        %v1494 = vadd.f32 0.0, %v1493
        %v1495 = vpop.f32.mrb[0].mxu0
        %1496 = vmatprep.mubr.bf16.mxu0 0
        %1497 = vmatmul.mubr.bf16.gmra.mrb[0].mxu0 %v581
        %v1498 = vpop.f32.mrb[0].mxu0
        %v1499 = vadd.f32 0.0, %v1498
        %v1500 = vpop.f32.mrb[0].mxu0
        %v1501 = vpop.f32.mrb[0].mxu0
        %v1502 = vadd.f32 0.0, %v1501
        %v1503 = vpop.f32.mrb[0].mxu0
        %1504 = vmatprep.mubr.bf16.mxu0 0
        %1505 = vmatmul.mubr.bf16.gmra.mrb[0].mxu0 %v1286
        %v1506 = vpop.f32.mrb[0].mxu0
        %v1507 = vadd.f32 0.0, %v1506
        %v1508 = vpop.f32.mrb[0].mxu0
        %v1509 = vpop.f32.mrb[0].mxu0
        %v1510 = vadd.f32 0.0, %v1509
        %v1511 = vpop.f32.mrb[0].mxu0
        %1512 = vdwg.mxu0
        %v1513 = vadd.f32 %v1244, %v1387
        %v1514 = vadd.f32 %v1245, %v1390
        %v1515 = vadd.f32 %v1246, %v1395
        %v1516 = vadd.f32 %v1247, %v1398
        %v1517 = vadd.f32 %v1248, %v1403
        %v1518 = vadd.f32 %v1249, %v1406
        %v1519 = vadd.f32 %v1250, %v1411
        %v1520 = vadd.f32 %v1251, %v1414
        %v1521 = vadd.f32 %v1252, %v1419
        %v1522 = vadd.f32 %v1253, %v1422
        %v1523 = vadd.f32 %v1254, %v1427
        %v1524 = vadd.f32 %v1255, %v1430
        %v1525 = vadd.f32 %v1256, %v1435
        %v1526 = vadd.f32 %v1257, %v1438
        %v1527 = vadd.f32 %v1258, %v1443
        %v1528 = vadd.f32 %v1259, %v1446
        %v1529 = vadd.f32 %v1260, %v1451
        %v1530 = vadd.f32 %v1261, %v1454
        %v1531 = vadd.f32 %v1262, %v1459
        %v1532 = vadd.f32 %v1263, %v1462
        %v1533 = vadd.f32 %v1264, %v1467
        %v1534 = vadd.f32 %v1265, %v1470
        %v1535 = vadd.f32 %v1266, %v1475
        %v1536 = vadd.f32 %v1267, %v1478
        %v1537 = vadd.f32 %v1268, %v1483
        %v1538 = vadd.f32 %v1269, %v1486
        %v1539 = vadd.f32 %v1270, %v1491
        %v1540 = vadd.f32 %v1271, %v1494
        %v1541 = vadd.f32 %v1272, %v1499
        %v1542 = vadd.f32 %v1273, %v1502
        %v1543 = vadd.f32 %v1274, %v1507
        %v1544 = vadd.f32 %v1275, %v1510
        %v1545 = vld [vmem:[%s4] sm:$0x1]
        %v1547 = vlaneseq
        %v1548 = vshrl.u32 %v1547, 7
        %v1549 = vsub.s32 0, %v1548
        %v1550 = vrot.slane %v1545, %v1549
        %v1552 = vadd.f32 %v1513, %v1550
        %v1553 = vadd.f32 %v1514, %v1550
        %v1554 = vadd.f32 %v1515, %v1550
        %v1555 = vadd.f32 %v1516, %v1550
        %v1556 = vadd.f32 %v1517, %v1550
        %v1557 = vadd.f32 %v1518, %v1550
        %v1558 = vadd.f32 %v1519, %v1550
        %v1559 = vadd.f32 %v1520, %v1550
        %v1560 = vadd.f32 %v1521, %v1550
        %v1561 = vadd.f32 %v1522, %v1550
        %v1562 = vadd.f32 %v1523, %v1550
        %v1563 = vadd.f32 %v1524, %v1550
        %v1564 = vadd.f32 %v1525, %v1550
        %v1565 = vadd.f32 %v1526, %v1550
        %v1566 = vadd.f32 %v1527, %v1550
        %v1567 = vadd.f32 %v1528, %v1550
        %v1568 = vadd.f32 %v1529, %v1550
        %v1569 = vadd.f32 %v1530, %v1550
        %v1570 = vadd.f32 %v1531, %v1550
        %v1571 = vadd.f32 %v1532, %v1550
        %v1572 = vadd.f32 %v1533, %v1550
        %v1573 = vadd.f32 %v1534, %v1550
        %v1574 = vadd.f32 %v1535, %v1550
        %v1575 = vadd.f32 %v1536, %v1550
        %v1576 = vadd.f32 %v1537, %v1550
        %v1577 = vadd.f32 %v1538, %v1550
        %v1578 = vadd.f32 %v1539, %v1550
        %v1579 = vadd.f32 %v1540, %v1550
        %v1580 = vadd.f32 %v1541, %v1550
        %v1581 = vadd.f32 %v1542, %v1550
        %v1582 = vadd.f32 %v1543, %v1550
        %v1583 = vadd.f32 %v1544, %v1550
        %v1584 = vmax.f32 %v1552, 0.0
        %v1585 = vmax.f32 %v1553, 0.0
        %v1586 = vmax.f32 %v1554, 0.0
        %v1587 = vmax.f32 %v1555, 0.0
        %v1588 = vmax.f32 %v1556, 0.0
        %v1589 = vmax.f32 %v1557, 0.0
        %v1590 = vmax.f32 %v1558, 0.0
        %v1591 = vmax.f32 %v1559, 0.0
        %v1592 = vmax.f32 %v1560, 0.0
        %v1593 = vmax.f32 %v1561, 0.0
        %v1594 = vmax.f32 %v1562, 0.0
        %v1595 = vmax.f32 %v1563, 0.0
        %v1596 = vmax.f32 %v1564, 0.0
        %v1597 = vmax.f32 %v1565, 0.0
        %v1598 = vmax.f32 %v1566, 0.0
        %v1599 = vmax.f32 %v1567, 0.0
        %v1600 = vmax.f32 %v1568, 0.0
        %v1601 = vmax.f32 %v1569, 0.0
        %v1602 = vmax.f32 %v1570, 0.0
        %v1603 = vmax.f32 %v1571, 0.0
        %v1604 = vmax.f32 %v1572, 0.0
        %v1605 = vmax.f32 %v1573, 0.0
        %v1606 = vmax.f32 %v1574, 0.0
        %v1607 = vmax.f32 %v1575, 0.0
        %v1608 = vmax.f32 %v1576, 0.0
        %v1609 = vmax.f32 %v1577, 0.0
        %v1610 = vmax.f32 %v1578, 0.0
        %v1611 = vmax.f32 %v1579, 0.0
        %v1612 = vmax.f32 %v1580, 0.0
        %v1613 = vmax.f32 %v1581, 0.0
        %v1614 = vmax.f32 %v1582, 0.0
        %v1615 = vmax.f32 %v1583, 0.0
        %vm1616 = vcmask 523264
        %1617 = vst.msk [vmem:[#allocation2] sm:$0xff] %vm1616, 0.0
        %1618 = vst.msk [vmem:[#allocation2 + $0x8] sm:$0xff] %vm1616, 0.0
        %vm1619 = vcmask 517120
        %1620 = vst.msk [vmem:[#allocation2 + $0x10] sm:$0x3] %vm1619, 0.0
        %1621 = vst.msk [vmem:[#allocation2 + $0x18] sm:$0xff] %vm1616, 0.0
        %1622 = vst.msk [vmem:[#allocation2 + $0x20] sm:$0xff] %vm1616, 0.0
        %1623 = vst.msk [vmem:[#allocation2 + $0x28] sm:$0x3] %vm1619, 0.0
        %1624 = vst.msk [vmem:[#allocation2 + $0x30] sm:$0xff] %vm1616, 0.0
        %1625 = vst.msk [vmem:[#allocation2 + $0x38] sm:$0xff] %vm1616, 0.0
        %1626 = vst.msk [vmem:[#allocation2 + $0x40] sm:$0x3] %vm1619, 0.0
        %1627 = vst.msk [vmem:[#allocation2 + $0x48] sm:$0xff] %vm1616, 0.0
        %1628 = vst.msk [vmem:[#allocation2 + $0x50] sm:$0xff] %vm1616, 0.0
        %1629 = vst.msk [vmem:[#allocation2 + $0x58] sm:$0x3] %vm1619, 0.0
        %1630 = vst.msk [vmem:[#allocation2 + $0x60] sm:$0xff] %vm1616, 0.0
        %1631 = vst.msk [vmem:[#allocation2 + $0x68] sm:$0xff] %vm1616, 0.0
        %1632 = vst.msk [vmem:[#allocation2 + $0x70] sm:$0x3] %vm1619, 0.0
        %1633 = vst.msk [vmem:[#allocation2 + $0x78] sm:$0xff] %vm1616, 0.0
        %1634 = vst.msk [vmem:[#allocation2 + $0x80] sm:$0xff] %vm1616, 0.0
        %1635 = vst.msk [vmem:[#allocation2 + $0x88] sm:$0x3] %vm1619, 0.0
        %1636 = vst.msk [vmem:[#allocation2 + $0x90] sm:$0xff] %vm1616, 0.0
        %1637 = vst.msk [vmem:[#allocation2 + $0x98] sm:$0xff] %vm1616, 0.0
        %1638 = vst.msk [vmem:[#allocation2 + $0xa0] sm:$0x3] %vm1619, 0.0
        %1639 = vst.msk [vmem:[#allocation2 + $0xa8] sm:$0xff] %vm1616, 0.0
        %1640 = vst.msk [vmem:[#allocation2 + $0xb0] sm:$0xff] %vm1616, 0.0
        %1641 = vst.msk [vmem:[#allocation2 + $0xb8] sm:$0x3] %vm1619, 0.0
        %1642 = vst.msk [vmem:[#allocation2 + $0xc0] sm:$0xff] %vm1616, 0.0
        %1643 = vst.msk [vmem:[#allocation2 + $0xc8] sm:$0xff] %vm1616, 0.0
        %1644 = vst.msk [vmem:[#allocation2 + $0xd0] sm:$0x3] %vm1619, 0.0
        %1645 = vst.msk [vmem:[#allocation2 + $0xd8] sm:$0xff] %vm1616, 0.0
        %1646 = vst.msk [vmem:[#allocation2 + $0xe0] sm:$0xff] %vm1616, 0.0
        %1647 = vst.msk [vmem:[#allocation2 + $0xe8] sm:$0x3] %vm1619, 0.0
        %1648 = vst.msk [vmem:[#allocation2 + $0xf0] sm:$0xff] %vm1616, 0.0
        %1649 = vst.msk [vmem:[#allocation2 + $0xf8] sm:$0xff] %vm1616, 0.0
        %1650 = vst.msk [vmem:[#allocation2 + $0x100] sm:$0x3] %vm1619, 0.0
        %1651 = vst.msk [vmem:[#allocation2 + $0x108] sm:$0xff] %vm1616, 0.0
        %1652 = vst.msk [vmem:[#allocation2 + $0x110] sm:$0xff] %vm1616, 0.0
        %1653 = vst.msk [vmem:[#allocation2 + $0x118] sm:$0x3] %vm1619, 0.0
        %1654 = vst.msk [vmem:[#allocation2 + $0x120] sm:$0xff] %vm1616, 0.0
        %1655 = vst.msk [vmem:[#allocation2 + $0x128] sm:$0xff] %vm1616, 0.0
        %1656 = vst.msk [vmem:[#allocation2 + $0x130] sm:$0x3] %vm1619, 0.0
        %1657 = vst.msk [vmem:[#allocation2 + $0x138] sm:$0xff] %vm1616, 0.0
        %1658 = vst.msk [vmem:[#allocation2 + $0x140] sm:$0xff] %vm1616, 0.0
        %1659 = vst.msk [vmem:[#allocation2 + $0x148] sm:$0x3] %vm1619, 0.0
        %1660 = vst.msk [vmem:[#allocation2 + $0x150] sm:$0xff] %vm1616, 0.0
        %1661 = vst.msk [vmem:[#allocation2 + $0x158] sm:$0xff] %vm1616, 0.0
        %1662 = vst.msk [vmem:[#allocation2 + $0x160] sm:$0x3] %vm1619, 0.0
        %1663 = vst.msk [vmem:[#allocation2 + $0x168] sm:$0xff] %vm1616, 0.0
        %1664 = vst.msk [vmem:[#allocation2 + $0x170] sm:$0xff] %vm1616, 0.0
        %1665 = vst.msk [vmem:[#allocation2 + $0x178] sm:$0x3] %vm1619, 0.0
        %1666 = vst.msk [vmem:[#allocation2 + $0x180] sm:$0xff] %vm1616, 0.0
        %1667 = vst.msk [vmem:[#allocation2 + $0x188] sm:$0xff] %vm1616, 0.0
        %1668 = vst.msk [vmem:[#allocation2 + $0x190] sm:$0x3] %vm1619, 0.0
        %1669 = vst.msk [vmem:[#allocation2 + $0x198] sm:$0xff] %vm1616, 0.0
        %1670 = vst.msk [vmem:[#allocation2 + $0x1a0] sm:$0xff] %vm1616, 0.0
        %1671 = vst.msk [vmem:[#allocation2 + $0x1a8] sm:$0x3] %vm1619, 0.0
        %v1672 = vld [vmem:[%s269] sm:$0xff]
        %v1673 = vld [vmem:[%s269 + $0x8] sm:$0xff]
        %v1674 = vld [vmem:[%s269 + $0x10] sm:$0xff]
        %v1675 = vld [vmem:[%s269 + $0x18] sm:$0xff]
        %v1676 = vld [vmem:[%s269 + $0x20] sm:$0xff]
        %v1677 = vld [vmem:[%s269 + $0x28] sm:$0xff]
        %v1678 = vld [vmem:[%s269 + $0x30] sm:$0xff]
        %v1679 = vld [vmem:[%s269 + $0x38] sm:$0xff]
        %v1680 = vld [vmem:[%s269 + $0x40] sm:$0xff]
        %v1681 = vld [vmem:[%s269 + $0x48] sm:$0xff]
        %v1682 = vld [vmem:[%s269 + $0x50] sm:$0xff]
        %v1683 = vld [vmem:[%s269 + $0x58] sm:$0xff]
        %v1684 = vld [vmem:[%s269 + $0x60] sm:$0xff]
        %v1685 = vld [vmem:[%s269 + $0x68] sm:$0xff]
        %v1686 = vld [vmem:[%s269 + $0x70] sm:$0xff]
        %v1687 = vld [vmem:[%s269 + $0x78] sm:$0xff]
        %v1688 = vld [vmem:[%s269 + $0x80] sm:$0xff]
        %v1689 = vld [vmem:[%s269 + $0x88] sm:$0xff]
        %v1690 = vld [vmem:[%s269 + $0x90] sm:$0xff]
        %v1691 = vld [vmem:[%s269 + $0x98] sm:$0xff]
        %v1692 = vld [vmem:[%s269 + $0xa0] sm:$0xff]
        %v1693 = vld [vmem:[%s269 + $0xa8] sm:$0xff]
        %v1694 = vld [vmem:[%s269 + $0xb0] sm:$0xff]
        %v1695 = vld [vmem:[%s269 + $0xb8] sm:$0xff]
        %v1696 = vld [vmem:[%s269 + $0xc0] sm:$0xff]
        %v1697 = vld [vmem:[%s269 + $0xc8] sm:$0xff]
        %v1698 = vld [vmem:[%s269 + $0xd0] sm:$0xff]
        %v1699 = vld [vmem:[%s269 + $0xd8] sm:$0xff]
        %v1700 = vld [vmem:[%s269 + $0xe0] sm:$0xff]
        %v1701 = vld [vmem:[%s269 + $0xe8] sm:$0xff]
        %v1702 = vld [vmem:[%s269 + $0xf0] sm:$0xff]
        %v1703 = vld [vmem:[%s269 + $0xf8] sm:$0xff]
        %v1704 = vmul.f32 %v1584, %v1672
        %v1705 = vmul.f32 %v1585, %v1673
        %v1706 = vmul.f32 %v1586, %v1674
        %v1707 = vmul.f32 %v1587, %v1675
        %v1708 = vmul.f32 %v1588, %v1676
        %v1709 = vmul.f32 %v1589, %v1677
        %v1710 = vmul.f32 %v1590, %v1678
        %v1711 = vmul.f32 %v1591, %v1679
        %v1712 = vmul.f32 %v1592, %v1680
        %v1713 = vmul.f32 %v1593, %v1681
        %v1714 = vmul.f32 %v1594, %v1682
        %v1715 = vmul.f32 %v1595, %v1683
        %v1716 = vmul.f32 %v1596, %v1684
        %v1717 = vmul.f32 %v1597, %v1685
        %v1718 = vmul.f32 %v1598, %v1686
        %v1719 = vmul.f32 %v1599, %v1687
        %v1720 = vmul.f32 %v1600, %v1688
        %v1721 = vmul.f32 %v1601, %v1689
        %v1722 = vmul.f32 %v1602, %v1690
        %v1723 = vmul.f32 %v1603, %v1691
        %v1724 = vmul.f32 %v1604, %v1692
        %v1725 = vmul.f32 %v1605, %v1693
        %v1726 = vmul.f32 %v1606, %v1694
        %v1727 = vmul.f32 %v1607, %v1695
        %v1728 = vmul.f32 %v1608, %v1696
        %v1729 = vmul.f32 %v1609, %v1697
        %v1730 = vmul.f32 %v1610, %v1698
        %v1731 = vmul.f32 %v1611, %v1699
        %v1732 = vmul.f32 %v1612, %v1700
        %v1733 = vmul.f32 %v1613, %v1701
        %v1734 = vmul.f32 %v1614, %v1702
        %v1735 = vmul.f32 %v1615, %v1703
        %s1736 = scalar_lea.vmem [#allocation2], 24
        %1737 = vst.msk [vmem:[%s1736 + $0x1] sm:$0xff] %vm1616, %v1704
        %1738 = vst.msk [vmem:[%s1736 + $0x9] sm:$0xff] %vm1616, %v1705
        %1739 = vst.msk [vmem:[%s1736 + $0x19] sm:$0xff] %vm1616, %v1706
        %1740 = vst.msk [vmem:[%s1736 + $0x21] sm:$0xff] %vm1616, %v1707
        %1741 = vst.msk [vmem:[%s1736 + $0x31] sm:$0xff] %vm1616, %v1708
        %1742 = vst.msk [vmem:[%s1736 + $0x39] sm:$0xff] %vm1616, %v1709
        %1743 = vst.msk [vmem:[%s1736 + $0x49] sm:$0xff] %vm1616, %v1710
        %1744 = vst.msk [vmem:[%s1736 + $0x51] sm:$0xff] %vm1616, %v1711
        %1745 = vst.msk [vmem:[%s1736 + $0x61] sm:$0xff] %vm1616, %v1712
        %1746 = vst.msk [vmem:[%s1736 + $0x69] sm:$0xff] %vm1616, %v1713
        %1747 = vst.msk [vmem:[%s1736 + $0x79] sm:$0xff] %vm1616, %v1714
        %1748 = vst.msk [vmem:[%s1736 + $0x81] sm:$0xff] %vm1616, %v1715
        %1749 = vst.msk [vmem:[%s1736 + $0x91] sm:$0xff] %vm1616, %v1716
        %1750 = vst.msk [vmem:[%s1736 + $0x99] sm:$0xff] %vm1616, %v1717
        %1751 = vst.msk [vmem:[%s1736 + $0xa9] sm:$0xff] %vm1616, %v1718
        %1752 = vst.msk [vmem:[%s1736 + $0xb1] sm:$0xff] %vm1616, %v1719
        %1753 = vst.msk [vmem:[%s1736 + $0xc1] sm:$0xff] %vm1616, %v1720
        %1754 = vst.msk [vmem:[%s1736 + $0xc9] sm:$0xff] %vm1616, %v1721
        %1755 = vst.msk [vmem:[%s1736 + $0xd9] sm:$0xff] %vm1616, %v1722
        %1756 = vst.msk [vmem:[%s1736 + $0xe1] sm:$0xff] %vm1616, %v1723
        %1757 = vst.msk [vmem:[%s1736 + $0xf1] sm:$0xff] %vm1616, %v1724
        %1758 = vst.msk [vmem:[%s1736 + $0xf9] sm:$0xff] %vm1616, %v1725
        %1759 = vst.msk [vmem:[%s1736 + $0x109] sm:$0xff] %vm1616, %v1726
        %1760 = vst.msk [vmem:[%s1736 + $0x111] sm:$0xff] %vm1616, %v1727
        %1761 = vst.msk [vmem:[%s1736 + $0x121] sm:$0xff] %vm1616, %v1728
        %1762 = vst.msk [vmem:[%s1736 + $0x129] sm:$0xff] %vm1616, %v1729
        %1763 = vst.msk [vmem:[%s1736 + $0x139] sm:$0xff] %vm1616, %v1730
        %1764 = vst.msk [vmem:[%s1736 + $0x141] sm:$0xff] %vm1616, %v1731
        %1765 = vst.msk [vmem:[%s1736 + $0x151] sm:$0xff] %vm1616, %v1732
        %1766 = vst.msk [vmem:[%s1736 + $0x159] sm:$0xff] %vm1616, %v1733
        %1767 = vst.msk [vmem:[%s1736 + $0x169] sm:$0xff] %vm1616, %v1734
        %1768 = vst.msk [vmem:[%s1736 + $0x171] sm:$0xff] %vm1616, %v1735
        %v1769 = vld [vmem:[#allocation2] sm:$0xff]
        %v1770 = vld [vmem:[#allocation2 + $0x8] sm:$0xff]
        %v1771 = vld [vmem:[#allocation2 + $0x18] sm:$0xff]
        %v1772 = vld [vmem:[#allocation2 + $0x20] sm:$0xff]
        %v1773 = vld [vmem:[#allocation2 + $0x30] sm:$0xff]
        %v1774 = vld [vmem:[#allocation2 + $0x38] sm:$0xff]
        %v1775 = vld [vmem:[#allocation2 + $0x48] sm:$0xff]
        %v1776 = vld [vmem:[#allocation2 + $0x50] sm:$0xff]
        %v1777 = vld [vmem:[#allocation2 + $0x60] sm:$0xff]
        %v1778 = vld [vmem:[#allocation2 + $0x68] sm:$0xff]
        %v1779 = vld [vmem:[#allocation2 + $0x78] sm:$0xff]
        %v1780 = vld [vmem:[#allocation2 + $0x80] sm:$0xff]
        %v1781 = vld [vmem:[#allocation2 + $0x90] sm:$0xff]
        %v1782 = vld [vmem:[#allocation2 + $0x98] sm:$0xff]
        %v1783 = vld [vmem:[#allocation2 + $0xa8] sm:$0xff]
        %v1784 = vld [vmem:[#allocation2 + $0xb0] sm:$0xff]
        %v1785 = vld [vmem:[#allocation2 + $0xc0] sm:$0xff]
        %v1786 = vld [vmem:[#allocation2 + $0xc8] sm:$0xff]
        %v1787 = vld [vmem:[#allocation2 + $0xd8] sm:$0xff]
        %v1788 = vld [vmem:[#allocation2 + $0xe0] sm:$0xff]
        %v1789 = vld [vmem:[#allocation2 + $0xf0] sm:$0xff]
        %v1790 = vld [vmem:[#allocation2 + $0xf8] sm:$0xff]
        %v1791 = vld [vmem:[#allocation2 + $0x108] sm:$0xff]
        %v1792 = vld [vmem:[#allocation2 + $0x110] sm:$0xff]
        %v1793 = vld [vmem:[#allocation2 + $0x120] sm:$0xff]
        %v1794 = vld [vmem:[#allocation2 + $0x128] sm:$0xff]
        %v1795 = vld [vmem:[#allocation2 + $0x138] sm:$0xff]
        %v1796 = vld [vmem:[#allocation2 + $0x140] sm:$0xff]
        %v1797 = vld [vmem:[#allocation2 + $0x150] sm:$0xff]
        %v1798 = vld [vmem:[#allocation2 + $0x158] sm:$0xff]
        %v1799 = vld [vmem:[#allocation2 + $0x168] sm:$0xff]
        %v1800 = vld [vmem:[#allocation2 + $0x170] sm:$0xff]
        %v1801 = vpack.c.bf16 %v1770, %v1769
        %v1802 = vpack.c.bf16 %v1772, %v1771
        %v1803 = vpack.c.bf16 %v1774, %v1773
        %v1804 = vpack.c.bf16 %v1776, %v1775
        %v1805 = vpack.c.bf16 %v1778, %v1777
        %v1806 = vpack.c.bf16 %v1780, %v1779
        %v1807 = vpack.c.bf16 %v1782, %v1781
        %v1808 = vpack.c.bf16 %v1784, %v1783
        %v1809 = vpack.c.bf16 %v1786, %v1785
        %v1810 = vpack.c.bf16 %v1788, %v1787
        %v1811 = vpack.c.bf16 %v1790, %v1789
        %v1812 = vpack.c.bf16 %v1792, %v1791
        %v1813 = vpack.c.bf16 %v1794, %v1793
        %v1814 = vpack.c.bf16 %v1796, %v1795
        %v1815 = vpack.c.bf16 %v1798, %v1797
        %v1816 = vpack.c.bf16 %v1800, %v1799
        %v1817 = vld [vmem:[%s3] sm:$0xf]
        %v1818 = vld [vmem:[%s3 + $0x4] sm:$0xf]
        %v1819 = vld [vmem:[%s3 + $0x8] sm:$0xf]
        %v1820 = vld [vmem:[%s3 + $0xc] sm:$0xf]
        %v1821 = vld [vmem:[%s3 + $0x10] sm:$0xf]
        %v1822 = vld [vmem:[%s3 + $0x14] sm:$0xf]
        %v1823 = vld [vmem:[%s3 + $0x18] sm:$0xf]
        %v1824 = vld [vmem:[%s3 + $0x1c] sm:$0xf]
        %v1825 = vld [vmem:[#allocation2 + $0x1] sm:$0xff]
        %v1826 = vld [vmem:[#allocation2 + $0x9] sm:$0xff]
        %v1827 = vld [vmem:[#allocation2 + $0x19] sm:$0xff]
        %v1828 = vld [vmem:[#allocation2 + $0x21] sm:$0xff]
        %v1829 = vld [vmem:[#allocation2 + $0x31] sm:$0xff]
        %v1830 = vld [vmem:[#allocation2 + $0x39] sm:$0xff]
        %v1831 = vld [vmem:[#allocation2 + $0x49] sm:$0xff]
        %v1832 = vld [vmem:[#allocation2 + $0x51] sm:$0xff]
        %v1833 = vld [vmem:[#allocation2 + $0x61] sm:$0xff]
        %v1834 = vld [vmem:[#allocation2 + $0x69] sm:$0xff]
        %v1835 = vld [vmem:[#allocation2 + $0x79] sm:$0xff]
        %v1836 = vld [vmem:[#allocation2 + $0x81] sm:$0xff]
        %v1837 = vld [vmem:[#allocation2 + $0x91] sm:$0xff]
        %v1838 = vld [vmem:[#allocation2 + $0x99] sm:$0xff]
        %v1839 = vld [vmem:[#allocation2 + $0xa9] sm:$0xff]
        %v1840 = vld [vmem:[#allocation2 + $0xb1] sm:$0xff]
        %v1841 = vld [vmem:[#allocation2 + $0xc1] sm:$0xff]
        %v1842 = vld [vmem:[#allocation2 + $0xc9] sm:$0xff]
        %v1843 = vld [vmem:[#allocation2 + $0xd9] sm:$0xff]
        %v1844 = vld [vmem:[#allocation2 + $0xe1] sm:$0xff]
        %v1845 = vld [vmem:[#allocation2 + $0xf1] sm:$0xff]
        %v1846 = vld [vmem:[#allocation2 + $0xf9] sm:$0xff]
        %v1847 = vld [vmem:[#allocation2 + $0x109] sm:$0xff]
        %v1848 = vld [vmem:[#allocation2 + $0x111] sm:$0xff]
        %v1849 = vld [vmem:[#allocation2 + $0x121] sm:$0xff]
        %v1850 = vld [vmem:[#allocation2 + $0x129] sm:$0xff]
        %v1851 = vld [vmem:[#allocation2 + $0x139] sm:$0xff]
        %v1852 = vld [vmem:[#allocation2 + $0x141] sm:$0xff]
        %v1853 = vld [vmem:[#allocation2 + $0x151] sm:$0xff]
        %v1854 = vld [vmem:[#allocation2 + $0x159] sm:$0xff]
        %v1855 = vld [vmem:[#allocation2 + $0x169] sm:$0xff]
        %v1856 = vld [vmem:[#allocation2 + $0x171] sm:$0xff]
        %v1857 = vpack.c.bf16 %v1826, %v1825
        %v1858 = vpack.c.bf16 %v1828, %v1827
        %v1859 = vpack.c.bf16 %v1830, %v1829
        %v1860 = vpack.c.bf16 %v1832, %v1831
        %v1861 = vpack.c.bf16 %v1834, %v1833
        %v1862 = vpack.c.bf16 %v1836, %v1835
        %v1863 = vpack.c.bf16 %v1838, %v1837
        %v1864 = vpack.c.bf16 %v1840, %v1839
        %v1865 = vpack.c.bf16 %v1842, %v1841
        %v1866 = vpack.c.bf16 %v1844, %v1843
        %v1867 = vpack.c.bf16 %v1846, %v1845
        %v1868 = vpack.c.bf16 %v1848, %v1847
        %v1869 = vpack.c.bf16 %v1850, %v1849
        %v1870 = vpack.c.bf16 %v1852, %v1851
        %v1871 = vpack.c.bf16 %v1854, %v1853
        %v1872 = vpack.c.bf16 %v1856, %v1855
        %s1873 = scalar_lea.vmem %s3, 32
        %v1874 = vld [vmem:[%s1873] sm:$0xf]
        %v1875 = vld [vmem:[%s1873 + $0x4] sm:$0xf]
        %v1876 = vld [vmem:[%s1873 + $0x8] sm:$0xf]
        %v1877 = vld [vmem:[%s1873 + $0xc] sm:$0xf]
        %v1878 = vld [vmem:[%s1873 + $0x10] sm:$0xf]
        %v1879 = vld [vmem:[%s1873 + $0x14] sm:$0xf]
        %v1880 = vld [vmem:[%s1873 + $0x18] sm:$0xf]
        %v1881 = vld [vmem:[%s1873 + $0x1c] sm:$0xf]
        %v1890 = vunpack.c.l.b16 %v1874
        %v1891 = vunpack.c.l.b16 %v1875
        %v1892 = vunpack.c.l.b16 %v1876
        %v1893 = vunpack.c.l.b16 %v1877
        %v1894 = vunpack.c.l.b16 %v1878
        %v1895 = vunpack.c.l.b16 %v1879
        %v1896 = vunpack.c.l.b16 %v1880
        %v1897 = vunpack.c.l.b16 %v1881
        %v1898 = vpack.c.b16 %v1891, %v1890
        %v1899 = vpack.c.b16 %v1893, %v1892
        %v1900 = vpack.c.b16 %v1895, %v1894
        %v1901 = vpack.c.b16 %v1897, %v1896
        %v1907 = vsel %vm1616, %v1857, 0
        %v1910 = vsel %vm1616, %v1858, 0
        %v1913 = vsel %vm1616, %v1859, 0
        %v1916 = vsel %vm1616, %v1860, 0
        %v1919 = vsel %vm1616, %v1861, 0
        %v1922 = vsel %vm1616, %v1862, 0
        %v1925 = vsel %vm1616, %v1863, 0
        %v1928 = vsel %vm1616, %v1864, 0
        %v1931 = vsel %vm1616, %v1865, 0
        %v1934 = vsel %vm1616, %v1866, 0
        %v1937 = vsel %vm1616, %v1867, 0
        %v1940 = vsel %vm1616, %v1868, 0
        %v1943 = vsel %vm1616, %v1869, 0
        %v1946 = vsel %vm1616, %v1870, 0
        %v1949 = vsel %vm1616, %v1871, 0
        %v1952 = vsel %vm1616, %v1872, 0
        %1954 = vmatprep.subr.bf16.mxu0 0
        %1955 = vmatpush1.bf16.msra.mxu0 %v1898
        %1956 = vmatprep.subr.bf16.mxu0 0
        %1957 = vmatpush1.bf16.msra.mxu0 %v1899
        %1958 = vmatprep.subr.bf16.mxu0 0
        %1959 = vmatpush1.bf16.msra.mxu0 %v1900
        %1960 = vmatprep.subr.bf16.mxu0 0
        %1961 = vmatpush1.bf16.msra.mxu0 %v1901
        %1962 = vmatprep.subr.bf16.mxu0 0
        %1963 = vmatpush1.bf16.msra.mxu0 0
        %1964 = vmatprep.subr.bf16.mxu0 0
        %1965 = vmatpush1.bf16.msra.mxu0 0
        %1966 = vmatprep.subr.bf16.mxu0 0
        %1967 = vmatpush1.bf16.msra.mxu0 0
        %1968 = vmatprep.subr.bf16.mxu0 0
        %1969 = vmatpush1.bf16.msra.mxu0 0
        %1970 = vmatprep.subr.bf16.mxu0 0
        %1971 = vmatpush1.bf16.msra.mxu0 0
        %1972 = vmatprep.subr.bf16.mxu0 0
        %1973 = vmatpush1.bf16.msra.mxu0 0
        %1974 = vmatprep.subr.bf16.mxu0 0
        %1975 = vmatpush1.bf16.msra.mxu0 0
        %1976 = vmatprep.subr.bf16.mxu0 0
        %1977 = vmatpush1.bf16.msra.mxu0 0
        %1978 = vmatprep.subr.bf16.mxu0 0
        %1979 = vmatpush1.bf16.msra.mxu0 0
        %1980 = vmatprep.subr.bf16.mxu0 0
        %1981 = vmatpush1.bf16.msra.mxu0 0
        %1982 = vmatprep.subr.bf16.mxu0 0
        %1983 = vmatpush1.bf16.msra.mxu0 0
        %1984 = vmatprep.subr.bf16.mxu0 0
        %1985 = vmatpush1.bf16.msra.mxu0 0
        %1986 = vmatprep.mubr.bf16.mxu0 0
        %1987 = vmatmul.mubr.bf16.gmra.mrb[0].mxu0 %v1907
        %v1988 = vpop.f32.mrb[0].mxu0
        %v1989 = vadd.f32 0.0, %v1988
        %v1990 = vpop.f32.mrb[0].mxu0
        %v1991 = vpop.f32.mrb[0].mxu0
        %v1992 = vadd.f32 0.0, %v1991
        %v1993 = vpop.f32.mrb[0].mxu0
        %1994 = vmatprep.mubr.bf16.mxu0 0
        %1995 = vmatmul.mubr.bf16.gmra.mrb[0].mxu0 %v1910
        %v1996 = vpop.f32.mrb[0].mxu0
        %v1997 = vadd.f32 0.0, %v1996
        %v1998 = vpop.f32.mrb[0].mxu0
        %v1999 = vpop.f32.mrb[0].mxu0
        %v2000 = vadd.f32 0.0, %v1999
        %v2001 = vpop.f32.mrb[0].mxu0
        %2002 = vmatprep.mubr.bf16.mxu0 0
        %2003 = vmatmul.mubr.bf16.gmra.mrb[0].mxu0 %v1913
        %v2004 = vpop.f32.mrb[0].mxu0
        %v2005 = vadd.f32 0.0, %v2004
        %v2006 = vpop.f32.mrb[0].mxu0
        %v2007 = vpop.f32.mrb[0].mxu0
        %v2008 = vadd.f32 0.0, %v2007
        %v2009 = vpop.f32.mrb[0].mxu0
        %2010 = vmatprep.mubr.bf16.mxu0 0
        %2011 = vmatmul.mubr.bf16.gmra.mrb[0].mxu0 %v1916
        %v2012 = vpop.f32.mrb[0].mxu0
        %v2013 = vadd.f32 0.0, %v2012
        %v2014 = vpop.f32.mrb[0].mxu0
        %v2015 = vpop.f32.mrb[0].mxu0
        %v2016 = vadd.f32 0.0, %v2015
        %v2017 = vpop.f32.mrb[0].mxu0
        %2018 = vmatprep.mubr.bf16.mxu0 0
        %2019 = vmatmul.mubr.bf16.gmra.mrb[0].mxu0 %v1919
        %v2020 = vpop.f32.mrb[0].mxu0
        %v2021 = vadd.f32 0.0, %v2020
        %v2022 = vpop.f32.mrb[0].mxu0
        %v2023 = vpop.f32.mrb[0].mxu0
        %v2024 = vadd.f32 0.0, %v2023
        %v2025 = vpop.f32.mrb[0].mxu0
        %2026 = vmatprep.mubr.bf16.mxu0 0
        %2027 = vmatmul.mubr.bf16.gmra.mrb[0].mxu0 %v1922
        %v2028 = vpop.f32.mrb[0].mxu0
        %v2029 = vadd.f32 0.0, %v2028
        %v2030 = vpop.f32.mrb[0].mxu0
        %v2031 = vpop.f32.mrb[0].mxu0
        %v2032 = vadd.f32 0.0, %v2031
        %v2033 = vpop.f32.mrb[0].mxu0
        %2034 = vmatprep.mubr.bf16.mxu0 0
        %2035 = vmatmul.mubr.bf16.gmra.mrb[0].mxu0 %v1925
        %v2036 = vpop.f32.mrb[0].mxu0
        %v2037 = vadd.f32 0.0, %v2036
        %v2038 = vpop.f32.mrb[0].mxu0
        %v2039 = vpop.f32.mrb[0].mxu0
        %v2040 = vadd.f32 0.0, %v2039
        %v2041 = vpop.f32.mrb[0].mxu0
        %2042 = vmatprep.mubr.bf16.mxu0 0
        %2043 = vmatmul.mubr.bf16.gmra.mrb[0].mxu0 %v1928
        %v2044 = vpop.f32.mrb[0].mxu0
        %v2045 = vadd.f32 0.0, %v2044
        %v2046 = vpop.f32.mrb[0].mxu0
        %v2047 = vpop.f32.mrb[0].mxu0
        %v2048 = vadd.f32 0.0, %v2047
        %v2049 = vpop.f32.mrb[0].mxu0
        %2050 = vmatprep.mubr.bf16.mxu0 0
        %2051 = vmatmul.mubr.bf16.gmra.mrb[0].mxu0 %v1931
        %v2052 = vpop.f32.mrb[0].mxu0
        %v2053 = vadd.f32 0.0, %v2052
        %v2054 = vpop.f32.mrb[0].mxu0
        %v2055 = vpop.f32.mrb[0].mxu0
        %v2056 = vadd.f32 0.0, %v2055
        %v2057 = vpop.f32.mrb[0].mxu0
        %2058 = vmatprep.mubr.bf16.mxu0 0
        %2059 = vmatmul.mubr.bf16.gmra.mrb[0].mxu0 %v1934
        %v2060 = vpop.f32.mrb[0].mxu0
        %v2061 = vadd.f32 0.0, %v2060
        %v2062 = vpop.f32.mrb[0].mxu0
        %v2063 = vpop.f32.mrb[0].mxu0
        %v2064 = vadd.f32 0.0, %v2063
        %v2065 = vpop.f32.mrb[0].mxu0
        %2066 = vmatprep.mubr.bf16.mxu0 0
        %2067 = vmatmul.mubr.bf16.gmra.mrb[0].mxu0 %v1937
        %v2068 = vpop.f32.mrb[0].mxu0
        %v2069 = vadd.f32 0.0, %v2068
        %v2070 = vpop.f32.mrb[0].mxu0
        %v2071 = vpop.f32.mrb[0].mxu0
        %v2072 = vadd.f32 0.0, %v2071
        %v2073 = vpop.f32.mrb[0].mxu0
        %2074 = vmatprep.mubr.bf16.mxu0 0
        %2075 = vmatmul.mubr.bf16.gmra.mrb[0].mxu0 %v1940
        %v2076 = vpop.f32.mrb[0].mxu0
        %v2077 = vadd.f32 0.0, %v2076
        %v2078 = vpop.f32.mrb[0].mxu0
        %v2079 = vpop.f32.mrb[0].mxu0
        %v2080 = vadd.f32 0.0, %v2079
        %v2081 = vpop.f32.mrb[0].mxu0
        %2082 = vmatprep.mubr.bf16.mxu0 0
        %2083 = vmatmul.mubr.bf16.gmra.mrb[0].mxu0 %v1943
        %v2084 = vpop.f32.mrb[0].mxu0
        %v2085 = vadd.f32 0.0, %v2084
        %v2086 = vpop.f32.mrb[0].mxu0
        %v2087 = vpop.f32.mrb[0].mxu0
        %v2088 = vadd.f32 0.0, %v2087
        %v2089 = vpop.f32.mrb[0].mxu0
        %2090 = vmatprep.mubr.bf16.mxu0 0
        %2091 = vmatmul.mubr.bf16.gmra.mrb[0].mxu0 %v1946
        %v2092 = vpop.f32.mrb[0].mxu0
        %v2093 = vadd.f32 0.0, %v2092
        %v2094 = vpop.f32.mrb[0].mxu0
        %v2095 = vpop.f32.mrb[0].mxu0
        %v2096 = vadd.f32 0.0, %v2095
        %v2097 = vpop.f32.mrb[0].mxu0
        %2098 = vmatprep.mubr.bf16.mxu0 0
        %2099 = vmatmul.mubr.bf16.gmra.mrb[0].mxu0 %v1949
        %v2100 = vpop.f32.mrb[0].mxu0
        %v2101 = vadd.f32 0.0, %v2100
        %v2102 = vpop.f32.mrb[0].mxu0
        %v2103 = vpop.f32.mrb[0].mxu0
        %v2104 = vadd.f32 0.0, %v2103
        %v2105 = vpop.f32.mrb[0].mxu0
        %2106 = vmatprep.mubr.bf16.mxu0 0
        %2107 = vmatmul.mubr.bf16.gmra.mrb[0].mxu0 %v1952
        %v2108 = vpop.f32.mrb[0].mxu0
        %v2109 = vadd.f32 0.0, %v2108
        %v2110 = vpop.f32.mrb[0].mxu0
        %v2111 = vpop.f32.mrb[0].mxu0
        %v2112 = vadd.f32 0.0, %v2111
        %v2113 = vpop.f32.mrb[0].mxu0
        %2114 = vdwg.mxu0
        %v2123 = vunpack.c.l.b16 %v1817
        %v2124 = vunpack.c.l.b16 %v1818
        %v2125 = vunpack.c.l.b16 %v1819
        %v2126 = vunpack.c.l.b16 %v1820
        %v2127 = vunpack.c.l.b16 %v1821
        %v2128 = vunpack.c.l.b16 %v1822
        %v2129 = vunpack.c.l.b16 %v1823
        %v2130 = vunpack.c.l.b16 %v1824
        %v2131 = vpack.c.b16 %v2124, %v2123
        %v2132 = vpack.c.b16 %v2126, %v2125
        %v2133 = vpack.c.b16 %v2128, %v2127
        %v2134 = vpack.c.b16 %v2130, %v2129
        %v2140 = vsel %vm1616, %v1801, 0
        %v2143 = vsel %vm1616, %v1802, 0
        %v2146 = vsel %vm1616, %v1803, 0
        %v2149 = vsel %vm1616, %v1804, 0
        %v2152 = vsel %vm1616, %v1805, 0
        %v2155 = vsel %vm1616, %v1806, 0
        %v2158 = vsel %vm1616, %v1807, 0
        %v2161 = vsel %vm1616, %v1808, 0
        %v2164 = vsel %vm1616, %v1809, 0
        %v2167 = vsel %vm1616, %v1810, 0
        %v2170 = vsel %vm1616, %v1811, 0
        %v2173 = vsel %vm1616, %v1812, 0
        %v2176 = vsel %vm1616, %v1813, 0
        %v2179 = vsel %vm1616, %v1814, 0
        %v2182 = vsel %vm1616, %v1815, 0
        %v2185 = vsel %vm1616, %v1816, 0
        %2187 = vmatprep.subr.bf16.mxu0 0
        %2188 = vmatpush1.bf16.msra.mxu0 %v2131
        %2189 = vmatprep.subr.bf16.mxu0 0
        %2190 = vmatpush1.bf16.msra.mxu0 %v2132
        %2191 = vmatprep.subr.bf16.mxu0 0
        %2192 = vmatpush1.bf16.msra.mxu0 %v2133
        %2193 = vmatprep.subr.bf16.mxu0 0
        %2194 = vmatpush1.bf16.msra.mxu0 %v2134
        %2195 = vmatprep.subr.bf16.mxu0 0
        %2196 = vmatpush1.bf16.msra.mxu0 0
        %2197 = vmatprep.subr.bf16.mxu0 0
        %2198 = vmatpush1.bf16.msra.mxu0 0
        %2199 = vmatprep.subr.bf16.mxu0 0
        %2200 = vmatpush1.bf16.msra.mxu0 0
        %2201 = vmatprep.subr.bf16.mxu0 0
        %2202 = vmatpush1.bf16.msra.mxu0 0
        %2203 = vmatprep.subr.bf16.mxu0 0
        %2204 = vmatpush1.bf16.msra.mxu0 0
        %2205 = vmatprep.subr.bf16.mxu0 0
        %2206 = vmatpush1.bf16.msra.mxu0 0
        %2207 = vmatprep.subr.bf16.mxu0 0
        %2208 = vmatpush1.bf16.msra.mxu0 0
        %2209 = vmatprep.subr.bf16.mxu0 0
        %2210 = vmatpush1.bf16.msra.mxu0 0
        %2211 = vmatprep.subr.bf16.mxu0 0
        %2212 = vmatpush1.bf16.msra.mxu0 0
        %2213 = vmatprep.subr.bf16.mxu0 0
        %2214 = vmatpush1.bf16.msra.mxu0 0
        %2215 = vmatprep.subr.bf16.mxu0 0
        %2216 = vmatpush1.bf16.msra.mxu0 0
        %2217 = vmatprep.subr.bf16.mxu0 0
        %2218 = vmatpush1.bf16.msra.mxu0 0
        %2219 = vmatprep.mubr.bf16.mxu0 0
        %2220 = vmatmul.mubr.bf16.gmra.mrb[0].mxu0 %v2140
        %v2221 = vpop.f32.mrb[0].mxu0
        %v2222 = vadd.f32 %v1989, %v2221
        %v2223 = vpop.f32.mrb[0].mxu0
        %v2224 = vpop.f32.mrb[0].mxu0
        %v2225 = vadd.f32 %v1992, %v2224
        %v2226 = vpop.f32.mrb[0].mxu0
        %2227 = vmatprep.mubr.bf16.mxu0 0
        %2228 = vmatmul.mubr.bf16.gmra.mrb[0].mxu0 %v2143
        %v2229 = vpop.f32.mrb[0].mxu0
        %v2230 = vadd.f32 %v1997, %v2229
        %v2231 = vpop.f32.mrb[0].mxu0
        %v2232 = vpop.f32.mrb[0].mxu0
        %v2233 = vadd.f32 %v2000, %v2232
        %v2234 = vpop.f32.mrb[0].mxu0
        %2235 = vmatprep.mubr.bf16.mxu0 0
        %2236 = vmatmul.mubr.bf16.gmra.mrb[0].mxu0 %v2146
        %v2237 = vpop.f32.mrb[0].mxu0
        %v2238 = vadd.f32 %v2005, %v2237
        %v2239 = vpop.f32.mrb[0].mxu0
        %v2240 = vpop.f32.mrb[0].mxu0
        %v2241 = vadd.f32 %v2008, %v2240
        %v2242 = vpop.f32.mrb[0].mxu0
        %2243 = vmatprep.mubr.bf16.mxu0 0
        %2244 = vmatmul.mubr.bf16.gmra.mrb[0].mxu0 %v2149
        %v2245 = vpop.f32.mrb[0].mxu0
        %v2246 = vadd.f32 %v2013, %v2245
        %v2247 = vpop.f32.mrb[0].mxu0
        %v2248 = vpop.f32.mrb[0].mxu0
        %v2249 = vadd.f32 %v2016, %v2248
        %v2250 = vpop.f32.mrb[0].mxu0
        %2251 = vmatprep.mubr.bf16.mxu0 0
        %2252 = vmatmul.mubr.bf16.gmra.mrb[0].mxu0 %v2152
        %v2253 = vpop.f32.mrb[0].mxu0
        %v2254 = vadd.f32 %v2021, %v2253
        %v2255 = vpop.f32.mrb[0].mxu0
        %v2256 = vpop.f32.mrb[0].mxu0
        %v2257 = vadd.f32 %v2024, %v2256
        %v2258 = vpop.f32.mrb[0].mxu0
        %2259 = vmatprep.mubr.bf16.mxu0 0
        %2260 = vmatmul.mubr.bf16.gmra.mrb[0].mxu0 %v2155
        %v2261 = vpop.f32.mrb[0].mxu0
        %v2262 = vadd.f32 %v2029, %v2261
        %v2263 = vpop.f32.mrb[0].mxu0
        %v2264 = vpop.f32.mrb[0].mxu0
        %v2265 = vadd.f32 %v2032, %v2264
        %v2266 = vpop.f32.mrb[0].mxu0
        %2267 = vmatprep.mubr.bf16.mxu0 0
        %2268 = vmatmul.mubr.bf16.gmra.mrb[0].mxu0 %v2158
        %v2269 = vpop.f32.mrb[0].mxu0
        %v2270 = vadd.f32 %v2037, %v2269
        %v2271 = vpop.f32.mrb[0].mxu0
        %v2272 = vpop.f32.mrb[0].mxu0
        %v2273 = vadd.f32 %v2040, %v2272
        %v2274 = vpop.f32.mrb[0].mxu0
        %2275 = vmatprep.mubr.bf16.mxu0 0
        %2276 = vmatmul.mubr.bf16.gmra.mrb[0].mxu0 %v2161
        %v2277 = vpop.f32.mrb[0].mxu0
        %v2278 = vadd.f32 %v2045, %v2277
        %v2279 = vpop.f32.mrb[0].mxu0
        %v2280 = vpop.f32.mrb[0].mxu0
        %v2281 = vadd.f32 %v2048, %v2280
        %v2282 = vpop.f32.mrb[0].mxu0
        %2283 = vmatprep.mubr.bf16.mxu0 0
        %2284 = vmatmul.mubr.bf16.gmra.mrb[0].mxu0 %v2164
        %v2285 = vpop.f32.mrb[0].mxu0
        %v2286 = vadd.f32 %v2053, %v2285
        %v2287 = vpop.f32.mrb[0].mxu0
        %v2288 = vpop.f32.mrb[0].mxu0
        %v2289 = vadd.f32 %v2056, %v2288
        %v2290 = vpop.f32.mrb[0].mxu0
        %2291 = vmatprep.mubr.bf16.mxu0 0
        %2292 = vmatmul.mubr.bf16.gmra.mrb[0].mxu0 %v2167
        %v2293 = vpop.f32.mrb[0].mxu0
        %v2294 = vadd.f32 %v2061, %v2293
        %v2295 = vpop.f32.mrb[0].mxu0
        %v2296 = vpop.f32.mrb[0].mxu0
        %v2297 = vadd.f32 %v2064, %v2296
        %v2298 = vpop.f32.mrb[0].mxu0
        %2299 = vmatprep.mubr.bf16.mxu0 0
        %2300 = vmatmul.mubr.bf16.gmra.mrb[0].mxu0 %v2170
        %v2301 = vpop.f32.mrb[0].mxu0
        %v2302 = vadd.f32 %v2069, %v2301
        %v2303 = vpop.f32.mrb[0].mxu0
        %v2304 = vpop.f32.mrb[0].mxu0
        %v2305 = vadd.f32 %v2072, %v2304
        %v2306 = vpop.f32.mrb[0].mxu0
        %2307 = vmatprep.mubr.bf16.mxu0 0
        %2308 = vmatmul.mubr.bf16.gmra.mrb[0].mxu0 %v2173
        %v2309 = vpop.f32.mrb[0].mxu0
        %v2310 = vadd.f32 %v2077, %v2309
        %v2311 = vpop.f32.mrb[0].mxu0
        %v2312 = vpop.f32.mrb[0].mxu0
        %v2313 = vadd.f32 %v2080, %v2312
        %v2314 = vpop.f32.mrb[0].mxu0
        %2315 = vmatprep.mubr.bf16.mxu0 0
        %2316 = vmatmul.mubr.bf16.gmra.mrb[0].mxu0 %v2176
        %v2317 = vpop.f32.mrb[0].mxu0
        %v2318 = vadd.f32 %v2085, %v2317
        %v2319 = vpop.f32.mrb[0].mxu0
        %v2320 = vpop.f32.mrb[0].mxu0
        %v2321 = vadd.f32 %v2088, %v2320
        %v2322 = vpop.f32.mrb[0].mxu0
        %2323 = vmatprep.mubr.bf16.mxu0 0
        %2324 = vmatmul.mubr.bf16.gmra.mrb[0].mxu0 %v2179
        %v2325 = vpop.f32.mrb[0].mxu0
        %v2326 = vadd.f32 %v2093, %v2325
        %v2327 = vpop.f32.mrb[0].mxu0
        %v2328 = vpop.f32.mrb[0].mxu0
        %v2329 = vadd.f32 %v2096, %v2328
        %v2330 = vpop.f32.mrb[0].mxu0
        %2331 = vmatprep.mubr.bf16.mxu0 0
        %2332 = vmatmul.mubr.bf16.gmra.mrb[0].mxu0 %v2182
        %v2333 = vpop.f32.mrb[0].mxu0
        %v2334 = vadd.f32 %v2101, %v2333
        %v2335 = vpop.f32.mrb[0].mxu0
        %v2336 = vpop.f32.mrb[0].mxu0
        %v2337 = vadd.f32 %v2104, %v2336
        %v2338 = vpop.f32.mrb[0].mxu0
        %2339 = vmatprep.mubr.bf16.mxu0 0
        %2340 = vmatmul.mubr.bf16.gmra.mrb[0].mxu0 %v2185
        %v2341 = vpop.f32.mrb[0].mxu0
        %v2342 = vadd.f32 %v2109, %v2341
        %v2343 = vpop.f32.mrb[0].mxu0
        %v2344 = vpop.f32.mrb[0].mxu0
        %v2345 = vadd.f32 %v2112, %v2344
        %v2346 = vpop.f32.mrb[0].mxu0
        %2347 = vdwg.mxu0
        %v2348 = vld [vmem:[#allocation2 + $0x2] sm:$0xff]
        %v2349 = vld [vmem:[#allocation2 + $0xa] sm:$0xff]
        %v2350 = vld [vmem:[#allocation2 + $0x1a] sm:$0xff]
        %v2351 = vld [vmem:[#allocation2 + $0x22] sm:$0xff]
        %v2352 = vld [vmem:[#allocation2 + $0x32] sm:$0xff]
        %v2353 = vld [vmem:[#allocation2 + $0x3a] sm:$0xff]
        %v2354 = vld [vmem:[#allocation2 + $0x4a] sm:$0xff]
        %v2355 = vld [vmem:[#allocation2 + $0x52] sm:$0xff]
        %v2356 = vld [vmem:[#allocation2 + $0x62] sm:$0xff]
        %v2357 = vld [vmem:[#allocation2 + $0x6a] sm:$0xff]
        %v2358 = vld [vmem:[#allocation2 + $0x7a] sm:$0xff]
        %v2359 = vld [vmem:[#allocation2 + $0x82] sm:$0xff]
        %v2360 = vld [vmem:[#allocation2 + $0x92] sm:$0xff]
        %v2361 = vld [vmem:[#allocation2 + $0x9a] sm:$0xff]
        %v2362 = vld [vmem:[#allocation2 + $0xaa] sm:$0xff]
        %v2363 = vld [vmem:[#allocation2 + $0xb2] sm:$0xff]
        %v2364 = vld [vmem:[#allocation2 + $0xc2] sm:$0xff]
        %v2365 = vld [vmem:[#allocation2 + $0xca] sm:$0xff]
        %v2366 = vld [vmem:[#allocation2 + $0xda] sm:$0xff]
        %v2367 = vld [vmem:[#allocation2 + $0xe2] sm:$0xff]
        %v2368 = vld [vmem:[#allocation2 + $0xf2] sm:$0xff]
        %v2369 = vld [vmem:[#allocation2 + $0xfa] sm:$0xff]
        %v2370 = vld [vmem:[#allocation2 + $0x10a] sm:$0xff]
        %v2371 = vld [vmem:[#allocation2 + $0x112] sm:$0xff]
        %v2372 = vld [vmem:[#allocation2 + $0x122] sm:$0xff]
        %v2373 = vld [vmem:[#allocation2 + $0x12a] sm:$0xff]
        %v2374 = vld [vmem:[#allocation2 + $0x13a] sm:$0xff]
        %v2375 = vld [vmem:[#allocation2 + $0x142] sm:$0xff]
        %v2376 = vld [vmem:[#allocation2 + $0x152] sm:$0xff]
        %v2377 = vld [vmem:[#allocation2 + $0x15a] sm:$0xff]
        %v2378 = vld [vmem:[#allocation2 + $0x16a] sm:$0xff]
        %v2379 = vld [vmem:[#allocation2 + $0x172] sm:$0xff]
        %v2380 = vpack.c.bf16 %v2349, %v2348
        %v2381 = vpack.c.bf16 %v2351, %v2350
        %v2382 = vpack.c.bf16 %v2353, %v2352
        %v2383 = vpack.c.bf16 %v2355, %v2354
        %v2384 = vpack.c.bf16 %v2357, %v2356
        %v2385 = vpack.c.bf16 %v2359, %v2358
        %v2386 = vpack.c.bf16 %v2361, %v2360
        %v2387 = vpack.c.bf16 %v2363, %v2362
        %v2388 = vpack.c.bf16 %v2365, %v2364
        %v2389 = vpack.c.bf16 %v2367, %v2366
        %v2390 = vpack.c.bf16 %v2369, %v2368
        %v2391 = vpack.c.bf16 %v2371, %v2370
        %v2392 = vpack.c.bf16 %v2373, %v2372
        %v2393 = vpack.c.bf16 %v2375, %v2374
        %v2394 = vpack.c.bf16 %v2377, %v2376
        %v2395 = vpack.c.bf16 %v2379, %v2378
        %s2396 = scalar_lea.vmem %s3, 64
        %v2397 = vld [vmem:[%s2396] sm:$0xf]
        %v2398 = vld [vmem:[%s2396 + $0x4] sm:$0xf]
        %v2399 = vld [vmem:[%s2396 + $0x8] sm:$0xf]
        %v2400 = vld [vmem:[%s2396 + $0xc] sm:$0xf]
        %v2401 = vld [vmem:[%s2396 + $0x10] sm:$0xf]
        %v2402 = vld [vmem:[%s2396 + $0x14] sm:$0xf]
        %v2403 = vld [vmem:[%s2396 + $0x18] sm:$0xf]
        %v2404 = vld [vmem:[%s2396 + $0x1c] sm:$0xf]
        %v2413 = vunpack.c.l.b16 %v2397
        %v2414 = vunpack.c.l.b16 %v2398
        %v2415 = vunpack.c.l.b16 %v2399
        %v2416 = vunpack.c.l.b16 %v2400
        %v2417 = vunpack.c.l.b16 %v2401
        %v2418 = vunpack.c.l.b16 %v2402
        %v2419 = vunpack.c.l.b16 %v2403
        %v2420 = vunpack.c.l.b16 %v2404
        %v2421 = vpack.c.b16 %v2414, %v2413
        %v2422 = vpack.c.b16 %v2416, %v2415
        %v2423 = vpack.c.b16 %v2418, %v2417
        %v2424 = vpack.c.b16 %v2420, %v2419
        %v2430 = vsel %vm1616, %v2380, 0
        %v2433 = vsel %vm1616, %v2381, 0
        %v2436 = vsel %vm1616, %v2382, 0
        %v2439 = vsel %vm1616, %v2383, 0
        %v2442 = vsel %vm1616, %v2384, 0
        %v2445 = vsel %vm1616, %v2385, 0
        %v2448 = vsel %vm1616, %v2386, 0
        %v2451 = vsel %vm1616, %v2387, 0
        %v2454 = vsel %vm1616, %v2388, 0
        %v2457 = vsel %vm1616, %v2389, 0
        %v2460 = vsel %vm1616, %v2390, 0
        %v2463 = vsel %vm1616, %v2391, 0
        %v2466 = vsel %vm1616, %v2392, 0
        %v2469 = vsel %vm1616, %v2393, 0
        %v2472 = vsel %vm1616, %v2394, 0
        %v2475 = vsel %vm1616, %v2395, 0
        %2477 = vmatprep.subr.bf16.mxu0 0
        %2478 = vmatpush1.bf16.msra.mxu0 %v2421
        %2479 = vmatprep.subr.bf16.mxu0 0
        %2480 = vmatpush1.bf16.msra.mxu0 %v2422
        %2481 = vmatprep.subr.bf16.mxu0 0
        %2482 = vmatpush1.bf16.msra.mxu0 %v2423
        %2483 = vmatprep.subr.bf16.mxu0 0
        %2484 = vmatpush1.bf16.msra.mxu0 %v2424
        %2485 = vmatprep.subr.bf16.mxu0 0
        %2486 = vmatpush1.bf16.msra.mxu0 0
        %2487 = vmatprep.subr.bf16.mxu0 0
        %2488 = vmatpush1.bf16.msra.mxu0 0
        %2489 = vmatprep.subr.bf16.mxu0 0
        %2490 = vmatpush1.bf16.msra.mxu0 0
        %2491 = vmatprep.subr.bf16.mxu0 0
        %2492 = vmatpush1.bf16.msra.mxu0 0
        %2493 = vmatprep.subr.bf16.mxu0 0
        %2494 = vmatpush1.bf16.msra.mxu0 0
        %2495 = vmatprep.subr.bf16.mxu0 0
        %2496 = vmatpush1.bf16.msra.mxu0 0
        %2497 = vmatprep.subr.bf16.mxu0 0
        %2498 = vmatpush1.bf16.msra.mxu0 0
        %2499 = vmatprep.subr.bf16.mxu0 0
        %2500 = vmatpush1.bf16.msra.mxu0 0
        %2501 = vmatprep.subr.bf16.mxu0 0
        %2502 = vmatpush1.bf16.msra.mxu0 0
        %2503 = vmatprep.subr.bf16.mxu0 0
        %2504 = vmatpush1.bf16.msra.mxu0 0
        %2505 = vmatprep.subr.bf16.mxu0 0
        %2506 = vmatpush1.bf16.msra.mxu0 0
        %2507 = vmatprep.subr.bf16.mxu0 0
        %2508 = vmatpush1.bf16.msra.mxu0 0
        %2509 = vmatprep.mubr.bf16.mxu0 0
        %2510 = vmatmul.mubr.bf16.gmra.mrb[0].mxu0 %v2430
        %v2511 = vpop.f32.mrb[0].mxu0
        %v2512 = vadd.f32 0.0, %v2511
        %v2513 = vpop.f32.mrb[0].mxu0
        %v2514 = vpop.f32.mrb[0].mxu0
        %v2515 = vadd.f32 0.0, %v2514
        %v2516 = vpop.f32.mrb[0].mxu0
        %2517 = vmatprep.mubr.bf16.mxu0 0
        %2518 = vmatmul.mubr.bf16.gmra.mrb[0].mxu0 %v2433
        %v2519 = vpop.f32.mrb[0].mxu0
        %v2520 = vadd.f32 0.0, %v2519
        %v2521 = vpop.f32.mrb[0].mxu0
        %v2522 = vpop.f32.mrb[0].mxu0
        %v2523 = vadd.f32 0.0, %v2522
        %v2524 = vpop.f32.mrb[0].mxu0
        %2525 = vmatprep.mubr.bf16.mxu0 0
        %2526 = vmatmul.mubr.bf16.gmra.mrb[0].mxu0 %v2436
        %v2527 = vpop.f32.mrb[0].mxu0
        %v2528 = vadd.f32 0.0, %v2527
        %v2529 = vpop.f32.mrb[0].mxu0
        %v2530 = vpop.f32.mrb[0].mxu0
        %v2531 = vadd.f32 0.0, %v2530
        %v2532 = vpop.f32.mrb[0].mxu0
        %2533 = vmatprep.mubr.bf16.mxu0 0
        %2534 = vmatmul.mubr.bf16.gmra.mrb[0].mxu0 %v2439
        %v2535 = vpop.f32.mrb[0].mxu0
        %v2536 = vadd.f32 0.0, %v2535
        %v2537 = vpop.f32.mrb[0].mxu0
        %v2538 = vpop.f32.mrb[0].mxu0
        %v2539 = vadd.f32 0.0, %v2538
        %v2540 = vpop.f32.mrb[0].mxu0
        %2541 = vmatprep.mubr.bf16.mxu0 0
        %2542 = vmatmul.mubr.bf16.gmra.mrb[0].mxu0 %v2442
        %v2543 = vpop.f32.mrb[0].mxu0
        %v2544 = vadd.f32 0.0, %v2543
        %v2545 = vpop.f32.mrb[0].mxu0
        %v2546 = vpop.f32.mrb[0].mxu0
        %v2547 = vadd.f32 0.0, %v2546
        %v2548 = vpop.f32.mrb[0].mxu0
        %2549 = vmatprep.mubr.bf16.mxu0 0
        %2550 = vmatmul.mubr.bf16.gmra.mrb[0].mxu0 %v2445
        %v2551 = vpop.f32.mrb[0].mxu0
        %v2552 = vadd.f32 0.0, %v2551
        %v2553 = vpop.f32.mrb[0].mxu0
        %v2554 = vpop.f32.mrb[0].mxu0
        %v2555 = vadd.f32 0.0, %v2554
        %v2556 = vpop.f32.mrb[0].mxu0
        %2557 = vmatprep.mubr.bf16.mxu0 0
        %2558 = vmatmul.mubr.bf16.gmra.mrb[0].mxu0 %v2448
        %v2559 = vpop.f32.mrb[0].mxu0
        %v2560 = vadd.f32 0.0, %v2559
        %v2561 = vpop.f32.mrb[0].mxu0
        %v2562 = vpop.f32.mrb[0].mxu0
        %v2563 = vadd.f32 0.0, %v2562
        %v2564 = vpop.f32.mrb[0].mxu0
        %2565 = vmatprep.mubr.bf16.mxu0 0
        %2566 = vmatmul.mubr.bf16.gmra.mrb[0].mxu0 %v2451
        %v2567 = vpop.f32.mrb[0].mxu0
        %v2568 = vadd.f32 0.0, %v2567
        %v2569 = vpop.f32.mrb[0].mxu0
        %v2570 = vpop.f32.mrb[0].mxu0
        %v2571 = vadd.f32 0.0, %v2570
        %v2572 = vpop.f32.mrb[0].mxu0
        %2573 = vmatprep.mubr.bf16.mxu0 0
        %2574 = vmatmul.mubr.bf16.gmra.mrb[0].mxu0 %v2454
        %v2575 = vpop.f32.mrb[0].mxu0
        %v2576 = vadd.f32 0.0, %v2575
        %v2577 = vpop.f32.mrb[0].mxu0
        %v2578 = vpop.f32.mrb[0].mxu0
        %v2579 = vadd.f32 0.0, %v2578
        %v2580 = vpop.f32.mrb[0].mxu0
        %2581 = vmatprep.mubr.bf16.mxu0 0
        %2582 = vmatmul.mubr.bf16.gmra.mrb[0].mxu0 %v2457
        %v2583 = vpop.f32.mrb[0].mxu0
        %v2584 = vadd.f32 0.0, %v2583
        %v2585 = vpop.f32.mrb[0].mxu0
        %v2586 = vpop.f32.mrb[0].mxu0
        %v2587 = vadd.f32 0.0, %v2586
        %v2588 = vpop.f32.mrb[0].mxu0
        %2589 = vmatprep.mubr.bf16.mxu0 0
        %2590 = vmatmul.mubr.bf16.gmra.mrb[0].mxu0 %v2460
        %v2591 = vpop.f32.mrb[0].mxu0
        %v2592 = vadd.f32 0.0, %v2591
        %v2593 = vpop.f32.mrb[0].mxu0
        %v2594 = vpop.f32.mrb[0].mxu0
        %v2595 = vadd.f32 0.0, %v2594
        %v2596 = vpop.f32.mrb[0].mxu0
        %2597 = vmatprep.mubr.bf16.mxu0 0
        %2598 = vmatmul.mubr.bf16.gmra.mrb[0].mxu0 %v2463
        %v2599 = vpop.f32.mrb[0].mxu0
        %v2600 = vadd.f32 0.0, %v2599
        %v2601 = vpop.f32.mrb[0].mxu0
        %v2602 = vpop.f32.mrb[0].mxu0
        %v2603 = vadd.f32 0.0, %v2602
        %v2604 = vpop.f32.mrb[0].mxu0
        %2605 = vmatprep.mubr.bf16.mxu0 0
        %2606 = vmatmul.mubr.bf16.gmra.mrb[0].mxu0 %v2466
        %v2607 = vpop.f32.mrb[0].mxu0
        %v2608 = vadd.f32 0.0, %v2607
        %v2609 = vpop.f32.mrb[0].mxu0
        %v2610 = vpop.f32.mrb[0].mxu0
        %v2611 = vadd.f32 0.0, %v2610
        %v2612 = vpop.f32.mrb[0].mxu0
        %2613 = vmatprep.mubr.bf16.mxu0 0
        %2614 = vmatmul.mubr.bf16.gmra.mrb[0].mxu0 %v2469
        %v2615 = vpop.f32.mrb[0].mxu0
        %v2616 = vadd.f32 0.0, %v2615
        %v2617 = vpop.f32.mrb[0].mxu0
        %v2618 = vpop.f32.mrb[0].mxu0
        %v2619 = vadd.f32 0.0, %v2618
        %v2620 = vpop.f32.mrb[0].mxu0
        %2621 = vmatprep.mubr.bf16.mxu0 0
        %2622 = vmatmul.mubr.bf16.gmra.mrb[0].mxu0 %v2472
        %v2623 = vpop.f32.mrb[0].mxu0
        %v2624 = vadd.f32 0.0, %v2623
        %v2625 = vpop.f32.mrb[0].mxu0
        %v2626 = vpop.f32.mrb[0].mxu0
        %v2627 = vadd.f32 0.0, %v2626
        %v2628 = vpop.f32.mrb[0].mxu0
        %2629 = vmatprep.mubr.bf16.mxu0 0
        %2630 = vmatmul.mubr.bf16.gmra.mrb[0].mxu0 %v2475
        %v2631 = vpop.f32.mrb[0].mxu0
        %v2632 = vadd.f32 0.0, %v2631
        %v2633 = vpop.f32.mrb[0].mxu0
        %v2634 = vpop.f32.mrb[0].mxu0
        %v2635 = vadd.f32 0.0, %v2634
        %v2636 = vpop.f32.mrb[0].mxu0
        %2637 = vdwg.mxu0
        %v2638 = vadd.f32 %v2222, %v2512
        %v2639 = vadd.f32 %v2225, %v2515
        %v2640 = vadd.f32 %v2230, %v2520
        %v2641 = vadd.f32 %v2233, %v2523
        %v2642 = vadd.f32 %v2238, %v2528
        %v2643 = vadd.f32 %v2241, %v2531
        %v2644 = vadd.f32 %v2246, %v2536
        %v2645 = vadd.f32 %v2249, %v2539
        %v2646 = vadd.f32 %v2254, %v2544
        %v2647 = vadd.f32 %v2257, %v2547
        %v2648 = vadd.f32 %v2262, %v2552
        %v2649 = vadd.f32 %v2265, %v2555
        %v2650 = vadd.f32 %v2270, %v2560
        %v2651 = vadd.f32 %v2273, %v2563
        %v2652 = vadd.f32 %v2278, %v2568
        %v2653 = vadd.f32 %v2281, %v2571
        %v2654 = vadd.f32 %v2286, %v2576
        %v2655 = vadd.f32 %v2289, %v2579
        %v2656 = vadd.f32 %v2294, %v2584
        %v2657 = vadd.f32 %v2297, %v2587
        %v2658 = vadd.f32 %v2302, %v2592
        %v2659 = vadd.f32 %v2305, %v2595
        %v2660 = vadd.f32 %v2310, %v2600
        %v2661 = vadd.f32 %v2313, %v2603
        %v2662 = vadd.f32 %v2318, %v2608
        %v2663 = vadd.f32 %v2321, %v2611
        %v2664 = vadd.f32 %v2326, %v2616
        %v2665 = vadd.f32 %v2329, %v2619
        %v2666 = vadd.f32 %v2334, %v2624
        %v2667 = vadd.f32 %v2337, %v2627
        %v2668 = vadd.f32 %v2342, %v2632
        %v2669 = vadd.f32 %v2345, %v2635
        %v2670 = vld [vmem:[%s1736] sm:$0xff]
        %v2671 = vld [vmem:[%s1736 + $0x8] sm:$0xff]
        %v2672 = vld [vmem:[%s1736 + $0x18] sm:$0xff]
        %v2673 = vld [vmem:[%s1736 + $0x20] sm:$0xff]
        %v2674 = vld [vmem:[%s1736 + $0x30] sm:$0xff]
        %v2675 = vld [vmem:[%s1736 + $0x38] sm:$0xff]
        %v2676 = vld [vmem:[%s1736 + $0x48] sm:$0xff]
        %v2677 = vld [vmem:[%s1736 + $0x50] sm:$0xff]
        %v2678 = vld [vmem:[%s1736 + $0x60] sm:$0xff]
        %v2679 = vld [vmem:[%s1736 + $0x68] sm:$0xff]
        %v2680 = vld [vmem:[%s1736 + $0x78] sm:$0xff]
        %v2681 = vld [vmem:[%s1736 + $0x80] sm:$0xff]
        %v2682 = vld [vmem:[%s1736 + $0x90] sm:$0xff]
        %v2683 = vld [vmem:[%s1736 + $0x98] sm:$0xff]
        %v2684 = vld [vmem:[%s1736 + $0xa8] sm:$0xff]
        %v2685 = vld [vmem:[%s1736 + $0xb0] sm:$0xff]
        %v2686 = vld [vmem:[%s1736 + $0xc0] sm:$0xff]
        %v2687 = vld [vmem:[%s1736 + $0xc8] sm:$0xff]
        %v2688 = vld [vmem:[%s1736 + $0xd8] sm:$0xff]
        %v2689 = vld [vmem:[%s1736 + $0xe0] sm:$0xff]
        %v2690 = vld [vmem:[%s1736 + $0xf0] sm:$0xff]
        %v2691 = vld [vmem:[%s1736 + $0xf8] sm:$0xff]
        %v2692 = vld [vmem:[%s1736 + $0x108] sm:$0xff]
        %v2693 = vld [vmem:[%s1736 + $0x110] sm:$0xff]
        %v2694 = vld [vmem:[%s1736 + $0x120] sm:$0xff]
        %v2695 = vld [vmem:[%s1736 + $0x128] sm:$0xff]
        %v2696 = vld [vmem:[%s1736 + $0x138] sm:$0xff]
        %v2697 = vld [vmem:[%s1736 + $0x140] sm:$0xff]
        %v2698 = vld [vmem:[%s1736 + $0x150] sm:$0xff]
        %v2699 = vld [vmem:[%s1736 + $0x158] sm:$0xff]
        %v2700 = vld [vmem:[%s1736 + $0x168] sm:$0xff]
        %v2701 = vld [vmem:[%s1736 + $0x170] sm:$0xff]
        %v2702 = vpack.c.bf16 %v2671, %v2670
        %v2703 = vpack.c.bf16 %v2673, %v2672
        %v2704 = vpack.c.bf16 %v2675, %v2674
        %v2705 = vpack.c.bf16 %v2677, %v2676
        %v2706 = vpack.c.bf16 %v2679, %v2678
        %v2707 = vpack.c.bf16 %v2681, %v2680
        %v2708 = vpack.c.bf16 %v2683, %v2682
        %v2709 = vpack.c.bf16 %v2685, %v2684
        %v2710 = vpack.c.bf16 %v2687, %v2686
        %v2711 = vpack.c.bf16 %v2689, %v2688
        %v2712 = vpack.c.bf16 %v2691, %v2690
        %v2713 = vpack.c.bf16 %v2693, %v2692
        %v2714 = vpack.c.bf16 %v2695, %v2694
        %v2715 = vpack.c.bf16 %v2697, %v2696
        %v2716 = vpack.c.bf16 %v2699, %v2698
        %v2717 = vpack.c.bf16 %v2701, %v2700
        %s2718 = scalar_lea.vmem %s3, 96
        %v2719 = vld [vmem:[%s2718] sm:$0xf]
        %v2720 = vld [vmem:[%s2718 + $0x4] sm:$0xf]
        %v2721 = vld [vmem:[%s2718 + $0x8] sm:$0xf]
        %v2722 = vld [vmem:[%s2718 + $0xc] sm:$0xf]
        %v2723 = vld [vmem:[%s2718 + $0x10] sm:$0xf]
        %v2724 = vld [vmem:[%s2718 + $0x14] sm:$0xf]
        %v2725 = vld [vmem:[%s2718 + $0x18] sm:$0xf]
        %v2726 = vld [vmem:[%s2718 + $0x1c] sm:$0xf]
        %v2735 = vunpack.c.l.b16 %v2719
        %v2736 = vunpack.c.l.b16 %v2720
        %v2737 = vunpack.c.l.b16 %v2721
        %v2738 = vunpack.c.l.b16 %v2722
        %v2739 = vunpack.c.l.b16 %v2723
        %v2740 = vunpack.c.l.b16 %v2724
        %v2741 = vunpack.c.l.b16 %v2725
        %v2742 = vunpack.c.l.b16 %v2726
        %v2743 = vpack.c.b16 %v2736, %v2735
        %v2744 = vpack.c.b16 %v2738, %v2737
        %v2745 = vpack.c.b16 %v2740, %v2739
        %v2746 = vpack.c.b16 %v2742, %v2741
        %v2752 = vsel %vm1616, %v2702, 0
        %v2755 = vsel %vm1616, %v2703, 0
        %v2758 = vsel %vm1616, %v2704, 0
        %v2761 = vsel %vm1616, %v2705, 0
        %v2764 = vsel %vm1616, %v2706, 0
        %v2767 = vsel %vm1616, %v2707, 0
        %v2770 = vsel %vm1616, %v2708, 0
        %v2773 = vsel %vm1616, %v2709, 0
        %v2776 = vsel %vm1616, %v2710, 0
        %v2779 = vsel %vm1616, %v2711, 0
        %v2782 = vsel %vm1616, %v2712, 0
        %v2785 = vsel %vm1616, %v2713, 0
        %v2788 = vsel %vm1616, %v2714, 0
        %v2791 = vsel %vm1616, %v2715, 0
        %v2794 = vsel %vm1616, %v2716, 0
        %v2797 = vsel %vm1616, %v2717, 0
        %2799 = vmatprep.subr.bf16.mxu0 0
        %2800 = vmatpush1.bf16.msra.mxu0 %v2743
        %2801 = vmatprep.subr.bf16.mxu0 0
        %2802 = vmatpush1.bf16.msra.mxu0 %v2744
        %2803 = vmatprep.subr.bf16.mxu0 0
        %2804 = vmatpush1.bf16.msra.mxu0 %v2745
        %2805 = vmatprep.subr.bf16.mxu0 0
        %2806 = vmatpush1.bf16.msra.mxu0 %v2746
        %2807 = vmatprep.subr.bf16.mxu0 0
        %2808 = vmatpush1.bf16.msra.mxu0 0
        %2809 = vmatprep.subr.bf16.mxu0 0
        %2810 = vmatpush1.bf16.msra.mxu0 0
        %2811 = vmatprep.subr.bf16.mxu0 0
        %2812 = vmatpush1.bf16.msra.mxu0 0
        %2813 = vmatprep.subr.bf16.mxu0 0
        %2814 = vmatpush1.bf16.msra.mxu0 0
        %2815 = vmatprep.subr.bf16.mxu0 0
        %2816 = vmatpush1.bf16.msra.mxu0 0
        %2817 = vmatprep.subr.bf16.mxu0 0
        %2818 = vmatpush1.bf16.msra.mxu0 0
        %2819 = vmatprep.subr.bf16.mxu0 0
        %2820 = vmatpush1.bf16.msra.mxu0 0
        %2821 = vmatprep.subr.bf16.mxu0 0
        %2822 = vmatpush1.bf16.msra.mxu0 0
        %2823 = vmatprep.subr.bf16.mxu0 0
        %2824 = vmatpush1.bf16.msra.mxu0 0
        %2825 = vmatprep.subr.bf16.mxu0 0
        %2826 = vmatpush1.bf16.msra.mxu0 0
        %2827 = vmatprep.subr.bf16.mxu0 0
        %2828 = vmatpush1.bf16.msra.mxu0 0
        %2829 = vmatprep.subr.bf16.mxu0 0
        %2830 = vmatpush1.bf16.msra.mxu0 0
        %2831 = vmatprep.mubr.bf16.mxu0 0
        %2832 = vmatmul.mubr.bf16.gmra.mrb[0].mxu0 %v2752
        %v2833 = vpop.f32.mrb[0].mxu0
        %v2834 = vadd.f32 0.0, %v2833
        %v2835 = vpop.f32.mrb[0].mxu0
        %v2836 = vpop.f32.mrb[0].mxu0
        %v2837 = vadd.f32 0.0, %v2836
        %v2838 = vpop.f32.mrb[0].mxu0
        %2839 = vmatprep.mubr.bf16.mxu0 0
        %2840 = vmatmul.mubr.bf16.gmra.mrb[0].mxu0 %v2755
        %v2841 = vpop.f32.mrb[0].mxu0
        %v2842 = vadd.f32 0.0, %v2841
        %v2843 = vpop.f32.mrb[0].mxu0
        %v2844 = vpop.f32.mrb[0].mxu0
        %v2845 = vadd.f32 0.0, %v2844
        %v2846 = vpop.f32.mrb[0].mxu0
        %2847 = vmatprep.mubr.bf16.mxu0 0
        %2848 = vmatmul.mubr.bf16.gmra.mrb[0].mxu0 %v2758
        %v2849 = vpop.f32.mrb[0].mxu0
        %v2850 = vadd.f32 0.0, %v2849
        %v2851 = vpop.f32.mrb[0].mxu0
        %v2852 = vpop.f32.mrb[0].mxu0
        %v2853 = vadd.f32 0.0, %v2852
        %v2854 = vpop.f32.mrb[0].mxu0
        %2855 = vmatprep.mubr.bf16.mxu0 0
        %2856 = vmatmul.mubr.bf16.gmra.mrb[0].mxu0 %v2761
        %v2857 = vpop.f32.mrb[0].mxu0
        %v2858 = vadd.f32 0.0, %v2857
        %v2859 = vpop.f32.mrb[0].mxu0
        %v2860 = vpop.f32.mrb[0].mxu0
        %v2861 = vadd.f32 0.0, %v2860
        %v2862 = vpop.f32.mrb[0].mxu0
        %2863 = vmatprep.mubr.bf16.mxu0 0
        %2864 = vmatmul.mubr.bf16.gmra.mrb[0].mxu0 %v2764
        %v2865 = vpop.f32.mrb[0].mxu0
        %v2866 = vadd.f32 0.0, %v2865
        %v2867 = vpop.f32.mrb[0].mxu0
        %v2868 = vpop.f32.mrb[0].mxu0
        %v2869 = vadd.f32 0.0, %v2868
        %v2870 = vpop.f32.mrb[0].mxu0
        %2871 = vmatprep.mubr.bf16.mxu0 0
        %2872 = vmatmul.mubr.bf16.gmra.mrb[0].mxu0 %v2767
        %v2873 = vpop.f32.mrb[0].mxu0
        %v2874 = vadd.f32 0.0, %v2873
        %v2875 = vpop.f32.mrb[0].mxu0
        %v2876 = vpop.f32.mrb[0].mxu0
        %v2877 = vadd.f32 0.0, %v2876
        %v2878 = vpop.f32.mrb[0].mxu0
        %2879 = vmatprep.mubr.bf16.mxu0 0
        %2880 = vmatmul.mubr.bf16.gmra.mrb[0].mxu0 %v2770
        %v2881 = vpop.f32.mrb[0].mxu0
        %v2882 = vadd.f32 0.0, %v2881
        %v2883 = vpop.f32.mrb[0].mxu0
        %v2884 = vpop.f32.mrb[0].mxu0
        %v2885 = vadd.f32 0.0, %v2884
        %v2886 = vpop.f32.mrb[0].mxu0
        %2887 = vmatprep.mubr.bf16.mxu0 0
        %2888 = vmatmul.mubr.bf16.gmra.mrb[0].mxu0 %v2773
        %v2889 = vpop.f32.mrb[0].mxu0
        %v2890 = vadd.f32 0.0, %v2889
        %v2891 = vpop.f32.mrb[0].mxu0
        %v2892 = vpop.f32.mrb[0].mxu0
        %v2893 = vadd.f32 0.0, %v2892
        %v2894 = vpop.f32.mrb[0].mxu0
        %2895 = vmatprep.mubr.bf16.mxu0 0
        %2896 = vmatmul.mubr.bf16.gmra.mrb[0].mxu0 %v2776
        %v2897 = vpop.f32.mrb[0].mxu0
        %v2898 = vadd.f32 0.0, %v2897
        %v2899 = vpop.f32.mrb[0].mxu0
        %v2900 = vpop.f32.mrb[0].mxu0
        %v2901 = vadd.f32 0.0, %v2900
        %v2902 = vpop.f32.mrb[0].mxu0
        %2903 = vmatprep.mubr.bf16.mxu0 0
        %2904 = vmatmul.mubr.bf16.gmra.mrb[0].mxu0 %v2779
        %v2905 = vpop.f32.mrb[0].mxu0
        %v2906 = vadd.f32 0.0, %v2905
        %v2907 = vpop.f32.mrb[0].mxu0
        %v2908 = vpop.f32.mrb[0].mxu0
        %v2909 = vadd.f32 0.0, %v2908
        %v2910 = vpop.f32.mrb[0].mxu0
        %2911 = vmatprep.mubr.bf16.mxu0 0
        %2912 = vmatmul.mubr.bf16.gmra.mrb[0].mxu0 %v2782
        %v2913 = vpop.f32.mrb[0].mxu0
        %v2914 = vadd.f32 0.0, %v2913
        %v2915 = vpop.f32.mrb[0].mxu0
        %v2916 = vpop.f32.mrb[0].mxu0
        %v2917 = vadd.f32 0.0, %v2916
        %v2918 = vpop.f32.mrb[0].mxu0
        %2919 = vmatprep.mubr.bf16.mxu0 0
        %2920 = vmatmul.mubr.bf16.gmra.mrb[0].mxu0 %v2785
        %v2921 = vpop.f32.mrb[0].mxu0
        %v2922 = vadd.f32 0.0, %v2921
        %v2923 = vpop.f32.mrb[0].mxu0
        %v2924 = vpop.f32.mrb[0].mxu0
        %v2925 = vadd.f32 0.0, %v2924
        %v2926 = vpop.f32.mrb[0].mxu0
        %2927 = vmatprep.mubr.bf16.mxu0 0
        %2928 = vmatmul.mubr.bf16.gmra.mrb[0].mxu0 %v2788
        %v2929 = vpop.f32.mrb[0].mxu0
        %v2930 = vadd.f32 0.0, %v2929
        %v2931 = vpop.f32.mrb[0].mxu0
        %v2932 = vpop.f32.mrb[0].mxu0
        %v2933 = vadd.f32 0.0, %v2932
        %v2934 = vpop.f32.mrb[0].mxu0
        %2935 = vmatprep.mubr.bf16.mxu0 0
        %2936 = vmatmul.mubr.bf16.gmra.mrb[0].mxu0 %v2791
        %v2937 = vpop.f32.mrb[0].mxu0
        %v2938 = vadd.f32 0.0, %v2937
        %v2939 = vpop.f32.mrb[0].mxu0
        %v2940 = vpop.f32.mrb[0].mxu0
        %v2941 = vadd.f32 0.0, %v2940
        %v2942 = vpop.f32.mrb[0].mxu0
        %2943 = vmatprep.mubr.bf16.mxu0 0
        %2944 = vmatmul.mubr.bf16.gmra.mrb[0].mxu0 %v2794
        %v2945 = vpop.f32.mrb[0].mxu0
        %v2946 = vadd.f32 0.0, %v2945
        %v2947 = vpop.f32.mrb[0].mxu0
        %v2948 = vpop.f32.mrb[0].mxu0
        %v2949 = vadd.f32 0.0, %v2948
        %v2950 = vpop.f32.mrb[0].mxu0
        %2951 = vmatprep.mubr.bf16.mxu0 0
        %2952 = vmatmul.mubr.bf16.gmra.mrb[0].mxu0 %v2797
        %v2953 = vpop.f32.mrb[0].mxu0
        %v2954 = vadd.f32 0.0, %v2953
        %v2955 = vpop.f32.mrb[0].mxu0
        %v2956 = vpop.f32.mrb[0].mxu0
        %v2957 = vadd.f32 0.0, %v2956
        %v2958 = vpop.f32.mrb[0].mxu0
        %2959 = vdwg.mxu0
        %v2960 = vadd.f32 %v2638, %v2834
        %v2961 = vadd.f32 %v2639, %v2837
        %v2962 = vadd.f32 %v2640, %v2842
        %v2963 = vadd.f32 %v2641, %v2845
        %v2964 = vadd.f32 %v2642, %v2850
        %v2965 = vadd.f32 %v2643, %v2853
        %v2966 = vadd.f32 %v2644, %v2858
        %v2967 = vadd.f32 %v2645, %v2861
        %v2968 = vadd.f32 %v2646, %v2866
        %v2969 = vadd.f32 %v2647, %v2869
        %v2970 = vadd.f32 %v2648, %v2874
        %v2971 = vadd.f32 %v2649, %v2877
        %v2972 = vadd.f32 %v2650, %v2882
        %v2973 = vadd.f32 %v2651, %v2885
        %v2974 = vadd.f32 %v2652, %v2890
        %v2975 = vadd.f32 %v2653, %v2893
        %v2976 = vadd.f32 %v2654, %v2898
        %v2977 = vadd.f32 %v2655, %v2901
        %v2978 = vadd.f32 %v2656, %v2906
        %v2979 = vadd.f32 %v2657, %v2909
        %v2980 = vadd.f32 %v2658, %v2914
        %v2981 = vadd.f32 %v2659, %v2917
        %v2982 = vadd.f32 %v2660, %v2922
        %v2983 = vadd.f32 %v2661, %v2925
        %v2984 = vadd.f32 %v2662, %v2930
        %v2985 = vadd.f32 %v2663, %v2933
        %v2986 = vadd.f32 %v2664, %v2938
        %v2987 = vadd.f32 %v2665, %v2941
        %v2988 = vadd.f32 %v2666, %v2946
        %v2989 = vadd.f32 %v2667, %v2949
        %v2990 = vadd.f32 %v2668, %v2954
        %v2991 = vadd.f32 %v2669, %v2957
        %v2992 = vld [vmem:[%s1736 + $0x1] sm:$0xff]
        %v2993 = vld [vmem:[%s1736 + $0x9] sm:$0xff]
        %v2994 = vld [vmem:[%s1736 + $0x19] sm:$0xff]
        %v2995 = vld [vmem:[%s1736 + $0x21] sm:$0xff]
        %v2996 = vld [vmem:[%s1736 + $0x31] sm:$0xff]
        %v2997 = vld [vmem:[%s1736 + $0x39] sm:$0xff]
        %v2998 = vld [vmem:[%s1736 + $0x49] sm:$0xff]
        %v2999 = vld [vmem:[%s1736 + $0x51] sm:$0xff]
        %v3000 = vld [vmem:[%s1736 + $0x61] sm:$0xff]
        %v3001 = vld [vmem:[%s1736 + $0x69] sm:$0xff]
        %v3002 = vld [vmem:[%s1736 + $0x79] sm:$0xff]
        %v3003 = vld [vmem:[%s1736 + $0x81] sm:$0xff]
        %v3004 = vld [vmem:[%s1736 + $0x91] sm:$0xff]
        %v3005 = vld [vmem:[%s1736 + $0x99] sm:$0xff]
        %v3006 = vld [vmem:[%s1736 + $0xa9] sm:$0xff]
        %v3007 = vld [vmem:[%s1736 + $0xb1] sm:$0xff]
        %v3008 = vld [vmem:[%s1736 + $0xc1] sm:$0xff]
        %v3009 = vld [vmem:[%s1736 + $0xc9] sm:$0xff]
        %v3010 = vld [vmem:[%s1736 + $0xd9] sm:$0xff]
        %v3011 = vld [vmem:[%s1736 + $0xe1] sm:$0xff]
        %v3012 = vld [vmem:[%s1736 + $0xf1] sm:$0xff]
        %v3013 = vld [vmem:[%s1736 + $0xf9] sm:$0xff]
        %v3014 = vld [vmem:[%s1736 + $0x109] sm:$0xff]
        %v3015 = vld [vmem:[%s1736 + $0x111] sm:$0xff]
        %v3016 = vld [vmem:[%s1736 + $0x121] sm:$0xff]
        %v3017 = vld [vmem:[%s1736 + $0x129] sm:$0xff]
        %v3018 = vld [vmem:[%s1736 + $0x139] sm:$0xff]
        %v3019 = vld [vmem:[%s1736 + $0x141] sm:$0xff]
        %v3020 = vld [vmem:[%s1736 + $0x151] sm:$0xff]
        %v3021 = vld [vmem:[%s1736 + $0x159] sm:$0xff]
        %v3022 = vld [vmem:[%s1736 + $0x169] sm:$0xff]
        %v3023 = vld [vmem:[%s1736 + $0x171] sm:$0xff]
        %v3024 = vpack.c.bf16 %v2993, %v2992
        %v3025 = vpack.c.bf16 %v2995, %v2994
        %v3026 = vpack.c.bf16 %v2997, %v2996
        %v3027 = vpack.c.bf16 %v2999, %v2998
        %v3028 = vpack.c.bf16 %v3001, %v3000
        %v3029 = vpack.c.bf16 %v3003, %v3002
        %v3030 = vpack.c.bf16 %v3005, %v3004
        %v3031 = vpack.c.bf16 %v3007, %v3006
        %v3032 = vpack.c.bf16 %v3009, %v3008
        %v3033 = vpack.c.bf16 %v3011, %v3010
        %v3034 = vpack.c.bf16 %v3013, %v3012
        %v3035 = vpack.c.bf16 %v3015, %v3014
        %v3036 = vpack.c.bf16 %v3017, %v3016
        %v3037 = vpack.c.bf16 %v3019, %v3018
        %v3038 = vpack.c.bf16 %v3021, %v3020
        %v3039 = vpack.c.bf16 %v3023, %v3022
        %s3040 = scalar_lea.vmem %s3, 128
        %v3041 = vld [vmem:[%s3040] sm:$0xf]
        %v3042 = vld [vmem:[%s3040 + $0x4] sm:$0xf]
        %v3043 = vld [vmem:[%s3040 + $0x8] sm:$0xf]
        %v3044 = vld [vmem:[%s3040 + $0xc] sm:$0xf]
        %v3045 = vld [vmem:[%s3040 + $0x10] sm:$0xf]
        %v3046 = vld [vmem:[%s3040 + $0x14] sm:$0xf]
        %v3047 = vld [vmem:[%s3040 + $0x18] sm:$0xf]
        %v3048 = vld [vmem:[%s3040 + $0x1c] sm:$0xf]
        %v3057 = vunpack.c.l.b16 %v3041
        %v3058 = vunpack.c.l.b16 %v3042
        %v3059 = vunpack.c.l.b16 %v3043
        %v3060 = vunpack.c.l.b16 %v3044
        %v3061 = vunpack.c.l.b16 %v3045
        %v3062 = vunpack.c.l.b16 %v3046
        %v3063 = vunpack.c.l.b16 %v3047
        %v3064 = vunpack.c.l.b16 %v3048
        %v3065 = vpack.c.b16 %v3058, %v3057
        %v3066 = vpack.c.b16 %v3060, %v3059
        %v3067 = vpack.c.b16 %v3062, %v3061
        %v3068 = vpack.c.b16 %v3064, %v3063
        %v3074 = vsel %vm1616, %v3024, 0
        %v3077 = vsel %vm1616, %v3025, 0
        %v3080 = vsel %vm1616, %v3026, 0
        %v3083 = vsel %vm1616, %v3027, 0
        %v3086 = vsel %vm1616, %v3028, 0
        %v3089 = vsel %vm1616, %v3029, 0
        %v3092 = vsel %vm1616, %v3030, 0
        %v3095 = vsel %vm1616, %v3031, 0
        %v3098 = vsel %vm1616, %v3032, 0
        %v3101 = vsel %vm1616, %v3033, 0
        %v3104 = vsel %vm1616, %v3034, 0
        %v3107 = vsel %vm1616, %v3035, 0
        %v3110 = vsel %vm1616, %v3036, 0
        %v3113 = vsel %vm1616, %v3037, 0
        %v3116 = vsel %vm1616, %v3038, 0
        %v3119 = vsel %vm1616, %v3039, 0
        %3121 = vmatprep.subr.bf16.mxu0 0
        %3122 = vmatpush1.bf16.msra.mxu0 %v3065
        %3123 = vmatprep.subr.bf16.mxu0 0
        %3124 = vmatpush1.bf16.msra.mxu0 %v3066
        %3125 = vmatprep.subr.bf16.mxu0 0
        %3126 = vmatpush1.bf16.msra.mxu0 %v3067
        %3127 = vmatprep.subr.bf16.mxu0 0
        %3128 = vmatpush1.bf16.msra.mxu0 %v3068
        %3129 = vmatprep.subr.bf16.mxu0 0
        %3130 = vmatpush1.bf16.msra.mxu0 0
        %3131 = vmatprep.subr.bf16.mxu0 0
        %3132 = vmatpush1.bf16.msra.mxu0 0
        %3133 = vmatprep.subr.bf16.mxu0 0
        %3134 = vmatpush1.bf16.msra.mxu0 0
        %3135 = vmatprep.subr.bf16.mxu0 0
        %3136 = vmatpush1.bf16.msra.mxu0 0
        %3137 = vmatprep.subr.bf16.mxu0 0
        %3138 = vmatpush1.bf16.msra.mxu0 0
        %3139 = vmatprep.subr.bf16.mxu0 0
        %3140 = vmatpush1.bf16.msra.mxu0 0
        %3141 = vmatprep.subr.bf16.mxu0 0
        %3142 = vmatpush1.bf16.msra.mxu0 0
        %3143 = vmatprep.subr.bf16.mxu0 0
        %3144 = vmatpush1.bf16.msra.mxu0 0
        %3145 = vmatprep.subr.bf16.mxu0 0
        %3146 = vmatpush1.bf16.msra.mxu0 0
        %3147 = vmatprep.subr.bf16.mxu0 0
        %3148 = vmatpush1.bf16.msra.mxu0 0
        %3149 = vmatprep.subr.bf16.mxu0 0
        %3150 = vmatpush1.bf16.msra.mxu0 0
        %3151 = vmatprep.subr.bf16.mxu0 0
        %3152 = vmatpush1.bf16.msra.mxu0 0
        %3153 = vmatprep.mubr.bf16.mxu0 0
        %3154 = vmatmul.mubr.bf16.gmra.mrb[0].mxu0 %v3074
        %v3155 = vpop.f32.mrb[0].mxu0
        %v3156 = vadd.f32 0.0, %v3155
        %v3157 = vpop.f32.mrb[0].mxu0
        %v3158 = vpop.f32.mrb[0].mxu0
        %v3159 = vadd.f32 0.0, %v3158
        %v3160 = vpop.f32.mrb[0].mxu0
        %3161 = vmatprep.mubr.bf16.mxu0 0
        %3162 = vmatmul.mubr.bf16.gmra.mrb[0].mxu0 %v3077
        %v3163 = vpop.f32.mrb[0].mxu0
        %v3164 = vadd.f32 0.0, %v3163
        %v3165 = vpop.f32.mrb[0].mxu0
        %v3166 = vpop.f32.mrb[0].mxu0
        %v3167 = vadd.f32 0.0, %v3166
        %v3168 = vpop.f32.mrb[0].mxu0
        %3169 = vmatprep.mubr.bf16.mxu0 0
        %3170 = vmatmul.mubr.bf16.gmra.mrb[0].mxu0 %v3080
        %v3171 = vpop.f32.mrb[0].mxu0
        %v3172 = vadd.f32 0.0, %v3171
        %v3173 = vpop.f32.mrb[0].mxu0
        %v3174 = vpop.f32.mrb[0].mxu0
        %v3175 = vadd.f32 0.0, %v3174
        %v3176 = vpop.f32.mrb[0].mxu0
        %3177 = vmatprep.mubr.bf16.mxu0 0
        %3178 = vmatmul.mubr.bf16.gmra.mrb[0].mxu0 %v3083
        %v3179 = vpop.f32.mrb[0].mxu0
        %v3180 = vadd.f32 0.0, %v3179
        %v3181 = vpop.f32.mrb[0].mxu0
        %v3182 = vpop.f32.mrb[0].mxu0
        %v3183 = vadd.f32 0.0, %v3182
        %v3184 = vpop.f32.mrb[0].mxu0
        %3185 = vmatprep.mubr.bf16.mxu0 0
        %3186 = vmatmul.mubr.bf16.gmra.mrb[0].mxu0 %v3086
        %v3187 = vpop.f32.mrb[0].mxu0
        %v3188 = vadd.f32 0.0, %v3187
        %v3189 = vpop.f32.mrb[0].mxu0
        %v3190 = vpop.f32.mrb[0].mxu0
        %v3191 = vadd.f32 0.0, %v3190
        %v3192 = vpop.f32.mrb[0].mxu0
        %3193 = vmatprep.mubr.bf16.mxu0 0
        %3194 = vmatmul.mubr.bf16.gmra.mrb[0].mxu0 %v3089
        %v3195 = vpop.f32.mrb[0].mxu0
        %v3196 = vadd.f32 0.0, %v3195
        %v3197 = vpop.f32.mrb[0].mxu0
        %v3198 = vpop.f32.mrb[0].mxu0
        %v3199 = vadd.f32 0.0, %v3198
        %v3200 = vpop.f32.mrb[0].mxu0
        %3201 = vmatprep.mubr.bf16.mxu0 0
        %3202 = vmatmul.mubr.bf16.gmra.mrb[0].mxu0 %v3092
        %v3203 = vpop.f32.mrb[0].mxu0
        %v3204 = vadd.f32 0.0, %v3203
        %v3205 = vpop.f32.mrb[0].mxu0
        %v3206 = vpop.f32.mrb[0].mxu0
        %v3207 = vadd.f32 0.0, %v3206
        %v3208 = vpop.f32.mrb[0].mxu0
        %3209 = vmatprep.mubr.bf16.mxu0 0
        %3210 = vmatmul.mubr.bf16.gmra.mrb[0].mxu0 %v3095
        %v3211 = vpop.f32.mrb[0].mxu0
        %v3212 = vadd.f32 0.0, %v3211
        %v3213 = vpop.f32.mrb[0].mxu0
        %v3214 = vpop.f32.mrb[0].mxu0
        %v3215 = vadd.f32 0.0, %v3214
        %v3216 = vpop.f32.mrb[0].mxu0
        %3217 = vmatprep.mubr.bf16.mxu0 0
        %3218 = vmatmul.mubr.bf16.gmra.mrb[0].mxu0 %v3098
        %v3219 = vpop.f32.mrb[0].mxu0
        %v3220 = vadd.f32 0.0, %v3219
        %v3221 = vpop.f32.mrb[0].mxu0
        %v3222 = vpop.f32.mrb[0].mxu0
        %v3223 = vadd.f32 0.0, %v3222
        %v3224 = vpop.f32.mrb[0].mxu0
        %3225 = vmatprep.mubr.bf16.mxu0 0
        %3226 = vmatmul.mubr.bf16.gmra.mrb[0].mxu0 %v3101
        %v3227 = vpop.f32.mrb[0].mxu0
        %v3228 = vadd.f32 0.0, %v3227
        %v3229 = vpop.f32.mrb[0].mxu0
        %v3230 = vpop.f32.mrb[0].mxu0
        %v3231 = vadd.f32 0.0, %v3230
        %v3232 = vpop.f32.mrb[0].mxu0
        %3233 = vmatprep.mubr.bf16.mxu0 0
        %3234 = vmatmul.mubr.bf16.gmra.mrb[0].mxu0 %v3104
        %v3235 = vpop.f32.mrb[0].mxu0
        %v3236 = vadd.f32 0.0, %v3235
        %v3237 = vpop.f32.mrb[0].mxu0
        %v3238 = vpop.f32.mrb[0].mxu0
        %v3239 = vadd.f32 0.0, %v3238
        %v3240 = vpop.f32.mrb[0].mxu0
        %3241 = vmatprep.mubr.bf16.mxu0 0
        %3242 = vmatmul.mubr.bf16.gmra.mrb[0].mxu0 %v3107
        %v3243 = vpop.f32.mrb[0].mxu0
        %v3244 = vadd.f32 0.0, %v3243
        %v3245 = vpop.f32.mrb[0].mxu0
        %v3246 = vpop.f32.mrb[0].mxu0
        %v3247 = vadd.f32 0.0, %v3246
        %v3248 = vpop.f32.mrb[0].mxu0
        %3249 = vmatprep.mubr.bf16.mxu0 0
        %3250 = vmatmul.mubr.bf16.gmra.mrb[0].mxu0 %v3110
        %v3251 = vpop.f32.mrb[0].mxu0
        %v3252 = vadd.f32 0.0, %v3251
        %v3253 = vpop.f32.mrb[0].mxu0
        %v3254 = vpop.f32.mrb[0].mxu0
        %v3255 = vadd.f32 0.0, %v3254
        %v3256 = vpop.f32.mrb[0].mxu0
        %3257 = vmatprep.mubr.bf16.mxu0 0
        %3258 = vmatmul.mubr.bf16.gmra.mrb[0].mxu0 %v3113
        %v3259 = vpop.f32.mrb[0].mxu0
        %v3260 = vadd.f32 0.0, %v3259
        %v3261 = vpop.f32.mrb[0].mxu0
        %v3262 = vpop.f32.mrb[0].mxu0
        %v3263 = vadd.f32 0.0, %v3262
        %v3264 = vpop.f32.mrb[0].mxu0
        %3265 = vmatprep.mubr.bf16.mxu0 0
        %3266 = vmatmul.mubr.bf16.gmra.mrb[0].mxu0 %v3116
        %v3267 = vpop.f32.mrb[0].mxu0
        %v3268 = vadd.f32 0.0, %v3267
        %v3269 = vpop.f32.mrb[0].mxu0
        %v3270 = vpop.f32.mrb[0].mxu0
        %v3271 = vadd.f32 0.0, %v3270
        %v3272 = vpop.f32.mrb[0].mxu0
        %3273 = vmatprep.mubr.bf16.mxu0 0
        %3274 = vmatmul.mubr.bf16.gmra.mrb[0].mxu0 %v3119
        %v3275 = vpop.f32.mrb[0].mxu0
        %v3276 = vadd.f32 0.0, %v3275
        %v3277 = vpop.f32.mrb[0].mxu0
        %v3278 = vpop.f32.mrb[0].mxu0
        %v3279 = vadd.f32 0.0, %v3278
        %v3280 = vpop.f32.mrb[0].mxu0
        %3281 = vdwg.mxu0
        %v3282 = vadd.f32 %v2960, %v3156
        %v3283 = vadd.f32 %v2961, %v3159
        %v3284 = vadd.f32 %v2962, %v3164
        %v3285 = vadd.f32 %v2963, %v3167
        %v3286 = vadd.f32 %v2964, %v3172
        %v3287 = vadd.f32 %v2965, %v3175
        %v3288 = vadd.f32 %v2966, %v3180
        %v3289 = vadd.f32 %v2967, %v3183
        %v3290 = vadd.f32 %v2968, %v3188
        %v3291 = vadd.f32 %v2969, %v3191
        %v3292 = vadd.f32 %v2970, %v3196
        %v3293 = vadd.f32 %v2971, %v3199
        %v3294 = vadd.f32 %v2972, %v3204
        %v3295 = vadd.f32 %v2973, %v3207
        %v3296 = vadd.f32 %v2974, %v3212
        %v3297 = vadd.f32 %v2975, %v3215
        %v3298 = vadd.f32 %v2976, %v3220
        %v3299 = vadd.f32 %v2977, %v3223
        %v3300 = vadd.f32 %v2978, %v3228
        %v3301 = vadd.f32 %v2979, %v3231
        %v3302 = vadd.f32 %v2980, %v3236
        %v3303 = vadd.f32 %v2981, %v3239
        %v3304 = vadd.f32 %v2982, %v3244
        %v3305 = vadd.f32 %v2983, %v3247
        %v3306 = vadd.f32 %v2984, %v3252
        %v3307 = vadd.f32 %v2985, %v3255
        %v3308 = vadd.f32 %v2986, %v3260
        %v3309 = vadd.f32 %v2987, %v3263
        %v3310 = vadd.f32 %v2988, %v3268
        %v3311 = vadd.f32 %v2989, %v3271
        %v3312 = vadd.f32 %v2990, %v3276
        %v3313 = vadd.f32 %v2991, %v3279
        %v3314 = vld [vmem:[%s1736 + $0x2] sm:$0xff]
        %v3315 = vld [vmem:[%s1736 + $0xa] sm:$0xff]
        %v3316 = vld [vmem:[%s1736 + $0x1a] sm:$0xff]
        %v3317 = vld [vmem:[%s1736 + $0x22] sm:$0xff]
        %v3318 = vld [vmem:[%s1736 + $0x32] sm:$0xff]
        %v3319 = vld [vmem:[%s1736 + $0x3a] sm:$0xff]
        %v3320 = vld [vmem:[%s1736 + $0x4a] sm:$0xff]
        %v3321 = vld [vmem:[%s1736 + $0x52] sm:$0xff]
        %v3322 = vld [vmem:[%s1736 + $0x62] sm:$0xff]
        %v3323 = vld [vmem:[%s1736 + $0x6a] sm:$0xff]
        %v3324 = vld [vmem:[%s1736 + $0x7a] sm:$0xff]
        %v3325 = vld [vmem:[%s1736 + $0x82] sm:$0xff]
        %v3326 = vld [vmem:[%s1736 + $0x92] sm:$0xff]
        %v3327 = vld [vmem:[%s1736 + $0x9a] sm:$0xff]
        %v3328 = vld [vmem:[%s1736 + $0xaa] sm:$0xff]
        %v3329 = vld [vmem:[%s1736 + $0xb2] sm:$0xff]
        %v3330 = vld [vmem:[%s1736 + $0xc2] sm:$0xff]
        %v3331 = vld [vmem:[%s1736 + $0xca] sm:$0xff]
        %v3332 = vld [vmem:[%s1736 + $0xda] sm:$0xff]
        %v3333 = vld [vmem:[%s1736 + $0xe2] sm:$0xff]
        %v3334 = vld [vmem:[%s1736 + $0xf2] sm:$0xff]
        %v3335 = vld [vmem:[%s1736 + $0xfa] sm:$0xff]
        %v3336 = vld [vmem:[%s1736 + $0x10a] sm:$0xff]
        %v3337 = vld [vmem:[%s1736 + $0x112] sm:$0xff]
        %v3338 = vld [vmem:[%s1736 + $0x122] sm:$0xff]
        %v3339 = vld [vmem:[%s1736 + $0x12a] sm:$0xff]
        %v3340 = vld [vmem:[%s1736 + $0x13a] sm:$0xff]
        %v3341 = vld [vmem:[%s1736 + $0x142] sm:$0xff]
        %v3342 = vld [vmem:[%s1736 + $0x152] sm:$0xff]
        %v3343 = vld [vmem:[%s1736 + $0x15a] sm:$0xff]
        %v3344 = vld [vmem:[%s1736 + $0x16a] sm:$0xff]
        %v3345 = vld [vmem:[%s1736 + $0x172] sm:$0xff]
        %v3346 = vpack.c.bf16 %v3315, %v3314
        %v3347 = vpack.c.bf16 %v3317, %v3316
        %v3348 = vpack.c.bf16 %v3319, %v3318
        %v3349 = vpack.c.bf16 %v3321, %v3320
        %v3350 = vpack.c.bf16 %v3323, %v3322
        %v3351 = vpack.c.bf16 %v3325, %v3324
        %v3352 = vpack.c.bf16 %v3327, %v3326
        %v3353 = vpack.c.bf16 %v3329, %v3328
        %v3354 = vpack.c.bf16 %v3331, %v3330
        %v3355 = vpack.c.bf16 %v3333, %v3332
        %v3356 = vpack.c.bf16 %v3335, %v3334
        %v3357 = vpack.c.bf16 %v3337, %v3336
        %v3358 = vpack.c.bf16 %v3339, %v3338
        %v3359 = vpack.c.bf16 %v3341, %v3340
        %v3360 = vpack.c.bf16 %v3343, %v3342
        %v3361 = vpack.c.bf16 %v3345, %v3344
        %s3362 = scalar_lea.vmem %s3, 160
        %v3363 = vld [vmem:[%s3362] sm:$0xf]
        %v3364 = vld [vmem:[%s3362 + $0x4] sm:$0xf]
        %v3365 = vld [vmem:[%s3362 + $0x8] sm:$0xf]
        %v3366 = vld [vmem:[%s3362 + $0xc] sm:$0xf]
        %v3367 = vld [vmem:[%s3362 + $0x10] sm:$0xf]
        %v3368 = vld [vmem:[%s3362 + $0x14] sm:$0xf]
        %v3369 = vld [vmem:[%s3362 + $0x18] sm:$0xf]
        %v3370 = vld [vmem:[%s3362 + $0x1c] sm:$0xf]
        %v3379 = vunpack.c.l.b16 %v3363
        %v3380 = vunpack.c.l.b16 %v3364
        %v3381 = vunpack.c.l.b16 %v3365
        %v3382 = vunpack.c.l.b16 %v3366
        %v3383 = vunpack.c.l.b16 %v3367
        %v3384 = vunpack.c.l.b16 %v3368
        %v3385 = vunpack.c.l.b16 %v3369
        %v3386 = vunpack.c.l.b16 %v3370
        %v3387 = vpack.c.b16 %v3380, %v3379
        %v3388 = vpack.c.b16 %v3382, %v3381
        %v3389 = vpack.c.b16 %v3384, %v3383
        %v3390 = vpack.c.b16 %v3386, %v3385
        %v3396 = vsel %vm1616, %v3346, 0
        %v3399 = vsel %vm1616, %v3347, 0
        %v3402 = vsel %vm1616, %v3348, 0
        %v3405 = vsel %vm1616, %v3349, 0
        %v3408 = vsel %vm1616, %v3350, 0
        %v3411 = vsel %vm1616, %v3351, 0
        %v3414 = vsel %vm1616, %v3352, 0
        %v3417 = vsel %vm1616, %v3353, 0
        %v3420 = vsel %vm1616, %v3354, 0
        %v3423 = vsel %vm1616, %v3355, 0
        %v3426 = vsel %vm1616, %v3356, 0
        %v3429 = vsel %vm1616, %v3357, 0
        %v3432 = vsel %vm1616, %v3358, 0
        %v3435 = vsel %vm1616, %v3359, 0
        %v3438 = vsel %vm1616, %v3360, 0
        %v3441 = vsel %vm1616, %v3361, 0
        %3443 = vmatprep.subr.bf16.mxu0 0
        %3444 = vmatpush1.bf16.msra.mxu0 %v3387
        %3445 = vmatprep.subr.bf16.mxu0 0
        %3446 = vmatpush1.bf16.msra.mxu0 %v3388
        %3447 = vmatprep.subr.bf16.mxu0 0
        %3448 = vmatpush1.bf16.msra.mxu0 %v3389
        %3449 = vmatprep.subr.bf16.mxu0 0
        %3450 = vmatpush1.bf16.msra.mxu0 %v3390
        %3451 = vmatprep.subr.bf16.mxu0 0
        %3452 = vmatpush1.bf16.msra.mxu0 0
        %3453 = vmatprep.subr.bf16.mxu0 0
        %3454 = vmatpush1.bf16.msra.mxu0 0
        %3455 = vmatprep.subr.bf16.mxu0 0
        %3456 = vmatpush1.bf16.msra.mxu0 0
        %3457 = vmatprep.subr.bf16.mxu0 0
        %3458 = vmatpush1.bf16.msra.mxu0 0
        %3459 = vmatprep.subr.bf16.mxu0 0
        %3460 = vmatpush1.bf16.msra.mxu0 0
        %3461 = vmatprep.subr.bf16.mxu0 0
        %3462 = vmatpush1.bf16.msra.mxu0 0
        %3463 = vmatprep.subr.bf16.mxu0 0
        %3464 = vmatpush1.bf16.msra.mxu0 0
        %3465 = vmatprep.subr.bf16.mxu0 0
        %3466 = vmatpush1.bf16.msra.mxu0 0
        %3467 = vmatprep.subr.bf16.mxu0 0
        %3468 = vmatpush1.bf16.msra.mxu0 0
        %3469 = vmatprep.subr.bf16.mxu0 0
        %3470 = vmatpush1.bf16.msra.mxu0 0
        %3471 = vmatprep.subr.bf16.mxu0 0
        %3472 = vmatpush1.bf16.msra.mxu0 0
        %3473 = vmatprep.subr.bf16.mxu0 0
        %3474 = vmatpush1.bf16.msra.mxu0 0
        %3475 = vmatprep.mubr.bf16.mxu0 0
        %3476 = vmatmul.mubr.bf16.gmra.mrb[0].mxu0 %v3396
        %v3477 = vpop.f32.mrb[0].mxu0
        %v3478 = vadd.f32 0.0, %v3477
        %v3479 = vpop.f32.mrb[0].mxu0
        %v3480 = vpop.f32.mrb[0].mxu0
        %v3481 = vadd.f32 0.0, %v3480
        %v3482 = vpop.f32.mrb[0].mxu0
        %3483 = vmatprep.mubr.bf16.mxu0 0
        %3484 = vmatmul.mubr.bf16.gmra.mrb[0].mxu0 %v3399
        %v3485 = vpop.f32.mrb[0].mxu0
        %v3486 = vadd.f32 0.0, %v3485
        %v3487 = vpop.f32.mrb[0].mxu0
        %v3488 = vpop.f32.mrb[0].mxu0
        %v3489 = vadd.f32 0.0, %v3488
        %v3490 = vpop.f32.mrb[0].mxu0
        %3491 = vmatprep.mubr.bf16.mxu0 0
        %3492 = vmatmul.mubr.bf16.gmra.mrb[0].mxu0 %v3402
        %v3493 = vpop.f32.mrb[0].mxu0
        %v3494 = vadd.f32 0.0, %v3493
        %v3495 = vpop.f32.mrb[0].mxu0
        %v3496 = vpop.f32.mrb[0].mxu0
        %v3497 = vadd.f32 0.0, %v3496
        %v3498 = vpop.f32.mrb[0].mxu0
        %3499 = vmatprep.mubr.bf16.mxu0 0
        %3500 = vmatmul.mubr.bf16.gmra.mrb[0].mxu0 %v3405
        %v3501 = vpop.f32.mrb[0].mxu0
        %v3502 = vadd.f32 0.0, %v3501
        %v3503 = vpop.f32.mrb[0].mxu0
        %v3504 = vpop.f32.mrb[0].mxu0
        %v3505 = vadd.f32 0.0, %v3504
        %v3506 = vpop.f32.mrb[0].mxu0
        %3507 = vmatprep.mubr.bf16.mxu0 0
        %3508 = vmatmul.mubr.bf16.gmra.mrb[0].mxu0 %v3408
        %v3509 = vpop.f32.mrb[0].mxu0
        %v3510 = vadd.f32 0.0, %v3509
        %v3511 = vpop.f32.mrb[0].mxu0
        %v3512 = vpop.f32.mrb[0].mxu0
        %v3513 = vadd.f32 0.0, %v3512
        %v3514 = vpop.f32.mrb[0].mxu0
        %3515 = vmatprep.mubr.bf16.mxu0 0
        %3516 = vmatmul.mubr.bf16.gmra.mrb[0].mxu0 %v3411
        %v3517 = vpop.f32.mrb[0].mxu0
        %v3518 = vadd.f32 0.0, %v3517
        %v3519 = vpop.f32.mrb[0].mxu0
        %v3520 = vpop.f32.mrb[0].mxu0
        %v3521 = vadd.f32 0.0, %v3520
        %v3522 = vpop.f32.mrb[0].mxu0
        %3523 = vmatprep.mubr.bf16.mxu0 0
        %3524 = vmatmul.mubr.bf16.gmra.mrb[0].mxu0 %v3414
        %v3525 = vpop.f32.mrb[0].mxu0
        %v3526 = vadd.f32 0.0, %v3525
        %v3527 = vpop.f32.mrb[0].mxu0
        %v3528 = vpop.f32.mrb[0].mxu0
        %v3529 = vadd.f32 0.0, %v3528
        %v3530 = vpop.f32.mrb[0].mxu0
        %3531 = vmatprep.mubr.bf16.mxu0 0
        %3532 = vmatmul.mubr.bf16.gmra.mrb[0].mxu0 %v3417
        %v3533 = vpop.f32.mrb[0].mxu0
        %v3534 = vadd.f32 0.0, %v3533
        %v3535 = vpop.f32.mrb[0].mxu0
        %v3536 = vpop.f32.mrb[0].mxu0
        %v3537 = vadd.f32 0.0, %v3536
        %v3538 = vpop.f32.mrb[0].mxu0
        %3539 = vmatprep.mubr.bf16.mxu0 0
        %3540 = vmatmul.mubr.bf16.gmra.mrb[0].mxu0 %v3420
        %v3541 = vpop.f32.mrb[0].mxu0
        %v3542 = vadd.f32 0.0, %v3541
        %v3543 = vpop.f32.mrb[0].mxu0
        %v3544 = vpop.f32.mrb[0].mxu0
        %v3545 = vadd.f32 0.0, %v3544
        %v3546 = vpop.f32.mrb[0].mxu0
        %3547 = vmatprep.mubr.bf16.mxu0 0
        %3548 = vmatmul.mubr.bf16.gmra.mrb[0].mxu0 %v3423
        %v3549 = vpop.f32.mrb[0].mxu0
        %v3550 = vadd.f32 0.0, %v3549
        %v3551 = vpop.f32.mrb[0].mxu0
        %v3552 = vpop.f32.mrb[0].mxu0
        %v3553 = vadd.f32 0.0, %v3552
        %v3554 = vpop.f32.mrb[0].mxu0
        %3555 = vmatprep.mubr.bf16.mxu0 0
        %3556 = vmatmul.mubr.bf16.gmra.mrb[0].mxu0 %v3426
        %v3557 = vpop.f32.mrb[0].mxu0
        %v3558 = vadd.f32 0.0, %v3557
        %v3559 = vpop.f32.mrb[0].mxu0
        %v3560 = vpop.f32.mrb[0].mxu0
        %v3561 = vadd.f32 0.0, %v3560
        %v3562 = vpop.f32.mrb[0].mxu0
        %3563 = vmatprep.mubr.bf16.mxu0 0
        %3564 = vmatmul.mubr.bf16.gmra.mrb[0].mxu0 %v3429
        %v3565 = vpop.f32.mrb[0].mxu0
        %v3566 = vadd.f32 0.0, %v3565
        %v3567 = vpop.f32.mrb[0].mxu0
        %v3568 = vpop.f32.mrb[0].mxu0
        %v3569 = vadd.f32 0.0, %v3568
        %v3570 = vpop.f32.mrb[0].mxu0
        %3571 = vmatprep.mubr.bf16.mxu0 0
        %3572 = vmatmul.mubr.bf16.gmra.mrb[0].mxu0 %v3432
        %v3573 = vpop.f32.mrb[0].mxu0
        %v3574 = vadd.f32 0.0, %v3573
        %v3575 = vpop.f32.mrb[0].mxu0
        %v3576 = vpop.f32.mrb[0].mxu0
        %v3577 = vadd.f32 0.0, %v3576
        %v3578 = vpop.f32.mrb[0].mxu0
        %3579 = vmatprep.mubr.bf16.mxu0 0
        %3580 = vmatmul.mubr.bf16.gmra.mrb[0].mxu0 %v3435
        %v3581 = vpop.f32.mrb[0].mxu0
        %v3582 = vadd.f32 0.0, %v3581
        %v3583 = vpop.f32.mrb[0].mxu0
        %v3584 = vpop.f32.mrb[0].mxu0
        %v3585 = vadd.f32 0.0, %v3584
        %v3586 = vpop.f32.mrb[0].mxu0
        %3587 = vmatprep.mubr.bf16.mxu0 0
        %3588 = vmatmul.mubr.bf16.gmra.mrb[0].mxu0 %v3438
        %v3589 = vpop.f32.mrb[0].mxu0
        %v3590 = vadd.f32 0.0, %v3589
        %v3591 = vpop.f32.mrb[0].mxu0
        %v3592 = vpop.f32.mrb[0].mxu0
        %v3593 = vadd.f32 0.0, %v3592
        %v3594 = vpop.f32.mrb[0].mxu0
        %3595 = vmatprep.mubr.bf16.mxu0 0
        %3596 = vmatmul.mubr.bf16.gmra.mrb[0].mxu0 %v3441
        %v3597 = vpop.f32.mrb[0].mxu0
        %v3598 = vadd.f32 0.0, %v3597
        %v3599 = vpop.f32.mrb[0].mxu0
        %v3600 = vpop.f32.mrb[0].mxu0
        %v3601 = vadd.f32 0.0, %v3600
        %v3602 = vpop.f32.mrb[0].mxu0
        %3603 = vdwg.mxu0
        %v3604 = vadd.f32 %v3282, %v3478
        %v3605 = vadd.f32 %v3283, %v3481
        %v3606 = vadd.f32 %v3284, %v3486
        %v3607 = vadd.f32 %v3285, %v3489
        %v3608 = vadd.f32 %v3286, %v3494
        %v3609 = vadd.f32 %v3287, %v3497
        %v3610 = vadd.f32 %v3288, %v3502
        %v3611 = vadd.f32 %v3289, %v3505
        %v3612 = vadd.f32 %v3290, %v3510
        %v3613 = vadd.f32 %v3291, %v3513
        %v3614 = vadd.f32 %v3292, %v3518
        %v3615 = vadd.f32 %v3293, %v3521
        %v3616 = vadd.f32 %v3294, %v3526
        %v3617 = vadd.f32 %v3295, %v3529
        %v3618 = vadd.f32 %v3296, %v3534
        %v3619 = vadd.f32 %v3297, %v3537
        %v3620 = vadd.f32 %v3298, %v3542
        %v3621 = vadd.f32 %v3299, %v3545
        %v3622 = vadd.f32 %v3300, %v3550
        %v3623 = vadd.f32 %v3301, %v3553
        %v3624 = vadd.f32 %v3302, %v3558
        %v3625 = vadd.f32 %v3303, %v3561
        %v3626 = vadd.f32 %v3304, %v3566
        %v3627 = vadd.f32 %v3305, %v3569
        %v3628 = vadd.f32 %v3306, %v3574
        %v3629 = vadd.f32 %v3307, %v3577
        %v3630 = vadd.f32 %v3308, %v3582
        %v3631 = vadd.f32 %v3309, %v3585
        %v3632 = vadd.f32 %v3310, %v3590
        %v3633 = vadd.f32 %v3311, %v3593
        %v3634 = vadd.f32 %v3312, %v3598
        %v3635 = vadd.f32 %v3313, %v3601
        %s3636 = scalar_lea.vmem [#allocation2], 48
        %v3637 = vld [vmem:[%s3636] sm:$0xff]
        %v3638 = vld [vmem:[%s3636 + $0x8] sm:$0xff]
        %v3639 = vld [vmem:[%s3636 + $0x18] sm:$0xff]
        %v3640 = vld [vmem:[%s3636 + $0x20] sm:$0xff]
        %v3641 = vld [vmem:[%s3636 + $0x30] sm:$0xff]
        %v3642 = vld [vmem:[%s3636 + $0x38] sm:$0xff]
        %v3643 = vld [vmem:[%s3636 + $0x48] sm:$0xff]
        %v3644 = vld [vmem:[%s3636 + $0x50] sm:$0xff]
        %v3645 = vld [vmem:[%s3636 + $0x60] sm:$0xff]
        %v3646 = vld [vmem:[%s3636 + $0x68] sm:$0xff]
        %v3647 = vld [vmem:[%s3636 + $0x78] sm:$0xff]
        %v3648 = vld [vmem:[%s3636 + $0x80] sm:$0xff]
        %v3649 = vld [vmem:[%s3636 + $0x90] sm:$0xff]
        %v3650 = vld [vmem:[%s3636 + $0x98] sm:$0xff]
        %v3651 = vld [vmem:[%s3636 + $0xa8] sm:$0xff]
        %v3652 = vld [vmem:[%s3636 + $0xb0] sm:$0xff]
        %v3653 = vld [vmem:[%s3636 + $0xc0] sm:$0xff]
        %v3654 = vld [vmem:[%s3636 + $0xc8] sm:$0xff]
        %v3655 = vld [vmem:[%s3636 + $0xd8] sm:$0xff]
        %v3656 = vld [vmem:[%s3636 + $0xe0] sm:$0xff]
        %v3657 = vld [vmem:[%s3636 + $0xf0] sm:$0xff]
        %v3658 = vld [vmem:[%s3636 + $0xf8] sm:$0xff]
        %v3659 = vld [vmem:[%s3636 + $0x108] sm:$0xff]
        %v3660 = vld [vmem:[%s3636 + $0x110] sm:$0xff]
        %v3661 = vld [vmem:[%s3636 + $0x120] sm:$0xff]
        %v3662 = vld [vmem:[%s3636 + $0x128] sm:$0xff]
        %v3663 = vld [vmem:[%s3636 + $0x138] sm:$0xff]
        %v3664 = vld [vmem:[%s3636 + $0x140] sm:$0xff]
        %v3665 = vld [vmem:[%s3636 + $0x150] sm:$0xff]
        %v3666 = vld [vmem:[%s3636 + $0x158] sm:$0xff]
        %v3667 = vld [vmem:[%s3636 + $0x168] sm:$0xff]
        %v3668 = vld [vmem:[%s3636 + $0x170] sm:$0xff]
        %v3669 = vpack.c.bf16 %v3638, %v3637
        %v3670 = vpack.c.bf16 %v3640, %v3639
        %v3671 = vpack.c.bf16 %v3642, %v3641
        %v3672 = vpack.c.bf16 %v3644, %v3643
        %v3673 = vpack.c.bf16 %v3646, %v3645
        %v3674 = vpack.c.bf16 %v3648, %v3647
        %v3675 = vpack.c.bf16 %v3650, %v3649
        %v3676 = vpack.c.bf16 %v3652, %v3651
        %v3677 = vpack.c.bf16 %v3654, %v3653
        %v3678 = vpack.c.bf16 %v3656, %v3655
        %v3679 = vpack.c.bf16 %v3658, %v3657
        %v3680 = vpack.c.bf16 %v3660, %v3659
        %v3681 = vpack.c.bf16 %v3662, %v3661
        %v3682 = vpack.c.bf16 %v3664, %v3663
        %v3683 = vpack.c.bf16 %v3666, %v3665
        %v3684 = vpack.c.bf16 %v3668, %v3667
        %s3685 = scalar_lea.vmem %s3, 192
        %v3686 = vld [vmem:[%s3685] sm:$0xf]
        %v3687 = vld [vmem:[%s3685 + $0x4] sm:$0xf]
        %v3688 = vld [vmem:[%s3685 + $0x8] sm:$0xf]
        %v3689 = vld [vmem:[%s3685 + $0xc] sm:$0xf]
        %v3690 = vld [vmem:[%s3685 + $0x10] sm:$0xf]
        %v3691 = vld [vmem:[%s3685 + $0x14] sm:$0xf]
        %v3692 = vld [vmem:[%s3685 + $0x18] sm:$0xf]
        %v3693 = vld [vmem:[%s3685 + $0x1c] sm:$0xf]
        %v3702 = vunpack.c.l.b16 %v3686
        %v3703 = vunpack.c.l.b16 %v3687
        %v3704 = vunpack.c.l.b16 %v3688
        %v3705 = vunpack.c.l.b16 %v3689
        %v3706 = vunpack.c.l.b16 %v3690
        %v3707 = vunpack.c.l.b16 %v3691
        %v3708 = vunpack.c.l.b16 %v3692
        %v3709 = vunpack.c.l.b16 %v3693
        %v3710 = vpack.c.b16 %v3703, %v3702
        %v3711 = vpack.c.b16 %v3705, %v3704
        %v3712 = vpack.c.b16 %v3707, %v3706
        %v3713 = vpack.c.b16 %v3709, %v3708
        %v3719 = vsel %vm1616, %v3669, 0
        %v3722 = vsel %vm1616, %v3670, 0
        %v3725 = vsel %vm1616, %v3671, 0
        %v3728 = vsel %vm1616, %v3672, 0
        %v3731 = vsel %vm1616, %v3673, 0
        %v3734 = vsel %vm1616, %v3674, 0
        %v3737 = vsel %vm1616, %v3675, 0
        %v3740 = vsel %vm1616, %v3676, 0
        %v3743 = vsel %vm1616, %v3677, 0
        %v3746 = vsel %vm1616, %v3678, 0
        %v3749 = vsel %vm1616, %v3679, 0
        %v3752 = vsel %vm1616, %v3680, 0
        %v3755 = vsel %vm1616, %v3681, 0
        %v3758 = vsel %vm1616, %v3682, 0
        %v3761 = vsel %vm1616, %v3683, 0
        %v3764 = vsel %vm1616, %v3684, 0
        %3766 = vmatprep.subr.bf16.mxu0 0
        %3767 = vmatpush1.bf16.msra.mxu0 %v3710
        %3768 = vmatprep.subr.bf16.mxu0 0
        %3769 = vmatpush1.bf16.msra.mxu0 %v3711
        %3770 = vmatprep.subr.bf16.mxu0 0
        %3771 = vmatpush1.bf16.msra.mxu0 %v3712
        %3772 = vmatprep.subr.bf16.mxu0 0
        %3773 = vmatpush1.bf16.msra.mxu0 %v3713
        %3774 = vmatprep.subr.bf16.mxu0 0
        %3775 = vmatpush1.bf16.msra.mxu0 0
        %3776 = vmatprep.subr.bf16.mxu0 0
        %3777 = vmatpush1.bf16.msra.mxu0 0
        %3778 = vmatprep.subr.bf16.mxu0 0
        %3779 = vmatpush1.bf16.msra.mxu0 0
        %3780 = vmatprep.subr.bf16.mxu0 0
        %3781 = vmatpush1.bf16.msra.mxu0 0
        %3782 = vmatprep.subr.bf16.mxu0 0
        %3783 = vmatpush1.bf16.msra.mxu0 0
        %3784 = vmatprep.subr.bf16.mxu0 0
        %3785 = vmatpush1.bf16.msra.mxu0 0
        %3786 = vmatprep.subr.bf16.mxu0 0
        %3787 = vmatpush1.bf16.msra.mxu0 0
        %3788 = vmatprep.subr.bf16.mxu0 0
        %3789 = vmatpush1.bf16.msra.mxu0 0
        %3790 = vmatprep.subr.bf16.mxu0 0
        %3791 = vmatpush1.bf16.msra.mxu0 0
        %3792 = vmatprep.subr.bf16.mxu0 0
        %3793 = vmatpush1.bf16.msra.mxu0 0
        %3794 = vmatprep.subr.bf16.mxu0 0
        %3795 = vmatpush1.bf16.msra.mxu0 0
        %3796 = vmatprep.subr.bf16.mxu0 0
        %3797 = vmatpush1.bf16.msra.mxu0 0
        %3798 = vmatprep.mubr.bf16.mxu0 0
        %3799 = vmatmul.mubr.bf16.gmra.mrb[0].mxu0 %v3719
        %v3800 = vpop.f32.mrb[0].mxu0
        %v3801 = vadd.f32 0.0, %v3800
        %v3802 = vpop.f32.mrb[0].mxu0
        %v3803 = vpop.f32.mrb[0].mxu0
        %v3804 = vadd.f32 0.0, %v3803
        %v3805 = vpop.f32.mrb[0].mxu0
        %3806 = vmatprep.mubr.bf16.mxu0 0
        %3807 = vmatmul.mubr.bf16.gmra.mrb[0].mxu0 %v3722
        %v3808 = vpop.f32.mrb[0].mxu0
        %v3809 = vadd.f32 0.0, %v3808
        %v3810 = vpop.f32.mrb[0].mxu0
        %v3811 = vpop.f32.mrb[0].mxu0
        %v3812 = vadd.f32 0.0, %v3811
        %v3813 = vpop.f32.mrb[0].mxu0
        %3814 = vmatprep.mubr.bf16.mxu0 0
        %3815 = vmatmul.mubr.bf16.gmra.mrb[0].mxu0 %v3725
        %v3816 = vpop.f32.mrb[0].mxu0
        %v3817 = vadd.f32 0.0, %v3816
        %v3818 = vpop.f32.mrb[0].mxu0
        %v3819 = vpop.f32.mrb[0].mxu0
        %v3820 = vadd.f32 0.0, %v3819
        %v3821 = vpop.f32.mrb[0].mxu0
        %3822 = vmatprep.mubr.bf16.mxu0 0
        %3823 = vmatmul.mubr.bf16.gmra.mrb[0].mxu0 %v3728
        %v3824 = vpop.f32.mrb[0].mxu0
        %v3825 = vadd.f32 0.0, %v3824
        %v3826 = vpop.f32.mrb[0].mxu0
        %v3827 = vpop.f32.mrb[0].mxu0
        %v3828 = vadd.f32 0.0, %v3827
        %v3829 = vpop.f32.mrb[0].mxu0
        %3830 = vmatprep.mubr.bf16.mxu0 0
        %3831 = vmatmul.mubr.bf16.gmra.mrb[0].mxu0 %v3731
        %v3832 = vpop.f32.mrb[0].mxu0
        %v3833 = vadd.f32 0.0, %v3832
        %v3834 = vpop.f32.mrb[0].mxu0
        %v3835 = vpop.f32.mrb[0].mxu0
        %v3836 = vadd.f32 0.0, %v3835
        %v3837 = vpop.f32.mrb[0].mxu0
        %3838 = vmatprep.mubr.bf16.mxu0 0
        %3839 = vmatmul.mubr.bf16.gmra.mrb[0].mxu0 %v3734
        %v3840 = vpop.f32.mrb[0].mxu0
        %v3841 = vadd.f32 0.0, %v3840
        %v3842 = vpop.f32.mrb[0].mxu0
        %v3843 = vpop.f32.mrb[0].mxu0
        %v3844 = vadd.f32 0.0, %v3843
        %v3845 = vpop.f32.mrb[0].mxu0
        %3846 = vmatprep.mubr.bf16.mxu0 0
        %3847 = vmatmul.mubr.bf16.gmra.mrb[0].mxu0 %v3737
        %v3848 = vpop.f32.mrb[0].mxu0
        %v3849 = vadd.f32 0.0, %v3848
        %v3850 = vpop.f32.mrb[0].mxu0
        %v3851 = vpop.f32.mrb[0].mxu0
        %v3852 = vadd.f32 0.0, %v3851
        %v3853 = vpop.f32.mrb[0].mxu0
        %3854 = vmatprep.mubr.bf16.mxu0 0
        %3855 = vmatmul.mubr.bf16.gmra.mrb[0].mxu0 %v3740
        %v3856 = vpop.f32.mrb[0].mxu0
        %v3857 = vadd.f32 0.0, %v3856
        %v3858 = vpop.f32.mrb[0].mxu0
        %v3859 = vpop.f32.mrb[0].mxu0
        %v3860 = vadd.f32 0.0, %v3859
        %v3861 = vpop.f32.mrb[0].mxu0
        %3862 = vmatprep.mubr.bf16.mxu0 0
        %3863 = vmatmul.mubr.bf16.gmra.mrb[0].mxu0 %v3743
        %v3864 = vpop.f32.mrb[0].mxu0
        %v3865 = vadd.f32 0.0, %v3864
        %v3866 = vpop.f32.mrb[0].mxu0
        %v3867 = vpop.f32.mrb[0].mxu0
        %v3868 = vadd.f32 0.0, %v3867
        %v3869 = vpop.f32.mrb[0].mxu0
        %3870 = vmatprep.mubr.bf16.mxu0 0
        %3871 = vmatmul.mubr.bf16.gmra.mrb[0].mxu0 %v3746
        %v3872 = vpop.f32.mrb[0].mxu0
        %v3873 = vadd.f32 0.0, %v3872
        %v3874 = vpop.f32.mrb[0].mxu0
        %v3875 = vpop.f32.mrb[0].mxu0
        %v3876 = vadd.f32 0.0, %v3875
        %v3877 = vpop.f32.mrb[0].mxu0
        %3878 = vmatprep.mubr.bf16.mxu0 0
        %3879 = vmatmul.mubr.bf16.gmra.mrb[0].mxu0 %v3749
        %v3880 = vpop.f32.mrb[0].mxu0
        %v3881 = vadd.f32 0.0, %v3880
        %v3882 = vpop.f32.mrb[0].mxu0
        %v3883 = vpop.f32.mrb[0].mxu0
        %v3884 = vadd.f32 0.0, %v3883
        %v3885 = vpop.f32.mrb[0].mxu0
        %3886 = vmatprep.mubr.bf16.mxu0 0
        %3887 = vmatmul.mubr.bf16.gmra.mrb[0].mxu0 %v3752
        %v3888 = vpop.f32.mrb[0].mxu0
        %v3889 = vadd.f32 0.0, %v3888
        %v3890 = vpop.f32.mrb[0].mxu0
        %v3891 = vpop.f32.mrb[0].mxu0
        %v3892 = vadd.f32 0.0, %v3891
        %v3893 = vpop.f32.mrb[0].mxu0
        %3894 = vmatprep.mubr.bf16.mxu0 0
        %3895 = vmatmul.mubr.bf16.gmra.mrb[0].mxu0 %v3755
        %v3896 = vpop.f32.mrb[0].mxu0
        %v3897 = vadd.f32 0.0, %v3896
        %v3898 = vpop.f32.mrb[0].mxu0
        %v3899 = vpop.f32.mrb[0].mxu0
        %v3900 = vadd.f32 0.0, %v3899
        %v3901 = vpop.f32.mrb[0].mxu0
        %3902 = vmatprep.mubr.bf16.mxu0 0
        %3903 = vmatmul.mubr.bf16.gmra.mrb[0].mxu0 %v3758
        %v3904 = vpop.f32.mrb[0].mxu0
        %v3905 = vadd.f32 0.0, %v3904
        %v3906 = vpop.f32.mrb[0].mxu0
        %v3907 = vpop.f32.mrb[0].mxu0
        %v3908 = vadd.f32 0.0, %v3907
        %v3909 = vpop.f32.mrb[0].mxu0
        %3910 = vmatprep.mubr.bf16.mxu0 0
        %3911 = vmatmul.mubr.bf16.gmra.mrb[0].mxu0 %v3761
        %v3912 = vpop.f32.mrb[0].mxu0
        %v3913 = vadd.f32 0.0, %v3912
        %v3914 = vpop.f32.mrb[0].mxu0
        %v3915 = vpop.f32.mrb[0].mxu0
        %v3916 = vadd.f32 0.0, %v3915
        %v3917 = vpop.f32.mrb[0].mxu0
        %3918 = vmatprep.mubr.bf16.mxu0 0
        %3919 = vmatmul.mubr.bf16.gmra.mrb[0].mxu0 %v3764
        %v3920 = vpop.f32.mrb[0].mxu0
        %v3921 = vadd.f32 0.0, %v3920
        %v3922 = vpop.f32.mrb[0].mxu0
        %v3923 = vpop.f32.mrb[0].mxu0
        %v3924 = vadd.f32 0.0, %v3923
        %v3925 = vpop.f32.mrb[0].mxu0
        %3926 = vdwg.mxu0
        %v3927 = vadd.f32 %v3604, %v3801
        %v3928 = vadd.f32 %v3605, %v3804
        %v3929 = vadd.f32 %v3606, %v3809
        %v3930 = vadd.f32 %v3607, %v3812
        %v3931 = vadd.f32 %v3608, %v3817
        %v3932 = vadd.f32 %v3609, %v3820
        %v3933 = vadd.f32 %v3610, %v3825
        %v3934 = vadd.f32 %v3611, %v3828
        %v3935 = vadd.f32 %v3612, %v3833
        %v3936 = vadd.f32 %v3613, %v3836
        %v3937 = vadd.f32 %v3614, %v3841
        %v3938 = vadd.f32 %v3615, %v3844
        %v3939 = vadd.f32 %v3616, %v3849
        %v3940 = vadd.f32 %v3617, %v3852
        %v3941 = vadd.f32 %v3618, %v3857
        %v3942 = vadd.f32 %v3619, %v3860
        %v3943 = vadd.f32 %v3620, %v3865
        %v3944 = vadd.f32 %v3621, %v3868
        %v3945 = vadd.f32 %v3622, %v3873
        %v3946 = vadd.f32 %v3623, %v3876
        %v3947 = vadd.f32 %v3624, %v3881
        %v3948 = vadd.f32 %v3625, %v3884
        %v3949 = vadd.f32 %v3626, %v3889
        %v3950 = vadd.f32 %v3627, %v3892
        %v3951 = vadd.f32 %v3628, %v3897
        %v3952 = vadd.f32 %v3629, %v3900
        %v3953 = vadd.f32 %v3630, %v3905
        %v3954 = vadd.f32 %v3631, %v3908
        %v3955 = vadd.f32 %v3632, %v3913
        %v3956 = vadd.f32 %v3633, %v3916
        %v3957 = vadd.f32 %v3634, %v3921
        %v3958 = vadd.f32 %v3635, %v3924
        %v3959 = vld [vmem:[%s3636 + $0x1] sm:$0xff]
        %v3960 = vld [vmem:[%s3636 + $0x9] sm:$0xff]
        %v3961 = vld [vmem:[%s3636 + $0x19] sm:$0xff]
        %v3962 = vld [vmem:[%s3636 + $0x21] sm:$0xff]
        %v3963 = vld [vmem:[%s3636 + $0x31] sm:$0xff]
        %v3964 = vld [vmem:[%s3636 + $0x39] sm:$0xff]
        %v3965 = vld [vmem:[%s3636 + $0x49] sm:$0xff]
        %v3966 = vld [vmem:[%s3636 + $0x51] sm:$0xff]
        %v3967 = vld [vmem:[%s3636 + $0x61] sm:$0xff]
        %v3968 = vld [vmem:[%s3636 + $0x69] sm:$0xff]
        %v3969 = vld [vmem:[%s3636 + $0x79] sm:$0xff]
        %v3970 = vld [vmem:[%s3636 + $0x81] sm:$0xff]
        %v3971 = vld [vmem:[%s3636 + $0x91] sm:$0xff]
        %v3972 = vld [vmem:[%s3636 + $0x99] sm:$0xff]
        %v3973 = vld [vmem:[%s3636 + $0xa9] sm:$0xff]
        %v3974 = vld [vmem:[%s3636 + $0xb1] sm:$0xff]
        %v3975 = vld [vmem:[%s3636 + $0xc1] sm:$0xff]
        %v3976 = vld [vmem:[%s3636 + $0xc9] sm:$0xff]
        %v3977 = vld [vmem:[%s3636 + $0xd9] sm:$0xff]
        %v3978 = vld [vmem:[%s3636 + $0xe1] sm:$0xff]
        %v3979 = vld [vmem:[%s3636 + $0xf1] sm:$0xff]
        %v3980 = vld [vmem:[%s3636 + $0xf9] sm:$0xff]
        %v3981 = vld [vmem:[%s3636 + $0x109] sm:$0xff]
        %v3982 = vld [vmem:[%s3636 + $0x111] sm:$0xff]
        %v3983 = vld [vmem:[%s3636 + $0x121] sm:$0xff]
        %v3984 = vld [vmem:[%s3636 + $0x129] sm:$0xff]
        %v3985 = vld [vmem:[%s3636 + $0x139] sm:$0xff]
        %v3986 = vld [vmem:[%s3636 + $0x141] sm:$0xff]
        %v3987 = vld [vmem:[%s3636 + $0x151] sm:$0xff]
        %v3988 = vld [vmem:[%s3636 + $0x159] sm:$0xff]
        %v3989 = vld [vmem:[%s3636 + $0x169] sm:$0xff]
        %v3990 = vld [vmem:[%s3636 + $0x171] sm:$0xff]
        %v3991 = vpack.c.bf16 %v3960, %v3959
        %v3992 = vpack.c.bf16 %v3962, %v3961
        %v3993 = vpack.c.bf16 %v3964, %v3963
        %v3994 = vpack.c.bf16 %v3966, %v3965
        %v3995 = vpack.c.bf16 %v3968, %v3967
        %v3996 = vpack.c.bf16 %v3970, %v3969
        %v3997 = vpack.c.bf16 %v3972, %v3971
        %v3998 = vpack.c.bf16 %v3974, %v3973
        %v3999 = vpack.c.bf16 %v3976, %v3975
        %v4000 = vpack.c.bf16 %v3978, %v3977
        %v4001 = vpack.c.bf16 %v3980, %v3979
        %v4002 = vpack.c.bf16 %v3982, %v3981
        %v4003 = vpack.c.bf16 %v3984, %v3983
        %v4004 = vpack.c.bf16 %v3986, %v3985
        %v4005 = vpack.c.bf16 %v3988, %v3987
        %v4006 = vpack.c.bf16 %v3990, %v3989
        %s4007 = scalar_lea.vmem %s3, 224
        %v4008 = vld [vmem:[%s4007] sm:$0xf]
        %v4009 = vld [vmem:[%s4007 + $0x4] sm:$0xf]
        %v4010 = vld [vmem:[%s4007 + $0x8] sm:$0xf]
        %v4011 = vld [vmem:[%s4007 + $0xc] sm:$0xf]
        %v4012 = vld [vmem:[%s4007 + $0x10] sm:$0xf]
        %v4013 = vld [vmem:[%s4007 + $0x14] sm:$0xf]
        %v4014 = vld [vmem:[%s4007 + $0x18] sm:$0xf]
        %v4015 = vld [vmem:[%s4007 + $0x1c] sm:$0xf]
        %v4024 = vunpack.c.l.b16 %v4008
        %v4025 = vunpack.c.l.b16 %v4009
        %v4026 = vunpack.c.l.b16 %v4010
        %v4027 = vunpack.c.l.b16 %v4011
        %v4028 = vunpack.c.l.b16 %v4012
        %v4029 = vunpack.c.l.b16 %v4013
        %v4030 = vunpack.c.l.b16 %v4014
        %v4031 = vunpack.c.l.b16 %v4015
        %v4032 = vpack.c.b16 %v4025, %v4024
        %v4033 = vpack.c.b16 %v4027, %v4026
        %v4034 = vpack.c.b16 %v4029, %v4028
        %v4035 = vpack.c.b16 %v4031, %v4030
        %v4041 = vsel %vm1616, %v3991, 0
        %v4044 = vsel %vm1616, %v3992, 0
        %v4047 = vsel %vm1616, %v3993, 0
        %v4050 = vsel %vm1616, %v3994, 0
        %v4053 = vsel %vm1616, %v3995, 0
        %v4056 = vsel %vm1616, %v3996, 0
        %v4059 = vsel %vm1616, %v3997, 0
        %v4062 = vsel %vm1616, %v3998, 0
        %v4065 = vsel %vm1616, %v3999, 0
        %v4068 = vsel %vm1616, %v4000, 0
        %v4071 = vsel %vm1616, %v4001, 0
        %v4074 = vsel %vm1616, %v4002, 0
        %v4077 = vsel %vm1616, %v4003, 0
        %v4080 = vsel %vm1616, %v4004, 0
        %v4083 = vsel %vm1616, %v4005, 0
        %v4086 = vsel %vm1616, %v4006, 0
        %4088 = vmatprep.subr.bf16.mxu0 0
        %4089 = vmatpush1.bf16.msra.mxu0 %v4032
        %4090 = vmatprep.subr.bf16.mxu0 0
        %4091 = vmatpush1.bf16.msra.mxu0 %v4033
        %4092 = vmatprep.subr.bf16.mxu0 0
        %4093 = vmatpush1.bf16.msra.mxu0 %v4034
        %4094 = vmatprep.subr.bf16.mxu0 0
        %4095 = vmatpush1.bf16.msra.mxu0 %v4035
        %4096 = vmatprep.subr.bf16.mxu0 0
        %4097 = vmatpush1.bf16.msra.mxu0 0
        %4098 = vmatprep.subr.bf16.mxu0 0
        %4099 = vmatpush1.bf16.msra.mxu0 0
        %4100 = vmatprep.subr.bf16.mxu0 0
        %4101 = vmatpush1.bf16.msra.mxu0 0
        %4102 = vmatprep.subr.bf16.mxu0 0
        %4103 = vmatpush1.bf16.msra.mxu0 0
        %4104 = vmatprep.subr.bf16.mxu0 0
        %4105 = vmatpush1.bf16.msra.mxu0 0
        %4106 = vmatprep.subr.bf16.mxu0 0
        %4107 = vmatpush1.bf16.msra.mxu0 0
        %4108 = vmatprep.subr.bf16.mxu0 0
        %4109 = vmatpush1.bf16.msra.mxu0 0
        %4110 = vmatprep.subr.bf16.mxu0 0
        %4111 = vmatpush1.bf16.msra.mxu0 0
        %4112 = vmatprep.subr.bf16.mxu0 0
        %4113 = vmatpush1.bf16.msra.mxu0 0
        %4114 = vmatprep.subr.bf16.mxu0 0
        %4115 = vmatpush1.bf16.msra.mxu0 0
        %4116 = vmatprep.subr.bf16.mxu0 0
        %4117 = vmatpush1.bf16.msra.mxu0 0
        %4118 = vmatprep.subr.bf16.mxu0 0
        %4119 = vmatpush1.bf16.msra.mxu0 0
        %4120 = vmatprep.mubr.bf16.mxu0 0
        %4121 = vmatmul.mubr.bf16.gmra.mrb[0].mxu0 %v4041
        %v4122 = vpop.f32.mrb[0].mxu0
        %v4123 = vadd.f32 0.0, %v4122
        %v4124 = vpop.f32.mrb[0].mxu0
        %v4125 = vpop.f32.mrb[0].mxu0
        %v4126 = vadd.f32 0.0, %v4125
        %v4127 = vpop.f32.mrb[0].mxu0
        %4128 = vmatprep.mubr.bf16.mxu0 0
        %4129 = vmatmul.mubr.bf16.gmra.mrb[0].mxu0 %v4044
        %v4130 = vpop.f32.mrb[0].mxu0
        %v4131 = vadd.f32 0.0, %v4130
        %v4132 = vpop.f32.mrb[0].mxu0
        %v4133 = vpop.f32.mrb[0].mxu0
        %v4134 = vadd.f32 0.0, %v4133
        %v4135 = vpop.f32.mrb[0].mxu0
        %4136 = vmatprep.mubr.bf16.mxu0 0
        %4137 = vmatmul.mubr.bf16.gmra.mrb[0].mxu0 %v4047
        %v4138 = vpop.f32.mrb[0].mxu0
        %v4139 = vadd.f32 0.0, %v4138
        %v4140 = vpop.f32.mrb[0].mxu0
        %v4141 = vpop.f32.mrb[0].mxu0
        %v4142 = vadd.f32 0.0, %v4141
        %v4143 = vpop.f32.mrb[0].mxu0
        %4144 = vmatprep.mubr.bf16.mxu0 0
        %4145 = vmatmul.mubr.bf16.gmra.mrb[0].mxu0 %v4050
        %v4146 = vpop.f32.mrb[0].mxu0
        %v4147 = vadd.f32 0.0, %v4146
        %v4148 = vpop.f32.mrb[0].mxu0
        %v4149 = vpop.f32.mrb[0].mxu0
        %v4150 = vadd.f32 0.0, %v4149
        %v4151 = vpop.f32.mrb[0].mxu0
        %4152 = vmatprep.mubr.bf16.mxu0 0
        %4153 = vmatmul.mubr.bf16.gmra.mrb[0].mxu0 %v4053
        %v4154 = vpop.f32.mrb[0].mxu0
        %v4155 = vadd.f32 0.0, %v4154
        %v4156 = vpop.f32.mrb[0].mxu0
        %v4157 = vpop.f32.mrb[0].mxu0
        %v4158 = vadd.f32 0.0, %v4157
        %v4159 = vpop.f32.mrb[0].mxu0
        %4160 = vmatprep.mubr.bf16.mxu0 0
        %4161 = vmatmul.mubr.bf16.gmra.mrb[0].mxu0 %v4056
        %v4162 = vpop.f32.mrb[0].mxu0
        %v4163 = vadd.f32 0.0, %v4162
        %v4164 = vpop.f32.mrb[0].mxu0
        %v4165 = vpop.f32.mrb[0].mxu0
        %v4166 = vadd.f32 0.0, %v4165
        %v4167 = vpop.f32.mrb[0].mxu0
        %4168 = vmatprep.mubr.bf16.mxu0 0
        %4169 = vmatmul.mubr.bf16.gmra.mrb[0].mxu0 %v4059
        %v4170 = vpop.f32.mrb[0].mxu0
        %v4171 = vadd.f32 0.0, %v4170
        %v4172 = vpop.f32.mrb[0].mxu0
        %v4173 = vpop.f32.mrb[0].mxu0
        %v4174 = vadd.f32 0.0, %v4173
        %v4175 = vpop.f32.mrb[0].mxu0
        %4176 = vmatprep.mubr.bf16.mxu0 0
        %4177 = vmatmul.mubr.bf16.gmra.mrb[0].mxu0 %v4062
        %v4178 = vpop.f32.mrb[0].mxu0
        %v4179 = vadd.f32 0.0, %v4178
        %v4180 = vpop.f32.mrb[0].mxu0
        %v4181 = vpop.f32.mrb[0].mxu0
        %v4182 = vadd.f32 0.0, %v4181
        %v4183 = vpop.f32.mrb[0].mxu0
        %4184 = vmatprep.mubr.bf16.mxu0 0
        %4185 = vmatmul.mubr.bf16.gmra.mrb[0].mxu0 %v4065
        %v4186 = vpop.f32.mrb[0].mxu0
        %v4187 = vadd.f32 0.0, %v4186
        %v4188 = vpop.f32.mrb[0].mxu0
        %v4189 = vpop.f32.mrb[0].mxu0
        %v4190 = vadd.f32 0.0, %v4189
        %v4191 = vpop.f32.mrb[0].mxu0
        %4192 = vmatprep.mubr.bf16.mxu0 0
        %4193 = vmatmul.mubr.bf16.gmra.mrb[0].mxu0 %v4068
        %v4194 = vpop.f32.mrb[0].mxu0
        %v4195 = vadd.f32 0.0, %v4194
        %v4196 = vpop.f32.mrb[0].mxu0
        %v4197 = vpop.f32.mrb[0].mxu0
        %v4198 = vadd.f32 0.0, %v4197
        %v4199 = vpop.f32.mrb[0].mxu0
        %4200 = vmatprep.mubr.bf16.mxu0 0
        %4201 = vmatmul.mubr.bf16.gmra.mrb[0].mxu0 %v4071
        %v4202 = vpop.f32.mrb[0].mxu0
        %v4203 = vadd.f32 0.0, %v4202
        %v4204 = vpop.f32.mrb[0].mxu0
        %v4205 = vpop.f32.mrb[0].mxu0
        %v4206 = vadd.f32 0.0, %v4205
        %v4207 = vpop.f32.mrb[0].mxu0
        %4208 = vmatprep.mubr.bf16.mxu0 0
        %4209 = vmatmul.mubr.bf16.gmra.mrb[0].mxu0 %v4074
        %v4210 = vpop.f32.mrb[0].mxu0
        %v4211 = vadd.f32 0.0, %v4210
        %v4212 = vpop.f32.mrb[0].mxu0
        %v4213 = vpop.f32.mrb[0].mxu0
        %v4214 = vadd.f32 0.0, %v4213
        %v4215 = vpop.f32.mrb[0].mxu0
        %4216 = vmatprep.mubr.bf16.mxu0 0
        %4217 = vmatmul.mubr.bf16.gmra.mrb[0].mxu0 %v4077
        %v4218 = vpop.f32.mrb[0].mxu0
        %v4219 = vadd.f32 0.0, %v4218
        %v4220 = vpop.f32.mrb[0].mxu0
        %v4221 = vpop.f32.mrb[0].mxu0
        %v4222 = vadd.f32 0.0, %v4221
        %v4223 = vpop.f32.mrb[0].mxu0
        %4224 = vmatprep.mubr.bf16.mxu0 0
        %4225 = vmatmul.mubr.bf16.gmra.mrb[0].mxu0 %v4080
        %v4226 = vpop.f32.mrb[0].mxu0
        %v4227 = vadd.f32 0.0, %v4226
        %v4228 = vpop.f32.mrb[0].mxu0
        %v4229 = vpop.f32.mrb[0].mxu0
        %v4230 = vadd.f32 0.0, %v4229
        %v4231 = vpop.f32.mrb[0].mxu0
        %4232 = vmatprep.mubr.bf16.mxu0 0
        %4233 = vmatmul.mubr.bf16.gmra.mrb[0].mxu0 %v4083
        %v4234 = vpop.f32.mrb[0].mxu0
        %v4235 = vadd.f32 0.0, %v4234
        %v4236 = vpop.f32.mrb[0].mxu0
        %v4237 = vpop.f32.mrb[0].mxu0
        %v4238 = vadd.f32 0.0, %v4237
        %v4239 = vpop.f32.mrb[0].mxu0
        %4240 = vmatprep.mubr.bf16.mxu0 0
        %4241 = vmatmul.mubr.bf16.gmra.mrb[0].mxu0 %v4086
        %v4242 = vpop.f32.mrb[0].mxu0
        %v4243 = vadd.f32 0.0, %v4242
        %v4244 = vpop.f32.mrb[0].mxu0
        %v4245 = vpop.f32.mrb[0].mxu0
        %v4246 = vadd.f32 0.0, %v4245
        %v4247 = vpop.f32.mrb[0].mxu0
        %4248 = vdwg.mxu0
        %v4249 = vadd.f32 %v3927, %v4123
        %v4250 = vadd.f32 %v3928, %v4126
        %v4251 = vadd.f32 %v3929, %v4131
        %v4252 = vadd.f32 %v3930, %v4134
        %v4253 = vadd.f32 %v3931, %v4139
        %v4254 = vadd.f32 %v3932, %v4142
        %v4255 = vadd.f32 %v3933, %v4147
        %v4256 = vadd.f32 %v3934, %v4150
        %v4257 = vadd.f32 %v3935, %v4155
        %v4258 = vadd.f32 %v3936, %v4158
        %v4259 = vadd.f32 %v3937, %v4163
        %v4260 = vadd.f32 %v3938, %v4166
        %v4261 = vadd.f32 %v3939, %v4171
        %v4262 = vadd.f32 %v3940, %v4174
        %v4263 = vadd.f32 %v3941, %v4179
        %v4264 = vadd.f32 %v3942, %v4182
        %v4265 = vadd.f32 %v3943, %v4187
        %v4266 = vadd.f32 %v3944, %v4190
        %v4267 = vadd.f32 %v3945, %v4195
        %v4268 = vadd.f32 %v3946, %v4198
        %v4269 = vadd.f32 %v3947, %v4203
        %v4270 = vadd.f32 %v3948, %v4206
        %v4271 = vadd.f32 %v3949, %v4211
        %v4272 = vadd.f32 %v3950, %v4214
        %v4273 = vadd.f32 %v3951, %v4219
        %v4274 = vadd.f32 %v3952, %v4222
        %v4275 = vadd.f32 %v3953, %v4227
        %v4276 = vadd.f32 %v3954, %v4230
        %v4277 = vadd.f32 %v3955, %v4235
        %v4278 = vadd.f32 %v3956, %v4238
        %v4279 = vadd.f32 %v3957, %v4243
        %v4280 = vadd.f32 %v3958, %v4246
        %v4281 = vld [vmem:[%s3636 + $0x2] sm:$0xff]
        %v4282 = vld [vmem:[%s3636 + $0xa] sm:$0xff]
        %v4283 = vld [vmem:[%s3636 + $0x1a] sm:$0xff]
        %v4284 = vld [vmem:[%s3636 + $0x22] sm:$0xff]
        %v4285 = vld [vmem:[%s3636 + $0x32] sm:$0xff]
        %v4286 = vld [vmem:[%s3636 + $0x3a] sm:$0xff]
        %v4287 = vld [vmem:[%s3636 + $0x4a] sm:$0xff]
        %v4288 = vld [vmem:[%s3636 + $0x52] sm:$0xff]
        %v4289 = vld [vmem:[%s3636 + $0x62] sm:$0xff]
        %v4290 = vld [vmem:[%s3636 + $0x6a] sm:$0xff]
        %v4291 = vld [vmem:[%s3636 + $0x7a] sm:$0xff]
        %v4292 = vld [vmem:[%s3636 + $0x82] sm:$0xff]
        %v4293 = vld [vmem:[%s3636 + $0x92] sm:$0xff]
        %v4294 = vld [vmem:[%s3636 + $0x9a] sm:$0xff]
        %v4295 = vld [vmem:[%s3636 + $0xaa] sm:$0xff]
        %v4296 = vld [vmem:[%s3636 + $0xb2] sm:$0xff]
        %v4297 = vld [vmem:[%s3636 + $0xc2] sm:$0xff]
        %v4298 = vld [vmem:[%s3636 + $0xca] sm:$0xff]
        %v4299 = vld [vmem:[%s3636 + $0xda] sm:$0xff]
        %v4300 = vld [vmem:[%s3636 + $0xe2] sm:$0xff]
        %v4301 = vld [vmem:[%s3636 + $0xf2] sm:$0xff]
        %v4302 = vld [vmem:[%s3636 + $0xfa] sm:$0xff]
        %v4303 = vld [vmem:[%s3636 + $0x10a] sm:$0xff]
        %v4304 = vld [vmem:[%s3636 + $0x112] sm:$0xff]
        %v4305 = vld [vmem:[%s3636 + $0x122] sm:$0xff]
        %v4306 = vld [vmem:[%s3636 + $0x12a] sm:$0xff]
        %v4307 = vld [vmem:[%s3636 + $0x13a] sm:$0xff]
        %v4308 = vld [vmem:[%s3636 + $0x142] sm:$0xff]
        %v4309 = vld [vmem:[%s3636 + $0x152] sm:$0xff]
        %v4310 = vld [vmem:[%s3636 + $0x15a] sm:$0xff]
        %v4311 = vld [vmem:[%s3636 + $0x16a] sm:$0xff]
        %v4312 = vld [vmem:[%s3636 + $0x172] sm:$0xff]
        %v4313 = vpack.c.bf16 %v4282, %v4281
        %v4314 = vpack.c.bf16 %v4284, %v4283
        %v4315 = vpack.c.bf16 %v4286, %v4285
        %v4316 = vpack.c.bf16 %v4288, %v4287
        %v4317 = vpack.c.bf16 %v4290, %v4289
        %v4318 = vpack.c.bf16 %v4292, %v4291
        %v4319 = vpack.c.bf16 %v4294, %v4293
        %v4320 = vpack.c.bf16 %v4296, %v4295
        %v4321 = vpack.c.bf16 %v4298, %v4297
        %v4322 = vpack.c.bf16 %v4300, %v4299
        %v4323 = vpack.c.bf16 %v4302, %v4301
        %v4324 = vpack.c.bf16 %v4304, %v4303
        %v4325 = vpack.c.bf16 %v4306, %v4305
        %v4326 = vpack.c.bf16 %v4308, %v4307
        %v4327 = vpack.c.bf16 %v4310, %v4309
        %v4328 = vpack.c.bf16 %v4312, %v4311
        %s4329 = scalar_lea.vmem %s3, 256
        %v4330 = vld [vmem:[%s4329] sm:$0xf]
        %v4331 = vld [vmem:[%s4329 + $0x4] sm:$0xf]
        %v4332 = vld [vmem:[%s4329 + $0x8] sm:$0xf]
        %v4333 = vld [vmem:[%s4329 + $0xc] sm:$0xf]
        %v4334 = vld [vmem:[%s4329 + $0x10] sm:$0xf]
        %v4335 = vld [vmem:[%s4329 + $0x14] sm:$0xf]
        %v4336 = vld [vmem:[%s4329 + $0x18] sm:$0xf]
        %v4337 = vld [vmem:[%s4329 + $0x1c] sm:$0xf]
        %v4346 = vunpack.c.l.b16 %v4330
        %v4347 = vunpack.c.l.b16 %v4331
        %v4348 = vunpack.c.l.b16 %v4332
        %v4349 = vunpack.c.l.b16 %v4333
        %v4350 = vunpack.c.l.b16 %v4334
        %v4351 = vunpack.c.l.b16 %v4335
        %v4352 = vunpack.c.l.b16 %v4336
        %v4353 = vunpack.c.l.b16 %v4337
        %v4354 = vpack.c.b16 %v4347, %v4346
        %v4355 = vpack.c.b16 %v4349, %v4348
        %v4356 = vpack.c.b16 %v4351, %v4350
        %v4357 = vpack.c.b16 %v4353, %v4352
        %v4363 = vsel %vm1616, %v4313, 0
        %v4366 = vsel %vm1616, %v4314, 0
        %v4369 = vsel %vm1616, %v4315, 0
        %v4372 = vsel %vm1616, %v4316, 0
        %v4375 = vsel %vm1616, %v4317, 0
        %v4378 = vsel %vm1616, %v4318, 0
        %v4381 = vsel %vm1616, %v4319, 0
        %v4384 = vsel %vm1616, %v4320, 0
        %v4387 = vsel %vm1616, %v4321, 0
        %v4390 = vsel %vm1616, %v4322, 0
        %v4393 = vsel %vm1616, %v4323, 0
        %v4396 = vsel %vm1616, %v4324, 0
        %v4399 = vsel %vm1616, %v4325, 0
        %v4402 = vsel %vm1616, %v4326, 0
        %v4405 = vsel %vm1616, %v4327, 0
        %v4408 = vsel %vm1616, %v4328, 0
        %4410 = vmatprep.subr.bf16.mxu0 0
        %4411 = vmatpush1.bf16.msra.mxu0 %v4354
        %4412 = vmatprep.subr.bf16.mxu0 0
        %4413 = vmatpush1.bf16.msra.mxu0 %v4355
        %4414 = vmatprep.subr.bf16.mxu0 0
        %4415 = vmatpush1.bf16.msra.mxu0 %v4356
        %4416 = vmatprep.subr.bf16.mxu0 0
        %4417 = vmatpush1.bf16.msra.mxu0 %v4357
        %4418 = vmatprep.subr.bf16.mxu0 0
        %4419 = vmatpush1.bf16.msra.mxu0 0
        %4420 = vmatprep.subr.bf16.mxu0 0
        %4421 = vmatpush1.bf16.msra.mxu0 0
        %4422 = vmatprep.subr.bf16.mxu0 0
        %4423 = vmatpush1.bf16.msra.mxu0 0
        %4424 = vmatprep.subr.bf16.mxu0 0
        %4425 = vmatpush1.bf16.msra.mxu0 0
        %4426 = vmatprep.subr.bf16.mxu0 0
        %4427 = vmatpush1.bf16.msra.mxu0 0
        %4428 = vmatprep.subr.bf16.mxu0 0
        %4429 = vmatpush1.bf16.msra.mxu0 0
        %4430 = vmatprep.subr.bf16.mxu0 0
        %4431 = vmatpush1.bf16.msra.mxu0 0
        %4432 = vmatprep.subr.bf16.mxu0 0
        %4433 = vmatpush1.bf16.msra.mxu0 0
        %4434 = vmatprep.subr.bf16.mxu0 0
        %4435 = vmatpush1.bf16.msra.mxu0 0
        %4436 = vmatprep.subr.bf16.mxu0 0
        %4437 = vmatpush1.bf16.msra.mxu0 0
        %4438 = vmatprep.subr.bf16.mxu0 0
        %4439 = vmatpush1.bf16.msra.mxu0 0
        %4440 = vmatprep.subr.bf16.mxu0 0
        %4441 = vmatpush1.bf16.msra.mxu0 0
        %4442 = vmatprep.mubr.bf16.mxu0 0
        %4443 = vmatmul.mubr.bf16.gmra.mrb[0].mxu0 %v4363
        %v4444 = vpop.f32.mrb[0].mxu0
        %v4445 = vadd.f32 0.0, %v4444
        %v4446 = vpop.f32.mrb[0].mxu0
        %v4447 = vpop.f32.mrb[0].mxu0
        %v4448 = vadd.f32 0.0, %v4447
        %v4449 = vpop.f32.mrb[0].mxu0
        %4450 = vmatprep.mubr.bf16.mxu0 0
        %4451 = vmatmul.mubr.bf16.gmra.mrb[0].mxu0 %v4366
        %v4452 = vpop.f32.mrb[0].mxu0
        %v4453 = vadd.f32 0.0, %v4452
        %v4454 = vpop.f32.mrb[0].mxu0
        %v4455 = vpop.f32.mrb[0].mxu0
        %v4456 = vadd.f32 0.0, %v4455
        %v4457 = vpop.f32.mrb[0].mxu0
        %4458 = vmatprep.mubr.bf16.mxu0 0
        %4459 = vmatmul.mubr.bf16.gmra.mrb[0].mxu0 %v4369
        %v4460 = vpop.f32.mrb[0].mxu0
        %v4461 = vadd.f32 0.0, %v4460
        %v4462 = vpop.f32.mrb[0].mxu0
        %v4463 = vpop.f32.mrb[0].mxu0
        %v4464 = vadd.f32 0.0, %v4463
        %v4465 = vpop.f32.mrb[0].mxu0
        %4466 = vmatprep.mubr.bf16.mxu0 0
        %4467 = vmatmul.mubr.bf16.gmra.mrb[0].mxu0 %v4372
        %v4468 = vpop.f32.mrb[0].mxu0
        %v4469 = vadd.f32 0.0, %v4468
        %v4470 = vpop.f32.mrb[0].mxu0
        %v4471 = vpop.f32.mrb[0].mxu0
        %v4472 = vadd.f32 0.0, %v4471
        %v4473 = vpop.f32.mrb[0].mxu0
        %4474 = vmatprep.mubr.bf16.mxu0 0
        %4475 = vmatmul.mubr.bf16.gmra.mrb[0].mxu0 %v4375
        %v4476 = vpop.f32.mrb[0].mxu0
        %v4477 = vadd.f32 0.0, %v4476
        %v4478 = vpop.f32.mrb[0].mxu0
        %v4479 = vpop.f32.mrb[0].mxu0
        %v4480 = vadd.f32 0.0, %v4479
        %v4481 = vpop.f32.mrb[0].mxu0
        %4482 = vmatprep.mubr.bf16.mxu0 0
        %4483 = vmatmul.mubr.bf16.gmra.mrb[0].mxu0 %v4378
        %v4484 = vpop.f32.mrb[0].mxu0
        %v4485 = vadd.f32 0.0, %v4484
        %v4486 = vpop.f32.mrb[0].mxu0
        %v4487 = vpop.f32.mrb[0].mxu0
        %v4488 = vadd.f32 0.0, %v4487
        %v4489 = vpop.f32.mrb[0].mxu0
        %4490 = vmatprep.mubr.bf16.mxu0 0
        %4491 = vmatmul.mubr.bf16.gmra.mrb[0].mxu0 %v4381
        %v4492 = vpop.f32.mrb[0].mxu0
        %v4493 = vadd.f32 0.0, %v4492
        %v4494 = vpop.f32.mrb[0].mxu0
        %v4495 = vpop.f32.mrb[0].mxu0
        %v4496 = vadd.f32 0.0, %v4495
        %v4497 = vpop.f32.mrb[0].mxu0
        %4498 = vmatprep.mubr.bf16.mxu0 0
        %4499 = vmatmul.mubr.bf16.gmra.mrb[0].mxu0 %v4384
        %v4500 = vpop.f32.mrb[0].mxu0
        %v4501 = vadd.f32 0.0, %v4500
        %v4502 = vpop.f32.mrb[0].mxu0
        %v4503 = vpop.f32.mrb[0].mxu0
        %v4504 = vadd.f32 0.0, %v4503
        %v4505 = vpop.f32.mrb[0].mxu0
        %4506 = vmatprep.mubr.bf16.mxu0 0
        %4507 = vmatmul.mubr.bf16.gmra.mrb[0].mxu0 %v4387
        %v4508 = vpop.f32.mrb[0].mxu0
        %v4509 = vadd.f32 0.0, %v4508
        %v4510 = vpop.f32.mrb[0].mxu0
        %v4511 = vpop.f32.mrb[0].mxu0
        %v4512 = vadd.f32 0.0, %v4511
        %v4513 = vpop.f32.mrb[0].mxu0
        %4514 = vmatprep.mubr.bf16.mxu0 0
        %4515 = vmatmul.mubr.bf16.gmra.mrb[0].mxu0 %v4390
        %v4516 = vpop.f32.mrb[0].mxu0
        %v4517 = vadd.f32 0.0, %v4516
        %v4518 = vpop.f32.mrb[0].mxu0
        %v4519 = vpop.f32.mrb[0].mxu0
        %v4520 = vadd.f32 0.0, %v4519
        %v4521 = vpop.f32.mrb[0].mxu0
        %4522 = vmatprep.mubr.bf16.mxu0 0
        %4523 = vmatmul.mubr.bf16.gmra.mrb[0].mxu0 %v4393
        %v4524 = vpop.f32.mrb[0].mxu0
        %v4525 = vadd.f32 0.0, %v4524
        %v4526 = vpop.f32.mrb[0].mxu0
        %v4527 = vpop.f32.mrb[0].mxu0
        %v4528 = vadd.f32 0.0, %v4527
        %v4529 = vpop.f32.mrb[0].mxu0
        %4530 = vmatprep.mubr.bf16.mxu0 0
        %4531 = vmatmul.mubr.bf16.gmra.mrb[0].mxu0 %v4396
        %v4532 = vpop.f32.mrb[0].mxu0
        %v4533 = vadd.f32 0.0, %v4532
        %v4534 = vpop.f32.mrb[0].mxu0
        %v4535 = vpop.f32.mrb[0].mxu0
        %v4536 = vadd.f32 0.0, %v4535
        %v4537 = vpop.f32.mrb[0].mxu0
        %4538 = vmatprep.mubr.bf16.mxu0 0
        %4539 = vmatmul.mubr.bf16.gmra.mrb[0].mxu0 %v4399
        %v4540 = vpop.f32.mrb[0].mxu0
        %v4541 = vadd.f32 0.0, %v4540
        %v4542 = vpop.f32.mrb[0].mxu0
        %v4543 = vpop.f32.mrb[0].mxu0
        %v4544 = vadd.f32 0.0, %v4543
        %v4545 = vpop.f32.mrb[0].mxu0
        %4546 = vmatprep.mubr.bf16.mxu0 0
        %4547 = vmatmul.mubr.bf16.gmra.mrb[0].mxu0 %v4402
        %v4548 = vpop.f32.mrb[0].mxu0
        %v4549 = vadd.f32 0.0, %v4548
        %v4550 = vpop.f32.mrb[0].mxu0
        %v4551 = vpop.f32.mrb[0].mxu0
        %v4552 = vadd.f32 0.0, %v4551
        %v4553 = vpop.f32.mrb[0].mxu0
        %4554 = vmatprep.mubr.bf16.mxu0 0
        %4555 = vmatmul.mubr.bf16.gmra.mrb[0].mxu0 %v4405
        %v4556 = vpop.f32.mrb[0].mxu0
        %v4557 = vadd.f32 0.0, %v4556
        %v4558 = vpop.f32.mrb[0].mxu0
        %v4559 = vpop.f32.mrb[0].mxu0
        %v4560 = vadd.f32 0.0, %v4559
        %v4561 = vpop.f32.mrb[0].mxu0
        %4562 = vmatprep.mubr.bf16.mxu0 0
        %4563 = vmatmul.mubr.bf16.gmra.mrb[0].mxu0 %v4408
        %v4564 = vpop.f32.mrb[0].mxu0
        %v4565 = vadd.f32 0.0, %v4564
        %v4566 = vpop.f32.mrb[0].mxu0
        %v4567 = vpop.f32.mrb[0].mxu0
        %v4568 = vadd.f32 0.0, %v4567
        %v4569 = vpop.f32.mrb[0].mxu0
        %4570 = vdwg.mxu0
        %v4571 = vadd.f32 %v4249, %v4445
        %v4572 = vadd.f32 %v4250, %v4448
        %v4573 = vadd.f32 %v4251, %v4453
        %v4574 = vadd.f32 %v4252, %v4456
        %v4575 = vadd.f32 %v4253, %v4461
        %v4576 = vadd.f32 %v4254, %v4464
        %v4577 = vadd.f32 %v4255, %v4469
        %v4578 = vadd.f32 %v4256, %v4472
        %v4579 = vadd.f32 %v4257, %v4477
        %v4580 = vadd.f32 %v4258, %v4480
        %v4581 = vadd.f32 %v4259, %v4485
        %v4582 = vadd.f32 %v4260, %v4488
        %v4583 = vadd.f32 %v4261, %v4493
        %v4584 = vadd.f32 %v4262, %v4496
        %v4585 = vadd.f32 %v4263, %v4501
        %v4586 = vadd.f32 %v4264, %v4504
        %v4587 = vadd.f32 %v4265, %v4509
        %v4588 = vadd.f32 %v4266, %v4512
        %v4589 = vadd.f32 %v4267, %v4517
        %v4590 = vadd.f32 %v4268, %v4520
        %v4591 = vadd.f32 %v4269, %v4525
        %v4592 = vadd.f32 %v4270, %v4528
        %v4593 = vadd.f32 %v4271, %v4533
        %v4594 = vadd.f32 %v4272, %v4536
        %v4595 = vadd.f32 %v4273, %v4541
        %v4596 = vadd.f32 %v4274, %v4544
        %v4597 = vadd.f32 %v4275, %v4549
        %v4598 = vadd.f32 %v4276, %v4552
        %v4599 = vadd.f32 %v4277, %v4557
        %v4600 = vadd.f32 %v4278, %v4560
        %v4601 = vadd.f32 %v4279, %v4565
        %v4602 = vadd.f32 %v4280, %v4568
        %v4603 = vld [vmem:[%s5] sm:$0x1]
        %v4605 = vlaneseq
        %v4606 = vshrl.u32 %v4605, 7
        %v4607 = vsub.s32 0, %v4606
        %v4608 = vrot.slane %v4603, %v4607
        %v4610 = vadd.f32 %v4571, %v4608
        %v4611 = vadd.f32 %v4572, %v4608
        %v4612 = vadd.f32 %v4573, %v4608
        %v4613 = vadd.f32 %v4574, %v4608
        %v4614 = vadd.f32 %v4575, %v4608
        %v4615 = vadd.f32 %v4576, %v4608
        %v4616 = vadd.f32 %v4577, %v4608
        %v4617 = vadd.f32 %v4578, %v4608
        %v4618 = vadd.f32 %v4579, %v4608
        %v4619 = vadd.f32 %v4580, %v4608
        %v4620 = vadd.f32 %v4581, %v4608
        %v4621 = vadd.f32 %v4582, %v4608
        %v4622 = vadd.f32 %v4583, %v4608
        %v4623 = vadd.f32 %v4584, %v4608
        %v4624 = vadd.f32 %v4585, %v4608
        %v4625 = vadd.f32 %v4586, %v4608
        %v4626 = vadd.f32 %v4587, %v4608
        %v4627 = vadd.f32 %v4588, %v4608
        %v4628 = vadd.f32 %v4589, %v4608
        %v4629 = vadd.f32 %v4590, %v4608
        %v4630 = vadd.f32 %v4591, %v4608
        %v4631 = vadd.f32 %v4592, %v4608
        %v4632 = vadd.f32 %v4593, %v4608
        %v4633 = vadd.f32 %v4594, %v4608
        %v4634 = vadd.f32 %v4595, %v4608
        %v4635 = vadd.f32 %v4596, %v4608
        %v4636 = vadd.f32 %v4597, %v4608
        %v4637 = vadd.f32 %v4598, %v4608
        %v4638 = vadd.f32 %v4599, %v4608
        %v4639 = vadd.f32 %v4600, %v4608
        %v4640 = vadd.f32 %v4601, %v4608
        %v4641 = vadd.f32 %v4602, %v4608
        %v4642 = vadd.f32 %v1584, %v4610
        %v4643 = vadd.f32 %v1585, %v4611
        %v4644 = vadd.f32 %v1586, %v4612
        %v4645 = vadd.f32 %v1587, %v4613
        %v4646 = vadd.f32 %v1588, %v4614
        %v4647 = vadd.f32 %v1589, %v4615
        %v4648 = vadd.f32 %v1590, %v4616
        %v4649 = vadd.f32 %v1591, %v4617
        %v4650 = vadd.f32 %v1592, %v4618
        %v4651 = vadd.f32 %v1593, %v4619
        %v4652 = vadd.f32 %v1594, %v4620
        %v4653 = vadd.f32 %v1595, %v4621
        %v4654 = vadd.f32 %v1596, %v4622
        %v4655 = vadd.f32 %v1597, %v4623
        %v4656 = vadd.f32 %v1598, %v4624
        %v4657 = vadd.f32 %v1599, %v4625
        %v4658 = vadd.f32 %v1600, %v4626
        %v4659 = vadd.f32 %v1601, %v4627
        %v4660 = vadd.f32 %v1602, %v4628
        %v4661 = vadd.f32 %v1603, %v4629
        %v4662 = vadd.f32 %v1604, %v4630
        %v4663 = vadd.f32 %v1605, %v4631
        %v4664 = vadd.f32 %v1606, %v4632
        %v4665 = vadd.f32 %v1607, %v4633
        %v4666 = vadd.f32 %v1608, %v4634
        %v4667 = vadd.f32 %v1609, %v4635
        %v4668 = vadd.f32 %v1610, %v4636
        %v4669 = vadd.f32 %v1611, %v4637
        %v4670 = vadd.f32 %v1612, %v4638
        %v4671 = vadd.f32 %v1613, %v4639
        %v4672 = vadd.f32 %v1614, %v4640
        %v4673 = vadd.f32 %v1615, %v4641
        %4674 = vst.msk [vmem:[%s259] sm:$0xff] %vm1616, %v4642
        %4675 = vst.msk [vmem:[%s259 + $0x8] sm:$0xff] %vm1616, %v4643
        %4676 = vst.msk [vmem:[%s259 + $0x10] sm:$0xff] %vm1616, %v4644
        %4677 = vst.msk [vmem:[%s259 + $0x18] sm:$0xff] %vm1616, %v4645
        %4678 = vst.msk [vmem:[%s259 + $0x20] sm:$0xff] %vm1616, %v4646
        %4679 = vst.msk [vmem:[%s259 + $0x28] sm:$0xff] %vm1616, %v4647
        %4680 = vst.msk [vmem:[%s259 + $0x30] sm:$0xff] %vm1616, %v4648
        %4681 = vst.msk [vmem:[%s259 + $0x38] sm:$0xff] %vm1616, %v4649
        %4682 = vst.msk [vmem:[%s259 + $0x40] sm:$0xff] %vm1616, %v4650
        %4683 = vst.msk [vmem:[%s259 + $0x48] sm:$0xff] %vm1616, %v4651
        %4684 = vst.msk [vmem:[%s259 + $0x50] sm:$0xff] %vm1616, %v4652
        %4685 = vst.msk [vmem:[%s259 + $0x58] sm:$0xff] %vm1616, %v4653
        %4686 = vst.msk [vmem:[%s259 + $0x60] sm:$0xff] %vm1616, %v4654
        %4687 = vst.msk [vmem:[%s259 + $0x68] sm:$0xff] %vm1616, %v4655
        %4688 = vst.msk [vmem:[%s259 + $0x70] sm:$0xff] %vm1616, %v4656
        %4689 = vst.msk [vmem:[%s259 + $0x78] sm:$0xff] %vm1616, %v4657
        %4690 = vst.msk [vmem:[%s259 + $0x80] sm:$0xff] %vm1616, %v4658
        %4691 = vst.msk [vmem:[%s259 + $0x88] sm:$0xff] %vm1616, %v4659
        %4692 = vst.msk [vmem:[%s259 + $0x90] sm:$0xff] %vm1616, %v4660
        %4693 = vst.msk [vmem:[%s259 + $0x98] sm:$0xff] %vm1616, %v4661
        %4694 = vst.msk [vmem:[%s259 + $0xa0] sm:$0xff] %vm1616, %v4662
        %4695 = vst.msk [vmem:[%s259 + $0xa8] sm:$0xff] %vm1616, %v4663
        %4696 = vst.msk [vmem:[%s259 + $0xb0] sm:$0xff] %vm1616, %v4664
        %4697 = vst.msk [vmem:[%s259 + $0xb8] sm:$0xff] %vm1616, %v4665
        %4698 = vst.msk [vmem:[%s259 + $0xc0] sm:$0xff] %vm1616, %v4666
        %4699 = vst.msk [vmem:[%s259 + $0xc8] sm:$0xff] %vm1616, %v4667
        %4700 = vst.msk [vmem:[%s259 + $0xd0] sm:$0xff] %vm1616, %v4668
        %4701 = vst.msk [vmem:[%s259 + $0xd8] sm:$0xff] %vm1616, %v4669
        %4702 = vst.msk [vmem:[%s259 + $0xe0] sm:$0xff] %vm1616, %v4670
        %4703 = vst.msk [vmem:[%s259 + $0xe8] sm:$0xff] %vm1616, %v4671
        %4704 = vst.msk [vmem:[%s259 + $0xf0] sm:$0xff] %vm1616, %v4672
        %4705 = vst.msk [vmem:[%s259 + $0xf8] sm:$0xff] %vm1616, %v4673
        %s4706 = sand.u32 %s164, 1
        %s4707 = scalar_lea.sflag [#allocation4], %s4706
        %s4708 = sand.u32 %s164, 1
        %s4709 = smul.addr %s4708, 256
        %s4710 = scalar_lea.vmem [#allocation3], %s4709
        // Predicated region
        $region45: #{fam2_forward.1} parent=43 // pred_check
          %p4711 = pneg %p174
        $region46: #{fam2_forward.1} parent=43 // pred_check_branch
          %4713 = sbr.rel (%p4711) target = $region48
        $region47: #{fam2_forward.1} parent=43 // pred_region
          %s4715 = ssub.s32 4096, 4096
          %4716 = vsyncadd %s4707, %s4715
          %s4717 = smul.addr %s20, 32
          %s4718 = smul.addr %s4717, 128
          %s4719 = scalar_lea.hbm %s6, %s4718
          %s4720 = sshll.u32 %s4710, 4
          %s4721 = int_to_ptr.vmem [resolvable:$true] %s4720
          %4726 = dma.vmem_to_hbm [thread:$0]  %s4721, 4096, %s4719, %s4707, 128, 128, 8
        $region48: #{fam2_forward.1} parent=43 // pred_fallthru
          _
      $region44: #{fam2_forward.1} parent=5 // pred_fallthru
        _
      %p4727 = scmp.le.s32.totalorder 2, %s15
      // Predicated region
      $region49: #{fam2_forward.1} parent=5 // pred_check
        %p4728 = pneg %p4727
      $region50: #{fam2_forward.1} parent=5 // pred_check_branch
        %4730 = sbr.rel (%p4728) target = $region52
      $region51: #{fam2_forward.1} parent=5 // pred_region
        %s4731 = ssub.s32 %s15, 2
        // Predicated region
        $region53: #{fam2_forward.1} parent=51 // pred_check
          %p4732 = pneg %p180
        $region54: #{fam2_forward.1} parent=51 // pred_check_branch
          %4734 = sbr.rel (%p4732) target = $region56
        $region55: #{fam2_forward.1} parent=51 // pred_region
          %s4735 = sand.u32 %s165, 1
          %s4736 = scalar_lea.sflag [#allocation4], %s4735
          %s4737 = sand.u32 %s165, 1
          %s4738 = smul.addr %s4737, 256
          %s4739 = scalar_lea.vmem [#allocation3], %s4738
          %4740 = dma.done %s4736, 4096
        $region56: #{fam2_forward.1} parent=51 // pred_fallthru
          _
      $region52: #{fam2_forward.1} parent=5 // pred_fallthru
        _
    $region6: #{fam2_forward.1} parent=1 // loop_footer
      %s19 = sadd.s32 1, %s15
    $region7: #{fam2_forward.1} parent=1 // loop_footer_branch
      %14 = sbr.rel target = $region3
    $region8: #{fam2_forward.1} parent=1 // loop_exit
      _
    %4741 = vsyncpa [#allocation4], 1
    %s4742 = scalar_lea.sflag [#allocation4], 1
    %4743 = vsyncpa %s4742, 1

</llo_original>
